<compile_context>
chip_gen: v6e
topology: v6e:2x2x1
jax: 0.10.0
libtpu: 0.0.40
codegen_flags: <defaults>
</compile_context>

<pallas_src>
import math

import jax
import jax.numpy as jnp
from jax.experimental import pallas as pl
from jax.experimental.pallas import tpu as pltpu

# ---- problem sizes (small, consistent with the module's forward) ------------
B, S = 2, 8                  # batch, src_len
HID, HEADS, PF = 32, 4, 64   # hid_dim, heads, pf_dim
LAYERS = 2
HEAD_DIM = HID // HEADS
N = B * S                    # batch folded into rows: single block, single grid step
VOCAB = 50
VOCAB_PAD = 64               # one-hot contraction dim padded for the MXU
PAD_IDX = 0
MAX_LEN = 100

ATT_SCALE = 1.0 / math.sqrt(HEAD_DIM)
EMB_SCALE = math.sqrt(HID)
LN_EPS = 1e-5                # nn.LayerNorm default
NEG_INF = -1e10              # matches torch masked_fill(-10000000000.0)


# ---------------------------------------------------------------------------
# Kernel: the whole Encoder forward in one grid step (everything fits VMEM).
# Packed parameters (leading layer axis, weights stored (in, out)):
#   wqkv (L, HID, 3*HID)  bqkv (L, 1, 3*HID)    -- fused [Wq|Wk|Wv]
#   wo   (L, HID, HID)    bo   (L, 1, HID)
#   w1   (L, HID, PF)     b1   (L, 1, PF)
#   w2   (L, PF, HID)     b2   (L, 1, HID)
#   lng/lnb (L, 2, HID)   -- [attn-LN, ff-LN] gamma / beta
# ---------------------------------------------------------------------------
def encoder_kernel(tok_ref, pe_ref, bias_ref, emb_ref,
                   wqkv_ref, bqkv_ref, wo_ref, bo_ref,
                   w1_ref, b1_ref, w2_ref, b2_ref,
                   lng_ref, lnb_ref,
                   out_ref):
    # ---- embedding: gather-free one-hot matmul on the MXU -------------------
    tok = tok_ref[...]                                          # (N, 1) int32
    iota = jax.lax.broadcasted_iota(jnp.int32, (N, VOCAB_PAD), 1)
    onehot = (iota == tok).astype(jnp.float32)                  # (N, VOCAB_PAD)
    x = jnp.dot(onehot, emb_ref[...], preferred_element_type=jnp.float32)
    x = x * EMB_SCALE + pe_ref[...]                             # tok_emb*scale + pos-enc

    bias = bias_ref[...]                                        # (N, N) additive mask bias

    def layer_norm(y, g, b):
        mu = jnp.mean(y, axis=-1, keepdims=True)
        yc = y - mu
        var = jnp.mean(yc * yc, axis=-1, keepdims=True)
        return yc * jax.lax.rsqrt(var + LN_EPS) * g + b

    for l in range(LAYERS):                                     # static unroll (L=2)
        # ---- self-attention: fused QKV projection ----------------------------
        qkv = jnp.dot(x, wqkv_ref[l],
                      preferred_element_type=jnp.float32) + bqkv_ref[l]   # (N, 3*HID)
        head_out = []
        for h in range(HEADS):                                  # static unroll, static lane slices
            lo = h * HEAD_DIM
            qh = qkv[:, lo:lo + HEAD_DIM]
            kh = qkv[:, HID + lo:HID + lo + HEAD_DIM]
            vh = qkv[:, 2 * HID + lo:2 * HID + lo + HEAD_DIM]
            e = jnp.einsum('td,sd->ts', qh, kh,
                           preferred_element_type=jnp.float32) * ATT_SCALE + bias
            e = e - jnp.max(e, axis=-1, keepdims=True)
            p = jnp.exp(e)
            p = p * pl.reciprocal(jnp.sum(p, axis=-1, keepdims=True), approx=True)
            head_out.append(jnp.dot(p, vh, preferred_element_type=jnp.float32))
        ctx = jnp.concatenate(head_out, axis=-1)                # (N, HID) -- single W_o dot
        att = jnp.dot(ctx, wo_ref[l],
                      preferred_element_type=jnp.float32) + bo_ref[l]

        lng = lng_ref[l]                                        # (2, HID)
        lnb = lnb_ref[l]
        x = layer_norm(x + att, lng[0:1, :], lnb[0:1, :])       # dropout = identity

        # ---- position-wise feedforward ---------------------------------------
        h1 = jnp.maximum(jnp.dot(x, w1_ref[l],
                                 preferred_element_type=jnp.float32) + b1_ref[l], 0.0)
        ff = jnp.dot(h1, w2_ref[l],
                     preferred_element_type=jnp.float32) + b2_ref[l]
        x = layer_norm(x + ff, lng[1:2, :], lnb[1:2, :])

    out_ref[...] = x


def _full(shape):
    n = len(shape)
    return pl.BlockSpec(shape, lambda i, _n=n: (0,) * _n)


@jax.jit
def encoder_forward(src_tokens, src_mask, params):
    (emb_pad, pe_rows, wqkv, bqkv, wo, bo, w1, b1, w2, b2, lng, lnb) = params

    tok2d = src_tokens.reshape(N, 1).astype(jnp.int32)
    pe_b = jnp.broadcast_to(pe_rows[:S], (B, S, HID)).reshape(N, HID).astype(jnp.float32)

    # Additive attention-mask bias (N, N): block-diagonal over the folded batch
    # + source key-padding mask.  exp(-1e10 - max) == 0 in f32, so the folded
    # softmax matches the per-batch reference exactly; a fully-masked row would
    # give uniform probs rather than NaN (same as masked_fill + softmax).
    batch_ids = jnp.repeat(jnp.arange(B), S)
    same_batch = batch_ids[:, None] == batch_ids[None, :]
    key_valid = (src_mask.reshape(B, S) != 0.0).reshape(N)
    bias = jnp.where(same_batch & key_valid[None, :], 0.0, NEG_INF).astype(jnp.float32)

    inputs = (tok2d, pe_b, bias, emb_pad,
              wqkv, bqkv, wo, bo, w1, b1, w2, b2, lng, lnb)

    out = pl.pallas_call(
        encoder_kernel,
        out_shape=jax.ShapeDtypeStruct((N, HID), jnp.float32),
        grid_spec=pltpu.PrefetchScalarGridSpec(
            num_scalar_prefetch=0,
            grid=(1,),
            in_specs=[_full(a.shape) for a in inputs],
            out_specs=_full((N, HID)),
        ),
        compiler_params=pltpu.CompilerParams(
            dimension_semantics=("arbitrary",)),
    )(*inputs)
    return out.reshape(B, S, HID)


# ---- positional-encoding buffer (matches PyTorch PositionEncoding) ----------
def sinusoidal_pe(max_len, hid):
    position = jnp.arange(max_len, dtype=jnp.float32)[:, None]
    div_term = jnp.exp(jnp.arange(0, hid, 2, dtype=jnp.float32)
                       * (-math.log(10000.0) / hid))
    pe = jnp.zeros((max_len, hid), jnp.float32)
    pe = pe.at[:, 0::2].set(jnp.sin(position * div_term))
    pe = pe.at[:, 1::2].set(jnp.cos(position * div_term))
    return pe


# ---- pure-JAX reference (mirrors the PyTorch Encoder forward, eval mode) ----
def reference(src_tokens, src_mask, params):
    (emb_pad, pe_rows, wqkv, bqkv, wo, bo, w1, b1, w2, b2, lng, lnb) = params
    emb = emb_pad[:VOCAB]
    x = emb[src_tokens] * EMB_SCALE + pe_rows[None, :S, :]

    def ln(y, g, b):
        mu = y.mean(-1, keepdims=True)
        var = ((y - mu) ** 2).mean(-1, keepdims=True)
        return (y - mu) / jnp.sqrt(var + LN_EPS) * g + b

    for l in range(LAYERS):
        qkv = x @ wqkv[l] + bqkv[l, 0]
        q, k, v = qkv[..., :HID], qkv[..., HID:2 * HID], qkv[..., 2 * HID:]

        def split(t):
            return t.reshape(B, S, HEADS, HEAD_DIM).transpose(0, 2, 1, 3)

        qh, kh, vh = split(q), split(k), split(v)
        e = jnp.einsum('bhqd,bhkd->bhqk', qh, kh) * ATT_SCALE
        e = jnp.where(src_mask == 0.0, NEG_INF, e)
        p = jax.nn.softmax(e, axis=-1)
        o = jnp.einsum('bhqk,bhkd->bhqd', p, vh)
        o = o.transpose(0, 2, 1, 3).reshape(B, S, HID)
        att = o @ wo[l] + bo[l, 0]
        x = ln(x + att, lng[l, 0], lnb[l, 0])
        ff = jnp.maximum(x @ w1[l] + b1[l, 0], 0.0) @ w2[l] + b2[l, 0]
        x = ln(x + ff, lng[l, 1], lnb[l, 1])
    return x


if __name__ == "__main__":
    key = jax.random.PRNGKey(0)
    ks = jax.random.split(key, 12)

    # token ids; batch 1 ends with padding tokens that src_mask disables
    src = jax.random.randint(ks[0], (B, S), 1, VOCAB)
    src = src.at[1, S - 2:].set(PAD_IDX)
    src_mask = (src != PAD_IDX).astype(jnp.float32).reshape(B, 1, 1, S)

    # deterministic parameter init (weights stored (in, out); y = x @ W + b)
    emb = 0.2 * jax.random.normal(ks[1], (VOCAB, HID), jnp.float32)
    emb = emb.at[PAD_IDX].set(0.0)                      # nn.Embedding(padding_idx=0)
    emb_pad = jnp.zeros((VOCAB_PAD, HID), jnp.float32).at[:VOCAB].set(emb)

    pe_rows = sinusoidal_pe(MAX_LEN, HID)

    wqkv = 0.1 * jax.random.normal(ks[2], (LAYERS, HID, 3 * HID), jnp.float32)
    bqkv = 0.05 * jax.random.normal(ks[3], (LAYERS, 1, 3 * HID), jnp.float32)
    wo = 0.1 * jax.random.normal(ks[4], (LAYERS, HID, HID), jnp.float32)
    bo = 0.05 * jax.random.normal(ks[5], (LAYERS, 1, HID), jnp.float32)
    w1 = 0.1 * jax.random.normal(ks[6], (LAYERS, HID, PF), jnp.float32)
    b1 = 0.05 * jax.random.normal(ks[7], (LAYERS, 1, PF), jnp.float32)
    w2 = 0.1 * jax.random.normal(ks[8], (LAYERS, PF, HID), jnp.float32)
    b2 = 0.05 * jax.random.normal(ks[9], (LAYERS, 1, HID), jnp.float32)
    lng = 1.0 + 0.05 * jax.random.normal(ks[10], (LAYERS, 2, HID), jnp.float32)
    lnb = 0.05 * jax.random.normal(ks[11], (LAYERS, 2, HID), jnp.float32)

    params = (emb_pad, pe_rows, wqkv, bqkv, wo, bo, w1, b1, w2, b2, lng, lnb)

    out = encoder_forward(src, src_mask, params)
    out = jax.block_until_ready(out)

    ref = reference(src, src_mask, params)
    assert out.shape == (B, S, HID)
    # tolerance covers the EUP approximate-reciprocal softmax normalization;
    # genuine bugs produce O(0.1-1) errors on these LN-normalized outputs.
    assert jnp.allclose(out, ref, rtol=1e-2, atol=1e-2), \
        float(jnp.max(jnp.abs(out - ref)))

    print("KERNEL_OK")
</pallas_src>

<mosaic_0001>
module attributes {stable_mosaic.version = 11 : i64} {
  func.func @encoder_kernel(%arg0: i32, %arg1: memref<16x1xi32, #tpu.memory_space<vmem>>, %arg2: memref<16x32xf32, #tpu.memory_space<vmem>>, %arg3: memref<16x16xf32, #tpu.memory_space<vmem>>, %arg4: memref<64x32xf32, #tpu.memory_space<vmem>>, %arg5: memref<2x32x96xf32, #tpu.memory_space<vmem>>, %arg6: memref<2x1x96xf32, #tpu.memory_space<vmem>>, %arg7: memref<2x32x32xf32, #tpu.memory_space<vmem>>, %arg8: memref<2x1x32xf32, #tpu.memory_space<vmem>>, %arg9: memref<2x32x64xf32, #tpu.memory_space<vmem>>, %arg10: memref<2x1x64xf32, #tpu.memory_space<vmem>>, %arg11: memref<2x64x32xf32, #tpu.memory_space<vmem>>, %arg12: memref<2x1x32xf32, #tpu.memory_space<vmem>>, %arg13: memref<2x2x32xf32, #tpu.memory_space<vmem>>, %arg14: memref<2x2x32xf32, #tpu.memory_space<vmem>>, %arg15: memref<16x32xf32, #tpu.memory_space<vmem>>) attributes {dimension_semantics = [#tpu.dimension_semantics<arbitrary>], iteration_bounds = array<i64: 1>, scalar_prefetch = 0 : i64, scratch_operands = 0 : i64, tpu.core_type = #tpu.core_type<tc>, window_params = [{pipeline_mode = #tpu.pipeline_mode<synchronous>, transform_indices = @transform_0, window_bounds = array<i64: 16, 1>}, {pipeline_mode = #tpu.pipeline_mode<synchronous>, transform_indices = @transform_1, window_bounds = array<i64: 16, 32>}, {pipeline_mode = #tpu.pipeline_mode<synchronous>, transform_indices = @transform_2, window_bounds = array<i64: 16, 16>}, {pipeline_mode = #tpu.pipeline_mode<synchronous>, transform_indices = @transform_3, window_bounds = array<i64: 64, 32>}, {pipeline_mode = #tpu.pipeline_mode<synchronous>, transform_indices = @transform_4, window_bounds = array<i64: 2, 32, 96>}, {pipeline_mode = #tpu.pipeline_mode<synchronous>, transform_indices = @transform_5, window_bounds = array<i64: 2, 1, 96>}, {pipeline_mode = #tpu.pipeline_mode<synchronous>, transform_indices = @transform_6, window_bounds = array<i64: 2, 32, 32>}, {pipeline_mode = #tpu.pipeline_mode<synchronous>, transform_indices = @transform_7, window_bounds = array<i64: 2, 1, 32>}, {pipeline_mode = #tpu.pipeline_mode<synchronous>, transform_indices = @transform_8, window_bounds = array<i64: 2, 32, 64>}, {pipeline_mode = #tpu.pipeline_mode<synchronous>, transform_indices = @transform_9, window_bounds = array<i64: 2, 1, 64>}, {pipeline_mode = #tpu.pipeline_mode<synchronous>, transform_indices = @transform_10, window_bounds = array<i64: 2, 64, 32>}, {pipeline_mode = #tpu.pipeline_mode<synchronous>, transform_indices = @transform_11, window_bounds = array<i64: 2, 1, 32>}, {pipeline_mode = #tpu.pipeline_mode<synchronous>, transform_indices = @transform_12, window_bounds = array<i64: 2, 2, 32>}, {pipeline_mode = #tpu.pipeline_mode<synchronous>, transform_indices = @transform_13, window_bounds = array<i64: 2, 2, 32>}, {pipeline_mode = #tpu.pipeline_mode<synchronous>, transform_indices = @transform_14, window_bounds = array<i64: 16, 32>}]} {
    %c0 = arith.constant 0 : index
    %c0_0 = arith.constant 0 : index
    %0 = vector.load %arg1[%c0, %c0_0] : memref<16x1xi32, #tpu.memory_space<vmem>>, vector<16x1xi32>
    %1 = tpu.iota {dimensions = array<i32: 1>} : vector<16x64xi32>
    %2 = vector.broadcast %0 : vector<16x1xi32> to vector<16x64xi32>
    %3 = arith.cmpi eq, %1, %2 : vector<16x64xi32>
    %4 = arith.extui %3 : vector<16x64xi1> to vector<16x64xi32>
    %5 = arith.sitofp %4 : vector<16x64xi32> to vector<16x64xf32>
    %c0_1 = arith.constant 0 : index
    %c0_2 = arith.constant 0 : index
    %6 = vector.load %arg4[%c0_1, %c0_2] : memref<64x32xf32, #tpu.memory_space<vmem>>, vector<64x32xf32>
    %cst = arith.constant dense<0.000000e+00> : vector<16x32xf32>
    %7 = tpu.matmul %5, %6, %cst {dimension_numbers = #tpu.dot_dimension_numbers<[1], [0], [0], [1], [0, 0, 1, 1], [], []>} : vector<16x64xf32>, vector<64x32xf32>, vector<16x32xf32> -> vector<16x32xf32>
    %cst_3 = arith.constant 5.65685415 : f32
    %8 = vector.broadcast %cst_3 : f32 to vector<16x32xf32>
    %9 = arith.mulf %7, %8 : vector<16x32xf32>
    %c0_4 = arith.constant 0 : index
    %c0_5 = arith.constant 0 : index
    %10 = vector.load %arg2[%c0_4, %c0_5] : memref<16x32xf32, #tpu.memory_space<vmem>>, vector<16x32xf32>
    %11 = arith.addf %9, %10 : vector<16x32xf32>
    %c0_6 = arith.constant 0 : index
    %c0_7 = arith.constant 0 : index
    %12 = vector.load %arg3[%c0_6, %c0_7] : memref<16x16xf32, #tpu.memory_space<vmem>>, vector<16x16xf32>
    %c0_8 = arith.constant 0 : index
    %c0_9 = arith.constant 0 : index
    %c0_10 = arith.constant 0 : index
    %13 = vector.load %arg5[%c0_8, %c0_9, %c0_10] : memref<2x32x96xf32, #tpu.memory_space<vmem>>, vector<1x32x96xf32>
    %14 = vector.shape_cast %13 : vector<1x32x96xf32> to vector<32x96xf32>
    %cst_11 = arith.constant dense<0.000000e+00> : vector<16x96xf32>
    %15 = tpu.matmul %11, %14, %cst_11 {dimension_numbers = #tpu.dot_dimension_numbers<[1], [0], [0], [1], [0, 0, 1, 1], [], []>} : vector<16x32xf32>, vector<32x96xf32>, vector<16x96xf32> -> vector<16x96xf32>
    %c0_12 = arith.constant 0 : index
    %c0_13 = arith.constant 0 : index
    %c0_14 = arith.constant 0 : index
    %16 = vector.load %arg6[%c0_12, %c0_13, %c0_14] : memref<2x1x96xf32, #tpu.memory_space<vmem>>, vector<1x1x96xf32>
    %17 = vector.shape_cast %16 : vector<1x1x96xf32> to vector<1x96xf32>
    %18 = vector.broadcast %17 : vector<1x96xf32> to vector<16x96xf32>
    %19 = arith.addf %15, %18 : vector<16x96xf32>
    %20 = vector.extract_strided_slice %19 {offsets = [0, 0], sizes = [16, 8], strides = [1, 1]} : vector<16x96xf32> to vector<16x8xf32>
    %21 = vector.extract_strided_slice %19 {offsets = [0, 32], sizes = [16, 8], strides = [1, 1]} : vector<16x96xf32> to vector<16x8xf32>
    %22 = vector.extract_strided_slice %19 {offsets = [0, 64], sizes = [16, 8], strides = [1, 1]} : vector<16x96xf32> to vector<16x8xf32>
    "tpu.trace_start"() <{level = 10 : i32, message = "td,sd->ts"}> : () -> ()
    %cst_15 = arith.constant dense<0.000000e+00> : vector<16x16xf32>
    %23 = tpu.matmul %20, %21, %cst_15 {dimension_numbers = #tpu.dot_dimension_numbers<[1], [1], [0], [0], [0, 0, 1, 0], [], []>} : vector<16x8xf32>, vector<16x8xf32>, vector<16x16xf32> -> vector<16x16xf32>
    "tpu.trace_stop"() : () -> ()
    %cst_16 = arith.constant 0.353553385 : f32
    %24 = vector.broadcast %cst_16 : f32 to vector<16x16xf32>
    %25 = arith.mulf %23, %24 : vector<16x16xf32>
    %26 = arith.addf %25, %12 : vector<16x16xf32>
    %cst_17 = arith.constant dense<0xFF800000> : vector<16xf32>
    %27 = vector.multi_reduction <maximumf>, %26, %cst_17 [1] : vector<16x16xf32> to vector<16xf32>
    %28 = vector.shape_cast %27 : vector<16xf32> to vector<16x1xf32>
    %29 = vector.broadcast %28 : vector<16x1xf32> to vector<16x16xf32>
    %30 = arith.subf %26, %29 : vector<16x16xf32>
    %31 = math.exp %30 : vector<16x16xf32>
    %cst_18 = arith.constant dense<0.000000e+00> : vector<16xf32>
    %32 = vector.multi_reduction <add>, %31, %cst_18 [1] : vector<16x16xf32> to vector<16xf32>
    %33 = vector.shape_cast %32 : vector<16xf32> to vector<16x1xf32>
    %34 = tpu.reciprocal %33 {approx = true} : vector<16x1xf32> -> vector<16x1xf32>
    %35 = vector.broadcast %34 : vector<16x1xf32> to vector<16x16xf32>
    %36 = arith.mulf %31, %35 : vector<16x16xf32>
    %cst_19 = arith.constant dense<0.000000e+00> : vector<16x8xf32>
    %37 = tpu.matmul %36, %22, %cst_19 {dimension_numbers = #tpu.dot_dimension_numbers<[1], [0], [0], [1], [0, 0, 1, 1], [], []>} : vector<16x16xf32>, vector<16x8xf32>, vector<16x8xf32> -> vector<16x8xf32>
    %38 = vector.extract_strided_slice %19 {offsets = [0, 8], sizes = [16, 8], strides = [1, 1]} : vector<16x96xf32> to vector<16x8xf32>
    %39 = vector.extract_strided_slice %19 {offsets = [0, 40], sizes = [16, 8], strides = [1, 1]} : vector<16x96xf32> to vector<16x8xf32>
    %40 = vector.extract_strided_slice %19 {offsets = [0, 72], sizes = [16, 8], strides = [1, 1]} : vector<16x96xf32> to vector<16x8xf32>
    "tpu.trace_start"() <{level = 10 : i32, message = "td,sd->ts"}> : () -> ()
    %cst_20 = arith.constant dense<0.000000e+00> : vector<16x16xf32>
    %41 = tpu.matmul %38, %39, %cst_20 {dimension_numbers = #tpu.dot_dimension_numbers<[1], [1], [0], [0], [0, 0, 1, 0], [], []>} : vector<16x8xf32>, vector<16x8xf32>, vector<16x16xf32> -> vector<16x16xf32>
    "tpu.trace_stop"() : () -> ()
    %cst_21 = arith.constant 0.353553385 : f32
    %42 = vector.broadcast %cst_21 : f32 to vector<16x16xf32>
    %43 = arith.mulf %41, %42 : vector<16x16xf32>
    %44 = arith.addf %43, %12 : vector<16x16xf32>
    %cst_22 = arith.constant dense<0xFF800000> : vector<16xf32>
    %45 = vector.multi_reduction <maximumf>, %44, %cst_22 [1] : vector<16x16xf32> to vector<16xf32>
    %46 = vector.shape_cast %45 : vector<16xf32> to vector<16x1xf32>
    %47 = vector.broadcast %46 : vector<16x1xf32> to vector<16x16xf32>
    %48 = arith.subf %44, %47 : vector<16x16xf32>
    %49 = math.exp %48 : vector<16x16xf32>
    %cst_23 = arith.constant dense<0.000000e+00> : vector<16xf32>
    %50 = vector.multi_reduction <add>, %49, %cst_23 [1] : vector<16x16xf32> to vector<16xf32>
    %51 = vector.shape_cast %50 : vector<16xf32> to vector<16x1xf32>
    %52 = tpu.reciprocal %51 {approx = true} : vector<16x1xf32> -> vector<16x1xf32>
    %53 = vector.broadcast %52 : vector<16x1xf32> to vector<16x16xf32>
    %54 = arith.mulf %49, %53 : vector<16x16xf32>
    %cst_24 = arith.constant dense<0.000000e+00> : vector<16x8xf32>
    %55 = tpu.matmul %54, %40, %cst_24 {dimension_numbers = #tpu.dot_dimension_numbers<[1], [0], [0], [1], [0, 0, 1, 1], [], []>} : vector<16x16xf32>, vector<16x8xf32>, vector<16x8xf32> -> vector<16x8xf32>
    %56 = vector.extract_strided_slice %19 {offsets = [0, 16], sizes = [16, 8], strides = [1, 1]} : vector<16x96xf32> to vector<16x8xf32>
    %57 = vector.extract_strided_slice %19 {offsets = [0, 48], sizes = [16, 8], strides = [1, 1]} : vector<16x96xf32> to vector<16x8xf32>
    %58 = vector.extract_strided_slice %19 {offsets = [0, 80], sizes = [16, 8], strides = [1, 1]} : vector<16x96xf32> to vector<16x8xf32>
    "tpu.trace_start"() <{level = 10 : i32, message = "td,sd->ts"}> : () -> ()
    %cst_25 = arith.constant dense<0.000000e+00> : vector<16x16xf32>
    %59 = tpu.matmul %56, %57, %cst_25 {dimension_numbers = #tpu.dot_dimension_numbers<[1], [1], [0], [0], [0, 0, 1, 0], [], []>} : vector<16x8xf32>, vector<16x8xf32>, vector<16x16xf32> -> vector<16x16xf32>
    "tpu.trace_stop"() : () -> ()
    %cst_26 = arith.constant 0.353553385 : f32
    %60 = vector.broadcast %cst_26 : f32 to vector<16x16xf32>
    %61 = arith.mulf %59, %60 : vector<16x16xf32>
    %62 = arith.addf %61, %12 : vector<16x16xf32>
    %cst_27 = arith.constant dense<0xFF800000> : vector<16xf32>
    %63 = vector.multi_reduction <maximumf>, %62, %cst_27 [1] : vector<16x16xf32> to vector<16xf32>
    %64 = vector.shape_cast %63 : vector<16xf32> to vector<16x1xf32>
    %65 = vector.broadcast %64 : vector<16x1xf32> to vector<16x16xf32>
    %66 = arith.subf %62, %65 : vector<16x16xf32>
    %67 = math.exp %66 : vector<16x16xf32>
    %cst_28 = arith.constant dense<0.000000e+00> : vector<16xf32>
    %68 = vector.multi_reduction <add>, %67, %cst_28 [1] : vector<16x16xf32> to vector<16xf32>
    %69 = vector.shape_cast %68 : vector<16xf32> to vector<16x1xf32>
    %70 = tpu.reciprocal %69 {approx = true} : vector<16x1xf32> -> vector<16x1xf32>
    %71 = vector.broadcast %70 : vector<16x1xf32> to vector<16x16xf32>
    %72 = arith.mulf %67, %71 : vector<16x16xf32>
    %cst_29 = arith.constant dense<0.000000e+00> : vector<16x8xf32>
    %73 = tpu.matmul %72, %58, %cst_29 {dimension_numbers = #tpu.dot_dimension_numbers<[1], [0], [0], [1], [0, 0, 1, 1], [], []>} : vector<16x16xf32>, vector<16x8xf32>, vector<16x8xf32> -> vector<16x8xf32>
    %74 = vector.extract_strided_slice %19 {offsets = [0, 24], sizes = [16, 8], strides = [1, 1]} : vector<16x96xf32> to vector<16x8xf32>
    %75 = vector.extract_strided_slice %19 {offsets = [0, 56], sizes = [16, 8], strides = [1, 1]} : vector<16x96xf32> to vector<16x8xf32>
    %76 = vector.extract_strided_slice %19 {offsets = [0, 88], sizes = [16, 8], strides = [1, 1]} : vector<16x96xf32> to vector<16x8xf32>
    "tpu.trace_start"() <{level = 10 : i32, message = "td,sd->ts"}> : () -> ()
    %cst_30 = arith.constant dense<0.000000e+00> : vector<16x16xf32>
    %77 = tpu.matmul %74, %75, %cst_30 {dimension_numbers = #tpu.dot_dimension_numbers<[1], [1], [0], [0], [0, 0, 1, 0], [], []>} : vector<16x8xf32>, vector<16x8xf32>, vector<16x16xf32> -> vector<16x16xf32>
    "tpu.trace_stop"() : () -> ()
    %cst_31 = arith.constant 0.353553385 : f32
    %78 = vector.broadcast %cst_31 : f32 to vector<16x16xf32>
    %79 = arith.mulf %77, %78 : vector<16x16xf32>
    %80 = arith.addf %79, %12 : vector<16x16xf32>
    %cst_32 = arith.constant dense<0xFF800000> : vector<16xf32>
    %81 = vector.multi_reduction <maximumf>, %80, %cst_32 [1] : vector<16x16xf32> to vector<16xf32>
    %82 = vector.shape_cast %81 : vector<16xf32> to vector<16x1xf32>
    %83 = vector.broadcast %82 : vector<16x1xf32> to vector<16x16xf32>
    %84 = arith.subf %80, %83 : vector<16x16xf32>
    %85 = math.exp %84 : vector<16x16xf32>
    %cst_33 = arith.constant dense<0.000000e+00> : vector<16xf32>
    %86 = vector.multi_reduction <add>, %85, %cst_33 [1] : vector<16x16xf32> to vector<16xf32>
    %87 = vector.shape_cast %86 : vector<16xf32> to vector<16x1xf32>
    %88 = tpu.reciprocal %87 {approx = true} : vector<16x1xf32> -> vector<16x1xf32>
    %89 = vector.broadcast %88 : vector<16x1xf32> to vector<16x16xf32>
    %90 = arith.mulf %85, %89 : vector<16x16xf32>
    %cst_34 = arith.constant dense<0.000000e+00> : vector<16x8xf32>
    %91 = tpu.matmul %90, %76, %cst_34 {dimension_numbers = #tpu.dot_dimension_numbers<[1], [0], [0], [1], [0, 0, 1, 1], [], []>} : vector<16x16xf32>, vector<16x8xf32>, vector<16x8xf32> -> vector<16x8xf32>
    %92 = tpu.concatenate %37, %55, %73, %91 in 1 : vector<16x8xf32>, vector<16x8xf32>, vector<16x8xf32>, vector<16x8xf32> -> vector<16x32xf32>
    %c0_35 = arith.constant 0 : index
    %c0_36 = arith.constant 0 : index
    %c0_37 = arith.constant 0 : index
    %93 = vector.load %arg7[%c0_35, %c0_36, %c0_37] : memref<2x32x32xf32, #tpu.memory_space<vmem>>, vector<1x32x32xf32>
    %94 = vector.shape_cast %93 : vector<1x32x32xf32> to vector<32x32xf32>
    %cst_38 = arith.constant dense<0.000000e+00> : vector<16x32xf32>
    %95 = tpu.matmul %92, %94, %cst_38 {dimension_numbers = #tpu.dot_dimension_numbers<[1], [0], [0], [1], [0, 0, 1, 1], [], []>} : vector<16x32xf32>, vector<32x32xf32>, vector<16x32xf32> -> vector<16x32xf32>
    %c0_39 = arith.constant 0 : index
    %c0_40 = arith.constant 0 : index
    %c0_41 = arith.constant 0 : index
    %96 = vector.load %arg8[%c0_39, %c0_40, %c0_41] : memref<2x1x32xf32, #tpu.memory_space<vmem>>, vector<1x1x32xf32>
    %97 = vector.shape_cast %96 : vector<1x1x32xf32> to vector<1x32xf32>
    %98 = vector.broadcast %97 : vector<1x32xf32> to vector<16x32xf32>
    %99 = arith.addf %95, %98 : vector<16x32xf32>
    %c0_42 = arith.constant 0 : index
    %c0_43 = arith.constant 0 : index
    %c0_44 = arith.constant 0 : index
    %100 = vector.load %arg13[%c0_42, %c0_43, %c0_44] : memref<2x2x32xf32, #tpu.memory_space<vmem>>, vector<1x2x32xf32>
    %101 = vector.shape_cast %100 : vector<1x2x32xf32> to vector<2x32xf32>
    %c0_45 = arith.constant 0 : index
    %c0_46 = arith.constant 0 : index
    %c0_47 = arith.constant 0 : index
    %102 = vector.load %arg14[%c0_45, %c0_46, %c0_47] : memref<2x2x32xf32, #tpu.memory_space<vmem>>, vector<1x2x32xf32>
    %103 = vector.shape_cast %102 : vector<1x2x32xf32> to vector<2x32xf32>
    %104 = arith.addf %11, %99 : vector<16x32xf32>
    %105 = vector.extract_strided_slice %101 {offsets = [0, 0], sizes = [1, 32], strides = [1, 1]} : vector<2x32xf32> to vector<1x32xf32>
    %106 = vector.extract_strided_slice %103 {offsets = [0, 0], sizes = [1, 32], strides = [1, 1]} : vector<2x32xf32> to vector<1x32xf32>
    %cst_48 = arith.constant dense<0.000000e+00> : vector<16xf32>
    %107 = vector.multi_reduction <add>, %104, %cst_48 [1] : vector<16x32xf32> to vector<16xf32>
    %108 = vector.shape_cast %107 : vector<16xf32> to vector<16x1xf32>
    %cst_49 = arith.constant 3.200000e+01 : f32
    %109 = vector.broadcast %cst_49 : f32 to vector<16x1xf32>
    %110 = arith.divf %108, %109 : vector<16x1xf32>
    %111 = vector.broadcast %110 : vector<16x1xf32> to vector<16x32xf32>
    %112 = arith.subf %104, %111 : vector<16x32xf32>
    %113 = arith.mulf %112, %112 : vector<16x32xf32>
    %cst_50 = arith.constant dense<0.000000e+00> : vector<16xf32>
    %114 = vector.multi_reduction <add>, %113, %cst_50 [1] : vector<16x32xf32> to vector<16xf32>
    %115 = vector.shape_cast %114 : vector<16xf32> to vector<16x1xf32>
    %cst_51 = arith.constant 3.200000e+01 : f32
    %116 = vector.broadcast %cst_51 : f32 to vector<16x1xf32>
    %117 = arith.divf %115, %116 : vector<16x1xf32>
    %cst_52 = arith.constant 9.99999974E-6 : f32
    %118 = vector.broadcast %cst_52 : f32 to vector<16x1xf32>
    %119 = arith.addf %117, %118 : vector<16x1xf32>
    %120 = math.rsqrt %119 : vector<16x1xf32>
    %121 = vector.broadcast %120 : vector<16x1xf32> to vector<16x32xf32>
    %122 = arith.mulf %112, %121 : vector<16x32xf32>
    %123 = vector.broadcast %105 : vector<1x32xf32> to vector<16x32xf32>
    %124 = arith.mulf %122, %123 : vector<16x32xf32>
    %125 = vector.broadcast %106 : vector<1x32xf32> to vector<16x32xf32>
    %126 = arith.addf %124, %125 : vector<16x32xf32>
    %c0_53 = arith.constant 0 : index
    %c0_54 = arith.constant 0 : index
    %c0_55 = arith.constant 0 : index
    %127 = vector.load %arg9[%c0_53, %c0_54, %c0_55] : memref<2x32x64xf32, #tpu.memory_space<vmem>>, vector<1x32x64xf32>
    %128 = vector.shape_cast %127 : vector<1x32x64xf32> to vector<32x64xf32>
    %cst_56 = arith.constant dense<0.000000e+00> : vector<16x64xf32>
    %129 = tpu.matmul %126, %128, %cst_56 {dimension_numbers = #tpu.dot_dimension_numbers<[1], [0], [0], [1], [0, 0, 1, 1], [], []>} : vector<16x32xf32>, vector<32x64xf32>, vector<16x64xf32> -> vector<16x64xf32>
    %c0_57 = arith.constant 0 : index
    %c0_58 = arith.constant 0 : index
    %c0_59 = arith.constant 0 : index
    %130 = vector.load %arg10[%c0_57, %c0_58, %c0_59] : memref<2x1x64xf32, #tpu.memory_space<vmem>>, vector<1x1x64xf32>
    %131 = vector.shape_cast %130 : vector<1x1x64xf32> to vector<1x64xf32>
    %132 = vector.broadcast %131 : vector<1x64xf32> to vector<16x64xf32>
    %133 = arith.addf %129, %132 : vector<16x64xf32>
    %cst_60 = arith.constant 0.000000e+00 : f32
    %134 = vector.broadcast %cst_60 : f32 to vector<16x64xf32>
    %135 = arith.maximumf %133, %134 : vector<16x64xf32>
    %c0_61 = arith.constant 0 : index
    %c0_62 = arith.constant 0 : index
    %c0_63 = arith.constant 0 : index
    %136 = vector.load %arg11[%c0_61, %c0_62, %c0_63] : memref<2x64x32xf32, #tpu.memory_space<vmem>>, vector<1x64x32xf32>
    %137 = vector.shape_cast %136 : vector<1x64x32xf32> to vector<64x32xf32>
    %cst_64 = arith.constant dense<0.000000e+00> : vector<16x32xf32>
    %138 = tpu.matmul %135, %137, %cst_64 {dimension_numbers = #tpu.dot_dimension_numbers<[1], [0], [0], [1], [0, 0, 1, 1], [], []>} : vector<16x64xf32>, vector<64x32xf32>, vector<16x32xf32> -> vector<16x32xf32>
    %c0_65 = arith.constant 0 : index
    %c0_66 = arith.constant 0 : index
    %c0_67 = arith.constant 0 : index
    %139 = vector.load %arg12[%c0_65, %c0_66, %c0_67] : memref<2x1x32xf32, #tpu.memory_space<vmem>>, vector<1x1x32xf32>
    %140 = vector.shape_cast %139 : vector<1x1x32xf32> to vector<1x32xf32>
    %141 = vector.broadcast %140 : vector<1x32xf32> to vector<16x32xf32>
    %142 = arith.addf %138, %141 : vector<16x32xf32>
    %143 = arith.addf %126, %142 : vector<16x32xf32>
    %144 = vector.extract_strided_slice %101 {offsets = [1, 0], sizes = [1, 32], strides = [1, 1]} : vector<2x32xf32> to vector<1x32xf32>
    %145 = vector.extract_strided_slice %103 {offsets = [1, 0], sizes = [1, 32], strides = [1, 1]} : vector<2x32xf32> to vector<1x32xf32>
    %cst_68 = arith.constant dense<0.000000e+00> : vector<16xf32>
    %146 = vector.multi_reduction <add>, %143, %cst_68 [1] : vector<16x32xf32> to vector<16xf32>
    %147 = vector.shape_cast %146 : vector<16xf32> to vector<16x1xf32>
    %cst_69 = arith.constant 3.200000e+01 : f32
    %148 = vector.broadcast %cst_69 : f32 to vector<16x1xf32>
    %149 = arith.divf %147, %148 : vector<16x1xf32>
    %150 = vector.broadcast %149 : vector<16x1xf32> to vector<16x32xf32>
    %151 = arith.subf %143, %150 : vector<16x32xf32>
    %152 = arith.mulf %151, %151 : vector<16x32xf32>
    %cst_70 = arith.constant dense<0.000000e+00> : vector<16xf32>
    %153 = vector.multi_reduction <add>, %152, %cst_70 [1] : vector<16x32xf32> to vector<16xf32>
    %154 = vector.shape_cast %153 : vector<16xf32> to vector<16x1xf32>
    %cst_71 = arith.constant 3.200000e+01 : f32
    %155 = vector.broadcast %cst_71 : f32 to vector<16x1xf32>
    %156 = arith.divf %154, %155 : vector<16x1xf32>
    %cst_72 = arith.constant 9.99999974E-6 : f32
    %157 = vector.broadcast %cst_72 : f32 to vector<16x1xf32>
    %158 = arith.addf %156, %157 : vector<16x1xf32>
    %159 = math.rsqrt %158 : vector<16x1xf32>
    %160 = vector.broadcast %159 : vector<16x1xf32> to vector<16x32xf32>
    %161 = arith.mulf %151, %160 : vector<16x32xf32>
    %162 = vector.broadcast %144 : vector<1x32xf32> to vector<16x32xf32>
    %163 = arith.mulf %161, %162 : vector<16x32xf32>
    %164 = vector.broadcast %145 : vector<1x32xf32> to vector<16x32xf32>
    %165 = arith.addf %163, %164 : vector<16x32xf32>
    %c1 = arith.constant 1 : index
    %c0_73 = arith.constant 0 : index
    %c0_74 = arith.constant 0 : index
    %166 = vector.load %arg5[%c1, %c0_73, %c0_74] : memref<2x32x96xf32, #tpu.memory_space<vmem>>, vector<1x32x96xf32>
    %167 = vector.shape_cast %166 : vector<1x32x96xf32> to vector<32x96xf32>
    %cst_75 = arith.constant dense<0.000000e+00> : vector<16x96xf32>
    %168 = tpu.matmul %165, %167, %cst_75 {dimension_numbers = #tpu.dot_dimension_numbers<[1], [0], [0], [1], [0, 0, 1, 1], [], []>} : vector<16x32xf32>, vector<32x96xf32>, vector<16x96xf32> -> vector<16x96xf32>
    %c1_76 = arith.constant 1 : index
    %c0_77 = arith.constant 0 : index
    %c0_78 = arith.constant 0 : index
    %169 = vector.load %arg6[%c1_76, %c0_77, %c0_78] : memref<2x1x96xf32, #tpu.memory_space<vmem>>, vector<1x1x96xf32>
    %170 = vector.shape_cast %169 : vector<1x1x96xf32> to vector<1x96xf32>
    %171 = vector.broadcast %170 : vector<1x96xf32> to vector<16x96xf32>
    %172 = arith.addf %168, %171 : vector<16x96xf32>
    %173 = vector.extract_strided_slice %172 {offsets = [0, 0], sizes = [16, 8], strides = [1, 1]} : vector<16x96xf32> to vector<16x8xf32>
    %174 = vector.extract_strided_slice %172 {offsets = [0, 32], sizes = [16, 8], strides = [1, 1]} : vector<16x96xf32> to vector<16x8xf32>
    %175 = vector.extract_strided_slice %172 {offsets = [0, 64], sizes = [16, 8], strides = [1, 1]} : vector<16x96xf32> to vector<16x8xf32>
    "tpu.trace_start"() <{level = 10 : i32, message = "td,sd->ts"}> : () -> ()
    %cst_79 = arith.constant dense<0.000000e+00> : vector<16x16xf32>
    %176 = tpu.matmul %173, %174, %cst_79 {dimension_numbers = #tpu.dot_dimension_numbers<[1], [1], [0], [0], [0, 0, 1, 0], [], []>} : vector<16x8xf32>, vector<16x8xf32>, vector<16x16xf32> -> vector<16x16xf32>
    "tpu.trace_stop"() : () -> ()
    %cst_80 = arith.constant 0.353553385 : f32
    %177 = vector.broadcast %cst_80 : f32 to vector<16x16xf32>
    %178 = arith.mulf %176, %177 : vector<16x16xf32>
    %179 = arith.addf %178, %12 : vector<16x16xf32>
    %cst_81 = arith.constant dense<0xFF800000> : vector<16xf32>
    %180 = vector.multi_reduction <maximumf>, %179, %cst_81 [1] : vector<16x16xf32> to vector<16xf32>
    %181 = vector.shape_cast %180 : vector<16xf32> to vector<16x1xf32>
    %182 = vector.broadcast %181 : vector<16x1xf32> to vector<16x16xf32>
    %183 = arith.subf %179, %182 : vector<16x16xf32>
    %184 = math.exp %183 : vector<16x16xf32>
    %cst_82 = arith.constant dense<0.000000e+00> : vector<16xf32>
    %185 = vector.multi_reduction <add>, %184, %cst_82 [1] : vector<16x16xf32> to vector<16xf32>
    %186 = vector.shape_cast %185 : vector<16xf32> to vector<16x1xf32>
    %187 = tpu.reciprocal %186 {approx = true} : vector<16x1xf32> -> vector<16x1xf32>
    %188 = vector.broadcast %187 : vector<16x1xf32> to vector<16x16xf32>
    %189 = arith.mulf %184, %188 : vector<16x16xf32>
    %cst_83 = arith.constant dense<0.000000e+00> : vector<16x8xf32>
    %190 = tpu.matmul %189, %175, %cst_83 {dimension_numbers = #tpu.dot_dimension_numbers<[1], [0], [0], [1], [0, 0, 1, 1], [], []>} : vector<16x16xf32>, vector<16x8xf32>, vector<16x8xf32> -> vector<16x8xf32>
    %191 = vector.extract_strided_slice %172 {offsets = [0, 8], sizes = [16, 8], strides = [1, 1]} : vector<16x96xf32> to vector<16x8xf32>
    %192 = vector.extract_strided_slice %172 {offsets = [0, 40], sizes = [16, 8], strides = [1, 1]} : vector<16x96xf32> to vector<16x8xf32>
    %193 = vector.extract_strided_slice %172 {offsets = [0, 72], sizes = [16, 8], strides = [1, 1]} : vector<16x96xf32> to vector<16x8xf32>
    "tpu.trace_start"() <{level = 10 : i32, message = "td,sd->ts"}> : () -> ()
    %cst_84 = arith.constant dense<0.000000e+00> : vector<16x16xf32>
    %194 = tpu.matmul %191, %192, %cst_84 {dimension_numbers = #tpu.dot_dimension_numbers<[1], [1], [0], [0], [0, 0, 1, 0], [], []>} : vector<16x8xf32>, vector<16x8xf32>, vector<16x16xf32> -> vector<16x16xf32>
    "tpu.trace_stop"() : () -> ()
    %cst_85 = arith.constant 0.353553385 : f32
    %195 = vector.broadcast %cst_85 : f32 to vector<16x16xf32>
    %196 = arith.mulf %194, %195 : vector<16x16xf32>
    %197 = arith.addf %196, %12 : vector<16x16xf32>
    %cst_86 = arith.constant dense<0xFF800000> : vector<16xf32>
    %198 = vector.multi_reduction <maximumf>, %197, %cst_86 [1] : vector<16x16xf32> to vector<16xf32>
    %199 = vector.shape_cast %198 : vector<16xf32> to vector<16x1xf32>
    %200 = vector.broadcast %199 : vector<16x1xf32> to vector<16x16xf32>
    %201 = arith.subf %197, %200 : vector<16x16xf32>
    %202 = math.exp %201 : vector<16x16xf32>
    %cst_87 = arith.constant dense<0.000000e+00> : vector<16xf32>
    %203 = vector.multi_reduction <add>, %202, %cst_87 [1] : vector<16x16xf32> to vector<16xf32>
    %204 = vector.shape_cast %203 : vector<16xf32> to vector<16x1xf32>
    %205 = tpu.reciprocal %204 {approx = true} : vector<16x1xf32> -> vector<16x1xf32>
    %206 = vector.broadcast %205 : vector<16x1xf32> to vector<16x16xf32>
    %207 = arith.mulf %202, %206 : vector<16x16xf32>
    %cst_88 = arith.constant dense<0.000000e+00> : vector<16x8xf32>
    %208 = tpu.matmul %207, %193, %cst_88 {dimension_numbers = #tpu.dot_dimension_numbers<[1], [0], [0], [1], [0, 0, 1, 1], [], []>} : vector<16x16xf32>, vector<16x8xf32>, vector<16x8xf32> -> vector<16x8xf32>
    %209 = vector.extract_strided_slice %172 {offsets = [0, 16], sizes = [16, 8], strides = [1, 1]} : vector<16x96xf32> to vector<16x8xf32>
    %210 = vector.extract_strided_slice %172 {offsets = [0, 48], sizes = [16, 8], strides = [1, 1]} : vector<16x96xf32> to vector<16x8xf32>
    %211 = vector.extract_strided_slice %172 {offsets = [0, 80], sizes = [16, 8], strides = [1, 1]} : vector<16x96xf32> to vector<16x8xf32>
    "tpu.trace_start"() <{level = 10 : i32, message = "td,sd->ts"}> : () -> ()
    %cst_89 = arith.constant dense<0.000000e+00> : vector<16x16xf32>
    %212 = tpu.matmul %209, %210, %cst_89 {dimension_numbers = #tpu.dot_dimension_numbers<[1], [1], [0], [0], [0, 0, 1, 0], [], []>} : vector<16x8xf32>, vector<16x8xf32>, vector<16x16xf32> -> vector<16x16xf32>
    "tpu.trace_stop"() : () -> ()
    %cst_90 = arith.constant 0.353553385 : f32
    %213 = vector.broadcast %cst_90 : f32 to vector<16x16xf32>
    %214 = arith.mulf %212, %213 : vector<16x16xf32>
    %215 = arith.addf %214, %12 : vector<16x16xf32>
    %cst_91 = arith.constant dense<0xFF800000> : vector<16xf32>
    %216 = vector.multi_reduction <maximumf>, %215, %cst_91 [1] : vector<16x16xf32> to vector<16xf32>
    %217 = vector.shape_cast %216 : vector<16xf32> to vector<16x1xf32>
    %218 = vector.broadcast %217 : vector<16x1xf32> to vector<16x16xf32>
    %219 = arith.subf %215, %218 : vector<16x16xf32>
    %220 = math.exp %219 : vector<16x16xf32>
    %cst_92 = arith.constant dense<0.000000e+00> : vector<16xf32>
    %221 = vector.multi_reduction <add>, %220, %cst_92 [1] : vector<16x16xf32> to vector<16xf32>
    %222 = vector.shape_cast %221 : vector<16xf32> to vector<16x1xf32>
    %223 = tpu.reciprocal %222 {approx = true} : vector<16x1xf32> -> vector<16x1xf32>
    %224 = vector.broadcast %223 : vector<16x1xf32> to vector<16x16xf32>
    %225 = arith.mulf %220, %224 : vector<16x16xf32>
    %cst_93 = arith.constant dense<0.000000e+00> : vector<16x8xf32>
    %226 = tpu.matmul %225, %211, %cst_93 {dimension_numbers = #tpu.dot_dimension_numbers<[1], [0], [0], [1], [0, 0, 1, 1], [], []>} : vector<16x16xf32>, vector<16x8xf32>, vector<16x8xf32> -> vector<16x8xf32>
    %227 = vector.extract_strided_slice %172 {offsets = [0, 24], sizes = [16, 8], strides = [1, 1]} : vector<16x96xf32> to vector<16x8xf32>
    %228 = vector.extract_strided_slice %172 {offsets = [0, 56], sizes = [16, 8], strides = [1, 1]} : vector<16x96xf32> to vector<16x8xf32>
    %229 = vector.extract_strided_slice %172 {offsets = [0, 88], sizes = [16, 8], strides = [1, 1]} : vector<16x96xf32> to vector<16x8xf32>
    "tpu.trace_start"() <{level = 10 : i32, message = "td,sd->ts"}> : () -> ()
    %cst_94 = arith.constant dense<0.000000e+00> : vector<16x16xf32>
    %230 = tpu.matmul %227, %228, %cst_94 {dimension_numbers = #tpu.dot_dimension_numbers<[1], [1], [0], [0], [0, 0, 1, 0], [], []>} : vector<16x8xf32>, vector<16x8xf32>, vector<16x16xf32> -> vector<16x16xf32>
    "tpu.trace_stop"() : () -> ()
    %cst_95 = arith.constant 0.353553385 : f32
    %231 = vector.broadcast %cst_95 : f32 to vector<16x16xf32>
    %232 = arith.mulf %230, %231 : vector<16x16xf32>
    %233 = arith.addf %232, %12 : vector<16x16xf32>
    %cst_96 = arith.constant dense<0xFF800000> : vector<16xf32>
    %234 = vector.multi_reduction <maximumf>, %233, %cst_96 [1] : vector<16x16xf32> to vector<16xf32>
    %235 = vector.shape_cast %234 : vector<16xf32> to vector<16x1xf32>
    %236 = vector.broadcast %235 : vector<16x1xf32> to vector<16x16xf32>
    %237 = arith.subf %233, %236 : vector<16x16xf32>
    %238 = math.exp %237 : vector<16x16xf32>
    %cst_97 = arith.constant dense<0.000000e+00> : vector<16xf32>
    %239 = vector.multi_reduction <add>, %238, %cst_97 [1] : vector<16x16xf32> to vector<16xf32>
    %240 = vector.shape_cast %239 : vector<16xf32> to vector<16x1xf32>
    %241 = tpu.reciprocal %240 {approx = true} : vector<16x1xf32> -> vector<16x1xf32>
    %242 = vector.broadcast %241 : vector<16x1xf32> to vector<16x16xf32>
    %243 = arith.mulf %238, %242 : vector<16x16xf32>
    %cst_98 = arith.constant dense<0.000000e+00> : vector<16x8xf32>
    %244 = tpu.matmul %243, %229, %cst_98 {dimension_numbers = #tpu.dot_dimension_numbers<[1], [0], [0], [1], [0, 0, 1, 1], [], []>} : vector<16x16xf32>, vector<16x8xf32>, vector<16x8xf32> -> vector<16x8xf32>
    %245 = tpu.concatenate %190, %208, %226, %244 in 1 : vector<16x8xf32>, vector<16x8xf32>, vector<16x8xf32>, vector<16x8xf32> -> vector<16x32xf32>
    %c1_99 = arith.constant 1 : index
    %c0_100 = arith.constant 0 : index
    %c0_101 = arith.constant 0 : index
    %246 = vector.load %arg7[%c1_99, %c0_100, %c0_101] : memref<2x32x32xf32, #tpu.memory_space<vmem>>, vector<1x32x32xf32>
    %247 = vector.shape_cast %246 : vector<1x32x32xf32> to vector<32x32xf32>
    %cst_102 = arith.constant dense<0.000000e+00> : vector<16x32xf32>
    %248 = tpu.matmul %245, %247, %cst_102 {dimension_numbers = #tpu.dot_dimension_numbers<[1], [0], [0], [1], [0, 0, 1, 1], [], []>} : vector<16x32xf32>, vector<32x32xf32>, vector<16x32xf32> -> vector<16x32xf32>
    %c1_103 = arith.constant 1 : index
    %c0_104 = arith.constant 0 : index
    %c0_105 = arith.constant 0 : index
    %249 = vector.load %arg8[%c1_103, %c0_104, %c0_105] : memref<2x1x32xf32, #tpu.memory_space<vmem>>, vector<1x1x32xf32>
    %250 = vector.shape_cast %249 : vector<1x1x32xf32> to vector<1x32xf32>
    %251 = vector.broadcast %250 : vector<1x32xf32> to vector<16x32xf32>
    %252 = arith.addf %248, %251 : vector<16x32xf32>
    %c1_106 = arith.constant 1 : index
    %c0_107 = arith.constant 0 : index
    %c0_108 = arith.constant 0 : index
    %253 = vector.load %arg13[%c1_106, %c0_107, %c0_108] : memref<2x2x32xf32, #tpu.memory_space<vmem>>, vector<1x2x32xf32>
    %254 = vector.shape_cast %253 : vector<1x2x32xf32> to vector<2x32xf32>
    %c1_109 = arith.constant 1 : index
    %c0_110 = arith.constant 0 : index
    %c0_111 = arith.constant 0 : index
    %255 = vector.load %arg14[%c1_109, %c0_110, %c0_111] : memref<2x2x32xf32, #tpu.memory_space<vmem>>, vector<1x2x32xf32>
    %256 = vector.shape_cast %255 : vector<1x2x32xf32> to vector<2x32xf32>
    %257 = arith.addf %165, %252 : vector<16x32xf32>
    %258 = vector.extract_strided_slice %254 {offsets = [0, 0], sizes = [1, 32], strides = [1, 1]} : vector<2x32xf32> to vector<1x32xf32>
    %259 = vector.extract_strided_slice %256 {offsets = [0, 0], sizes = [1, 32], strides = [1, 1]} : vector<2x32xf32> to vector<1x32xf32>
    %cst_112 = arith.constant dense<0.000000e+00> : vector<16xf32>
    %260 = vector.multi_reduction <add>, %257, %cst_112 [1] : vector<16x32xf32> to vector<16xf32>
    %261 = vector.shape_cast %260 : vector<16xf32> to vector<16x1xf32>
    %cst_113 = arith.constant 3.200000e+01 : f32
    %262 = vector.broadcast %cst_113 : f32 to vector<16x1xf32>
    %263 = arith.divf %261, %262 : vector<16x1xf32>
    %264 = vector.broadcast %263 : vector<16x1xf32> to vector<16x32xf32>
    %265 = arith.subf %257, %264 : vector<16x32xf32>
    %266 = arith.mulf %265, %265 : vector<16x32xf32>
    %cst_114 = arith.constant dense<0.000000e+00> : vector<16xf32>
    %267 = vector.multi_reduction <add>, %266, %cst_114 [1] : vector<16x32xf32> to vector<16xf32>
    %268 = vector.shape_cast %267 : vector<16xf32> to vector<16x1xf32>
    %cst_115 = arith.constant 3.200000e+01 : f32
    %269 = vector.broadcast %cst_115 : f32 to vector<16x1xf32>
    %270 = arith.divf %268, %269 : vector<16x1xf32>
    %cst_116 = arith.constant 9.99999974E-6 : f32
    %271 = vector.broadcast %cst_116 : f32 to vector<16x1xf32>
    %272 = arith.addf %270, %271 : vector<16x1xf32>
    %273 = math.rsqrt %272 : vector<16x1xf32>
    %274 = vector.broadcast %273 : vector<16x1xf32> to vector<16x32xf32>
    %275 = arith.mulf %265, %274 : vector<16x32xf32>
    %276 = vector.broadcast %258 : vector<1x32xf32> to vector<16x32xf32>
    %277 = arith.mulf %275, %276 : vector<16x32xf32>
    %278 = vector.broadcast %259 : vector<1x32xf32> to vector<16x32xf32>
    %279 = arith.addf %277, %278 : vector<16x32xf32>
    %c1_117 = arith.constant 1 : index
    %c0_118 = arith.constant 0 : index
    %c0_119 = arith.constant 0 : index
    %280 = vector.load %arg9[%c1_117, %c0_118, %c0_119] : memref<2x32x64xf32, #tpu.memory_space<vmem>>, vector<1x32x64xf32>
    %281 = vector.shape_cast %280 : vector<1x32x64xf32> to vector<32x64xf32>
    %cst_120 = arith.constant dense<0.000000e+00> : vector<16x64xf32>
    %282 = tpu.matmul %279, %281, %cst_120 {dimension_numbers = #tpu.dot_dimension_numbers<[1], [0], [0], [1], [0, 0, 1, 1], [], []>} : vector<16x32xf32>, vector<32x64xf32>, vector<16x64xf32> -> vector<16x64xf32>
    %c1_121 = arith.constant 1 : index
    %c0_122 = arith.constant 0 : index
    %c0_123 = arith.constant 0 : index
    %283 = vector.load %arg10[%c1_121, %c0_122, %c0_123] : memref<2x1x64xf32, #tpu.memory_space<vmem>>, vector<1x1x64xf32>
    %284 = vector.shape_cast %283 : vector<1x1x64xf32> to vector<1x64xf32>
    %285 = vector.broadcast %284 : vector<1x64xf32> to vector<16x64xf32>
    %286 = arith.addf %282, %285 : vector<16x64xf32>
    %cst_124 = arith.constant 0.000000e+00 : f32
    %287 = vector.broadcast %cst_124 : f32 to vector<16x64xf32>
    %288 = arith.maximumf %286, %287 : vector<16x64xf32>
    %c1_125 = arith.constant 1 : index
    %c0_126 = arith.constant 0 : index
    %c0_127 = arith.constant 0 : index
    %289 = vector.load %arg11[%c1_125, %c0_126, %c0_127] : memref<2x64x32xf32, #tpu.memory_space<vmem>>, vector<1x64x32xf32>
    %290 = vector.shape_cast %289 : vector<1x64x32xf32> to vector<64x32xf32>
    %cst_128 = arith.constant dense<0.000000e+00> : vector<16x32xf32>
    %291 = tpu.matmul %288, %290, %cst_128 {dimension_numbers = #tpu.dot_dimension_numbers<[1], [0], [0], [1], [0, 0, 1, 1], [], []>} : vector<16x64xf32>, vector<64x32xf32>, vector<16x32xf32> -> vector<16x32xf32>
    %c1_129 = arith.constant 1 : index
    %c0_130 = arith.constant 0 : index
    %c0_131 = arith.constant 0 : index
    %292 = vector.load %arg12[%c1_129, %c0_130, %c0_131] : memref<2x1x32xf32, #tpu.memory_space<vmem>>, vector<1x1x32xf32>
    %293 = vector.shape_cast %292 : vector<1x1x32xf32> to vector<1x32xf32>
    %294 = vector.broadcast %293 : vector<1x32xf32> to vector<16x32xf32>
    %295 = arith.addf %291, %294 : vector<16x32xf32>
    %296 = arith.addf %279, %295 : vector<16x32xf32>
    %297 = vector.extract_strided_slice %254 {offsets = [1, 0], sizes = [1, 32], strides = [1, 1]} : vector<2x32xf32> to vector<1x32xf32>
    %298 = vector.extract_strided_slice %256 {offsets = [1, 0], sizes = [1, 32], strides = [1, 1]} : vector<2x32xf32> to vector<1x32xf32>
    %cst_132 = arith.constant dense<0.000000e+00> : vector<16xf32>
    %299 = vector.multi_reduction <add>, %296, %cst_132 [1] : vector<16x32xf32> to vector<16xf32>
    %300 = vector.shape_cast %299 : vector<16xf32> to vector<16x1xf32>
    %cst_133 = arith.constant 3.200000e+01 : f32
    %301 = vector.broadcast %cst_133 : f32 to vector<16x1xf32>
    %302 = arith.divf %300, %301 : vector<16x1xf32>
    %303 = vector.broadcast %302 : vector<16x1xf32> to vector<16x32xf32>
    %304 = arith.subf %296, %303 : vector<16x32xf32>
    %305 = arith.mulf %304, %304 : vector<16x32xf32>
    %cst_134 = arith.constant dense<0.000000e+00> : vector<16xf32>
    %306 = vector.multi_reduction <add>, %305, %cst_134 [1] : vector<16x32xf32> to vector<16xf32>
    %307 = vector.shape_cast %306 : vector<16xf32> to vector<16x1xf32>
    %cst_135 = arith.constant 3.200000e+01 : f32
    %308 = vector.broadcast %cst_135 : f32 to vector<16x1xf32>
    %309 = arith.divf %307, %308 : vector<16x1xf32>
    %cst_136 = arith.constant 9.99999974E-6 : f32
    %310 = vector.broadcast %cst_136 : f32 to vector<16x1xf32>
    %311 = arith.addf %309, %310 : vector<16x1xf32>
    %312 = math.rsqrt %311 : vector<16x1xf32>
    %313 = vector.broadcast %312 : vector<16x1xf32> to vector<16x32xf32>
    %314 = arith.mulf %304, %313 : vector<16x32xf32>
    %315 = vector.broadcast %297 : vector<1x32xf32> to vector<16x32xf32>
    %316 = arith.mulf %314, %315 : vector<16x32xf32>
    %317 = vector.broadcast %298 : vector<1x32xf32> to vector<16x32xf32>
    %318 = arith.addf %316, %317 : vector<16x32xf32>
    %c0_137 = arith.constant 0 : index
    %c0_138 = arith.constant 0 : index
    %319 = vector.load %arg15[%c0_137, %c0_138] : memref<16x32xf32, #tpu.memory_space<vmem>>, vector<16x32xf32>
    tpu.vector_store %arg15[%c0_137, %c0_138], %318 {strides = array<i32>} : memref<16x32xf32, #tpu.memory_space<vmem>>, vector<16x32xf32>,
    return
  }
  func.func @transform_0(%arg0: i32) -> (i32, i32) {
    %c0_i32 = arith.constant 0 : i32
    %c0_i32_0 = arith.constant 0 : i32
    %c0_i32_1 = arith.constant 0 : i32
    return %c0_i32, %c0_i32_0 : i32, i32
  }
  func.func @transform_1(%arg0: i32) -> (i32, i32) {
    %c0_i32 = arith.constant 0 : i32
    %c0_i32_0 = arith.constant 0 : i32
    %c0_i32_1 = arith.constant 0 : i32
    return %c0_i32, %c0_i32_0 : i32, i32
  }
  func.func @transform_2(%arg0: i32) -> (i32, i32) {
    %c0_i32 = arith.constant 0 : i32
    %c0_i32_0 = arith.constant 0 : i32
    %c0_i32_1 = arith.constant 0 : i32
    return %c0_i32, %c0_i32_0 : i32, i32
  }
  func.func @transform_3(%arg0: i32) -> (i32, i32) {
    %c0_i32 = arith.constant 0 : i32
    %c0_i32_0 = arith.constant 0 : i32
    %c0_i32_1 = arith.constant 0 : i32
    return %c0_i32, %c0_i32_0 : i32, i32
  }
  func.func @transform_4(%arg0: i32) -> (i32, i32, i32) {
    %c0_i32 = arith.constant 0 : i32
    %c0_i32_0 = arith.constant 0 : i32
    %c0_i32_1 = arith.constant 0 : i32
    %c0_i32_2 = arith.constant 0 : i32
    return %c0_i32, %c0_i32_0, %c0_i32_1 : i32, i32, i32
  }
  func.func @transform_5(%arg0: i32) -> (i32, i32, i32) {
    %c0_i32 = arith.constant 0 : i32
    %c0_i32_0 = arith.constant 0 : i32
    %c0_i32_1 = arith.constant 0 : i32
    %c0_i32_2 = arith.constant 0 : i32
    return %c0_i32, %c0_i32_0, %c0_i32_1 : i32, i32, i32
  }
  func.func @transform_6(%arg0: i32) -> (i32, i32, i32) {
    %c0_i32 = arith.constant 0 : i32
    %c0_i32_0 = arith.constant 0 : i32
    %c0_i32_1 = arith.constant 0 : i32
    %c0_i32_2 = arith.constant 0 : i32
    return %c0_i32, %c0_i32_0, %c0_i32_1 : i32, i32, i32
  }
  func.func @transform_7(%arg0: i32) -> (i32, i32, i32) {
    %c0_i32 = arith.constant 0 : i32
    %c0_i32_0 = arith.constant 0 : i32
    %c0_i32_1 = arith.constant 0 : i32
    %c0_i32_2 = arith.constant 0 : i32
    return %c0_i32, %c0_i32_0, %c0_i32_1 : i32, i32, i32
  }
  func.func @transform_8(%arg0: i32) -> (i32, i32, i32) {
    %c0_i32 = arith.constant 0 : i32
    %c0_i32_0 = arith.constant 0 : i32
    %c0_i32_1 = arith.constant 0 : i32
    %c0_i32_2 = arith.constant 0 : i32
    return %c0_i32, %c0_i32_0, %c0_i32_1 : i32, i32, i32
  }
  func.func @transform_9(%arg0: i32) -> (i32, i32, i32) {
    %c0_i32 = arith.constant 0 : i32
    %c0_i32_0 = arith.constant 0 : i32
    %c0_i32_1 = arith.constant 0 : i32
    %c0_i32_2 = arith.constant 0 : i32
    return %c0_i32, %c0_i32_0, %c0_i32_1 : i32, i32, i32
  }
  func.func @transform_10(%arg0: i32) -> (i32, i32, i32) {
    %c0_i32 = arith.constant 0 : i32
    %c0_i32_0 = arith.constant 0 : i32
    %c0_i32_1 = arith.constant 0 : i32
    %c0_i32_2 = arith.constant 0 : i32
    return %c0_i32, %c0_i32_0, %c0_i32_1 : i32, i32, i32
  }
  func.func @transform_11(%arg0: i32) -> (i32, i32, i32) {
    %c0_i32 = arith.constant 0 : i32
    %c0_i32_0 = arith.constant 0 : i32
    %c0_i32_1 = arith.constant 0 : i32
    %c0_i32_2 = arith.constant 0 : i32
    return %c0_i32, %c0_i32_0, %c0_i32_1 : i32, i32, i32
  }
  func.func @transform_12(%arg0: i32) -> (i32, i32, i32) {
    %c0_i32 = arith.constant 0 : i32
    %c0_i32_0 = arith.constant 0 : i32
    %c0_i32_1 = arith.constant 0 : i32
    %c0_i32_2 = arith.constant 0 : i32
    return %c0_i32, %c0_i32_0, %c0_i32_1 : i32, i32, i32
  }
  func.func @transform_13(%arg0: i32) -> (i32, i32, i32) {
    %c0_i32 = arith.constant 0 : i32
    %c0_i32_0 = arith.constant 0 : i32
    %c0_i32_1 = arith.constant 0 : i32
    %c0_i32_2 = arith.constant 0 : i32
    return %c0_i32, %c0_i32_0, %c0_i32_1 : i32, i32, i32
  }
  func.func @transform_14(%arg0: i32) -> (i32, i32) {
    %c0_i32 = arith.constant 0 : i32
    %c0_i32_0 = arith.constant 0 : i32
    %c0_i32_1 = arith.constant 0 : i32
    return %c0_i32, %c0_i32_0 : i32, i32
  }
}

</mosaic_0001>

<llo_original>
// kernel: eq.8
$region0: #{eq.8}
  %s0 = inlined_call_operand.vmem [shape: s32[2,8], index: 0, kind: input, shape index: {}]
  %s1 = inlined_call_operand.vmem [shape: s32[16], index: 1, kind: output, shape index: {}]
  $region1: #{eq.8} parent=0
    #allocation0 [shape = 'u8[4096]{0}', space=vmem, size = 0x1000, scoped, tag = 'scoped mem for output reshape']
    #allocation1 [shape = 'u8[4096]{0}', space=vmem, size = 0x1000, scoped, tag = 'scoped mem for input reshape']
    %s3 = sshll.u32 1, 2
    %s4 = ssub.s32 %s3, 1
    %v5 = vld [vmem:[%s0] sm:%s4]
    %6 = vst [vmem:[#allocation1] sm:%s4] %v5
    %v7 = vld [vmem:[#allocation1] sm:$0x1]
    %vm8 = vcmask 64512
    %9 = vst.msk [vmem:[#allocation0] sm:$0x1] %vm8, %v7
    %s10 = scalar_lea.vmem [#allocation1], 1
    %v11 = vld [vmem:[%s10] sm:$0x1]
    %12 = vrot.lane.b32.xlu0 %v11, 8
    %v13 = vpop.permute.xlu0 %12
    %vm14 = vcmask 130112
    %15 = vst.msk [vmem:[#allocation0] sm:$0x1] %vm14, %v13
    %s17 = sshll.u32 1, 1
    %s18 = ssub.s32 %s17, 1
    %v20 = vld [vmem:[#allocation0] sm:%s18]
    %s21 = sshll.u32 1, 1
    %s22 = ssub.s32 %s21, 1
    %23 = vst [vmem:[%s1] sm:%s22] %v20

// kernel: encoder_forward.1
$region0: #{encoder_forward.1}
  #allocation0 [shape = 'u32[]', space=smem, size = 0x4, offset = 0x4, fixed_abs, tag = 'smem constant byte address 0x4 - core index']
  #allocation1 [shape = 'u32[144,128]{1,0:T(1,128)}', space=vmem, size = 0x12000, scoped, tag = 'internal scratch']
  %s0 = inlined_call_operand.vmem [shape: s32[16,1], index: 0, kind: input, shape index: {}]
  %s1 = inlined_call_operand.vmem [shape: f32[16,32], index: 1, kind: input, shape index: {}]
  %s2 = inlined_call_operand.vmem [shape: f32[16,16], index: 2, kind: input, shape index: {}]
  %s3 = inlined_call_operand.vmem [shape: f32[64,32], index: 3, kind: input, shape index: {}]
  %s4 = inlined_call_operand.vmem [shape: f32[2,32,96], index: 4, kind: input, shape index: {}]
  %s5 = inlined_call_operand.vmem [shape: f32[2,1,96], index: 5, kind: input, shape index: {}]
  %s6 = inlined_call_operand.vmem [shape: f32[2,32,32], index: 6, kind: input, shape index: {}]
  %s7 = inlined_call_operand.vmem [shape: f32[2,1,32], index: 7, kind: input, shape index: {}]
  %s8 = inlined_call_operand.vmem [shape: f32[2,32,64], index: 8, kind: input, shape index: {}]
  %s9 = inlined_call_operand.vmem [shape: f32[2,1,64], index: 9, kind: input, shape index: {}]
  %s10 = inlined_call_operand.vmem [shape: f32[2,64,32], index: 10, kind: input, shape index: {}]
  %s11 = inlined_call_operand.vmem [shape: f32[2,1,32], index: 11, kind: input, shape index: {}]
  %s12 = inlined_call_operand.vmem [shape: f32[2,2,32], index: 12, kind: input, shape index: {}]
  %s13 = inlined_call_operand.vmem [shape: f32[2,2,32], index: 13, kind: input, shape index: {}]
  %s14 = inlined_call_operand.hbm [shape: f32[16,32], index: 14, kind: output, shape index: {}]
  %s15 = sld [smem:[#allocation0]]
  $region66: #{encoder_forward.1} parent=0
    _
  %s17 = ssub.s32 1, %s15
  %s18 = scalar_select 0, %s17, %s15
  $region1: #{encoder_forward.1} parent=0
    #allocation2 [shape = 'u8[8192]{0}', space=vmem, size = 0x2000, scoped, tag = 'output window, operand 0, single buffered']
    #allocation3 [shape = 's32[1]{0}', space=sflag, size = 0x4, scoped, tag = 'scoped memory for encoder_forward.1']
    %19 = vsyncpa [#allocation3], 0
    // Predicated region
    $region2: #{encoder_forward.1} parent=1 // pred_check
      _
    $region3: #{encoder_forward.1} parent=1 // pred_check_branch
      %21 = sbr.rel (0) target = $region5
    $region4: #{encoder_forward.1} parent=1 // pred_region
      _
    $region5: #{encoder_forward.1} parent=1 // pred_fallthru
      _
    // Predicated region
    $region6: #{encoder_forward.1} parent=1 // pred_check
      _
    $region7: #{encoder_forward.1} parent=1 // pred_check_branch
      %23 = sbr.rel (0) target = $region9
    $region8: #{encoder_forward.1} parent=1 // pred_region
      _
    $region9: #{encoder_forward.1} parent=1 // pred_fallthru
      _
    // Predicated region
    $region10: #{encoder_forward.1} parent=1 // pred_check
      _
    $region11: #{encoder_forward.1} parent=1 // pred_check_branch
      %25 = sbr.rel (0) target = $region13
    $region12: #{encoder_forward.1} parent=1 // pred_region
      _
    $region13: #{encoder_forward.1} parent=1 // pred_fallthru
      _
    // Predicated region
    $region14: #{encoder_forward.1} parent=1 // pred_check
      _
    $region15: #{encoder_forward.1} parent=1 // pred_check_branch
      %27 = sbr.rel (0) target = $region17
    $region16: #{encoder_forward.1} parent=1 // pred_region
      _
    $region17: #{encoder_forward.1} parent=1 // pred_fallthru
      _
    // Predicated region
    $region18: #{encoder_forward.1} parent=1 // pred_check
      _
    $region19: #{encoder_forward.1} parent=1 // pred_check_branch
      %29 = sbr.rel (0) target = $region21
    $region20: #{encoder_forward.1} parent=1 // pred_region
      _
    $region21: #{encoder_forward.1} parent=1 // pred_fallthru
      _
    // Predicated region
    $region22: #{encoder_forward.1} parent=1 // pred_check
      _
    $region23: #{encoder_forward.1} parent=1 // pred_check_branch
      %31 = sbr.rel (0) target = $region25
    $region24: #{encoder_forward.1} parent=1 // pred_region
      _
    $region25: #{encoder_forward.1} parent=1 // pred_fallthru
      _
    // Predicated region
    $region26: #{encoder_forward.1} parent=1 // pred_check
      _
    $region27: #{encoder_forward.1} parent=1 // pred_check_branch
      %33 = sbr.rel (0) target = $region29
    $region28: #{encoder_forward.1} parent=1 // pred_region
      _
    $region29: #{encoder_forward.1} parent=1 // pred_fallthru
      _
    // Predicated region
    $region30: #{encoder_forward.1} parent=1 // pred_check
      _
    $region31: #{encoder_forward.1} parent=1 // pred_check_branch
      %35 = sbr.rel (0) target = $region33
    $region32: #{encoder_forward.1} parent=1 // pred_region
      _
    $region33: #{encoder_forward.1} parent=1 // pred_fallthru
      _
    // Predicated region
    $region34: #{encoder_forward.1} parent=1 // pred_check
      _
    $region35: #{encoder_forward.1} parent=1 // pred_check_branch
      %37 = sbr.rel (0) target = $region37
    $region36: #{encoder_forward.1} parent=1 // pred_region
      _
    $region37: #{encoder_forward.1} parent=1 // pred_fallthru
      _
    // Predicated region
    $region38: #{encoder_forward.1} parent=1 // pred_check
      _
    $region39: #{encoder_forward.1} parent=1 // pred_check_branch
      %39 = sbr.rel (0) target = $region41
    $region40: #{encoder_forward.1} parent=1 // pred_region
      _
    $region41: #{encoder_forward.1} parent=1 // pred_fallthru
      _
    // Predicated region
    $region42: #{encoder_forward.1} parent=1 // pred_check
      _
    $region43: #{encoder_forward.1} parent=1 // pred_check_branch
      %41 = sbr.rel (0) target = $region45
    $region44: #{encoder_forward.1} parent=1 // pred_region
      _
    $region45: #{encoder_forward.1} parent=1 // pred_fallthru
      _
    // Predicated region
    $region46: #{encoder_forward.1} parent=1 // pred_check
      _
    $region47: #{encoder_forward.1} parent=1 // pred_check_branch
      %43 = sbr.rel (0) target = $region49
    $region48: #{encoder_forward.1} parent=1 // pred_region
      _
    $region49: #{encoder_forward.1} parent=1 // pred_fallthru
      _
    // Predicated region
    $region50: #{encoder_forward.1} parent=1 // pred_check
      _
    $region51: #{encoder_forward.1} parent=1 // pred_check_branch
      %45 = sbr.rel (0) target = $region53
    $region52: #{encoder_forward.1} parent=1 // pred_region
      _
    $region53: #{encoder_forward.1} parent=1 // pred_fallthru
      _
    // Predicated region
    $region54: #{encoder_forward.1} parent=1 // pred_check
      _
    $region55: #{encoder_forward.1} parent=1 // pred_check_branch
      %47 = sbr.rel (0) target = $region57
    $region56: #{encoder_forward.1} parent=1 // pred_region
      _
    $region57: #{encoder_forward.1} parent=1 // pred_fallthru
      _
    %v48 = vld [vmem:[%s0] sm:$0xff]
    %v49 = vld [vmem:[%s0 + $0x8] sm:$0xff]
    %v50 = vlaneseq
    %v51 = vand.u32 %v50, 127
    %52 = vset.pattern.permute.xlu0 0
    %53 = vperm.xlu0 %52, %v48
    %v54 = vpop.permute.xlu0 %53
    %55 = vset.pattern.permute.xlu0 0
    %56 = vperm.xlu0 %55, %v49
    %v57 = vpop.permute.xlu0 %56
    %vm58 = vcmp.eq.s32.totalorder %v51, %v54
    %vm59 = vcmp.eq.s32.totalorder %v51, %v57
    %v60 = vsel %vm58, 1, 0
    %v61 = vsel %vm59, 1, 0
    %v62 = vcvt.s32.f32 %v60
    %v63 = vcvt.s32.f32 %v61
    %v64 = vld [vmem:[%s3] sm:$0xff]
    %v65 = vld [vmem:[%s3 + $0x8] sm:$0xff]
    %v66 = vld [vmem:[%s3 + $0x10] sm:$0xff]
    %v67 = vld [vmem:[%s3 + $0x18] sm:$0xff]
    %v68 = vld [vmem:[%s3 + $0x20] sm:$0xff]
    %v69 = vld [vmem:[%s3 + $0x28] sm:$0xff]
    %v70 = vld [vmem:[%s3 + $0x30] sm:$0xff]
    %v71 = vld [vmem:[%s3 + $0x38] sm:$0xff]
    %vm72 = vcmask 523264
    %v74 = vsel %vm72, %v62, 0
    %v77 = vsel %vm72, %v63, 0
    %79 = vmatprep.subr.mxu0 0.0
    %80 = vmatpush1.msra.mxu0 0.0
    %81 = vmatprep.subr.mxu0 0.0
    %82 = vmatpush1.msra.mxu0 0.0
    %83 = vmatprep.subr.mxu0 0.0
    %84 = vmatpush1.msra.mxu0 0.0
    %85 = vmatprep.subr.mxu0 0.0
    %86 = vmatpush1.msra.mxu0 0.0
    %87 = vmatprep.subr.mxu0 0.0
    %88 = vmatpush1.msra.mxu0 0.0
    %89 = vmatprep.subr.mxu0 0.0
    %90 = vmatpush1.msra.mxu0 0.0
    %91 = vmatprep.subr.mxu0 0.0
    %92 = vmatpush1.msra.mxu0 0.0
    %93 = vmatprep.subr.mxu0 0.0
    %94 = vmatpush1.msra.mxu0 0.0
    %95 = vmatprep.subr.mxu0 0.0
    %96 = vmatpush1.msra.mxu0 %v71
    %97 = vmatprep.subr.mxu0 0.0
    %98 = vmatpush1.msra.mxu0 %v70
    %99 = vmatprep.subr.mxu0 0.0
    %100 = vmatpush1.msra.mxu0 %v69
    %101 = vmatprep.subr.mxu0 0.0
    %102 = vmatpush1.msra.mxu0 %v68
    %103 = vmatprep.subr.mxu0 0.0
    %104 = vmatpush1.msra.mxu0 %v67
    %105 = vmatprep.subr.mxu0 0.0
    %106 = vmatpush1.msra.mxu0 %v66
    %107 = vmatprep.subr.mxu0 0.0
    %108 = vmatpush1.msra.mxu0 %v65
    %109 = vmatprep.subr.mxu0 0.0
    %110 = vmatpush1.msra.mxu0 %v64
    %111 = vmatprep.subr.mxu0 0.0
    %112 = vmatpush2.msra.mxu0 0.0
    %113 = vmatprep.subr.mxu0 0.0
    %114 = vmatpush2.msra.mxu0 0.0
    %115 = vmatprep.subr.mxu0 0.0
    %116 = vmatpush2.msra.mxu0 0.0
    %117 = vmatprep.subr.mxu0 0.0
    %118 = vmatpush2.msra.mxu0 0.0
    %119 = vmatprep.subr.mxu0 0.0
    %120 = vmatpush2.msra.mxu0 0.0
    %121 = vmatprep.subr.mxu0 0.0
    %122 = vmatpush2.msra.mxu0 0.0
    %123 = vmatprep.subr.mxu0 0.0
    %124 = vmatpush2.msra.mxu0 0.0
    %125 = vmatprep.subr.mxu0 0.0
    %126 = vmatpush2.msra.mxu0 0.0
    %127 = vmatprep.subr.mxu0 0.0
    %128 = vmatpush2.msra.mxu0 0.0
    %129 = vmatprep.subr.mxu0 0.0
    %130 = vmatpush2.msra.mxu0 0.0
    %131 = vmatprep.subr.mxu0 0.0
    %132 = vmatpush2.msra.mxu0 0.0
    %133 = vmatprep.subr.mxu0 0.0
    %134 = vmatpush2.msra.mxu0 0.0
    %135 = vmatprep.subr.mxu0 0.0
    %136 = vmatpush2.msra.mxu0 0.0
    %137 = vmatprep.subr.mxu0 0.0
    %138 = vmatpush2.msra.mxu0 0.0
    %139 = vmatprep.subr.mxu0 0.0
    %140 = vmatpush2.msra.mxu0 0.0
    %141 = vmatprep.subr.mxu0 0.0
    %142 = vmatpush2.msra.mxu0 0.0
    %143 = vmatprep.mubr.f32.mxu0 0.0
    %144 = vmatmul.mubr.f32.gmra.mxu0 %v74
    %v145 = vpop.f32.mrf.mxu0
    %v146 = vadd.f32 0.0, %v145
    %v147 = vpop.f32.mrf.mxu0
    %148 = vmatprep.mubr.f32.mxu0 0.0
    %149 = vmatmul.mubr.f32.gmra.mxu0 %v77
    %v150 = vpop.f32.mrf.mxu0
    %v151 = vadd.f32 0.0, %v150
    %v152 = vpop.f32.mrf.mxu0
    %153 = vdwg.mxu0
    %v154 = vmul.f32 %v146, 5.656854
    %v155 = vmul.f32 %v151, 5.656854
    %v156 = vld [vmem:[%s1] sm:$0xff]
    %v157 = vld [vmem:[%s1 + $0x8] sm:$0xff]
    %v158 = vadd.f32 %v154, %v156
    %v159 = vadd.f32 %v155, %v157
    %v160 = vld [vmem:[%s2] sm:$0xff]
    %v161 = vld [vmem:[%s2 + $0x8] sm:$0xff]
    %v162 = vld [vmem:[%s4] sm:$0xff]
    %v163 = vld [vmem:[%s4 + $0x8] sm:$0xff]
    %v164 = vld [vmem:[%s4 + $0x10] sm:$0xff]
    %v165 = vld [vmem:[%s4 + $0x18] sm:$0xff]
    %v166 = vld [vmem:[%s5] sm:$0x1]
    %v168 = vlaneseq
    %v169 = vshrl.u32 %v168, 7
    %v170 = vsub.s32 0, %v169
    %v171 = vrot.slane %v166, %v170
    %vm173 = vcmask 261120
    %v175 = vsel %vm173, %v158, 0
    %v178 = vsel %vm173, %v159, 0
    %180 = vmatprep.subr.mxu0 0.0
    %181 = vmatpush1.msra.mxu0 0.0
    %182 = vmatprep.subr.mxu0 0.0
    %183 = vmatpush1.msra.mxu0 0.0
    %184 = vmatprep.subr.mxu0 0.0
    %185 = vmatpush1.msra.mxu0 0.0
    %186 = vmatprep.subr.mxu0 0.0
    %187 = vmatpush1.msra.mxu0 0.0
    %188 = vmatprep.subr.mxu0 0.0
    %189 = vmatpush1.msra.mxu0 0.0
    %190 = vmatprep.subr.mxu0 0.0
    %191 = vmatpush1.msra.mxu0 0.0
    %192 = vmatprep.subr.mxu0 0.0
    %193 = vmatpush1.msra.mxu0 0.0
    %194 = vmatprep.subr.mxu0 0.0
    %195 = vmatpush1.msra.mxu0 0.0
    %196 = vmatprep.subr.mxu0 0.0
    %197 = vmatpush1.msra.mxu0 0.0
    %198 = vmatprep.subr.mxu0 0.0
    %199 = vmatpush1.msra.mxu0 0.0
    %200 = vmatprep.subr.mxu0 0.0
    %201 = vmatpush1.msra.mxu0 0.0
    %202 = vmatprep.subr.mxu0 0.0
    %203 = vmatpush1.msra.mxu0 0.0
    %204 = vmatprep.subr.mxu0 0.0
    %205 = vmatpush1.msra.mxu0 %v165
    %206 = vmatprep.subr.mxu0 0.0
    %207 = vmatpush1.msra.mxu0 %v164
    %208 = vmatprep.subr.mxu0 0.0
    %209 = vmatpush1.msra.mxu0 %v163
    %210 = vmatprep.subr.mxu0 0.0
    %211 = vmatpush1.msra.mxu0 %v162
    %212 = vmatprep.subr.mxu0 0.0
    %213 = vmatpush2.msra.mxu0 0.0
    %214 = vmatprep.subr.mxu0 0.0
    %215 = vmatpush2.msra.mxu0 0.0
    %216 = vmatprep.subr.mxu0 0.0
    %217 = vmatpush2.msra.mxu0 0.0
    %218 = vmatprep.subr.mxu0 0.0
    %219 = vmatpush2.msra.mxu0 0.0
    %220 = vmatprep.subr.mxu0 0.0
    %221 = vmatpush2.msra.mxu0 0.0
    %222 = vmatprep.subr.mxu0 0.0
    %223 = vmatpush2.msra.mxu0 0.0
    %224 = vmatprep.subr.mxu0 0.0
    %225 = vmatpush2.msra.mxu0 0.0
    %226 = vmatprep.subr.mxu0 0.0
    %227 = vmatpush2.msra.mxu0 0.0
    %228 = vmatprep.subr.mxu0 0.0
    %229 = vmatpush2.msra.mxu0 0.0
    %230 = vmatprep.subr.mxu0 0.0
    %231 = vmatpush2.msra.mxu0 0.0
    %232 = vmatprep.subr.mxu0 0.0
    %233 = vmatpush2.msra.mxu0 0.0
    %234 = vmatprep.subr.mxu0 0.0
    %235 = vmatpush2.msra.mxu0 0.0
    %236 = vmatprep.subr.mxu0 0.0
    %237 = vmatpush2.msra.mxu0 0.0
    %238 = vmatprep.subr.mxu0 0.0
    %239 = vmatpush2.msra.mxu0 0.0
    %240 = vmatprep.subr.mxu0 0.0
    %241 = vmatpush2.msra.mxu0 0.0
    %242 = vmatprep.subr.mxu0 0.0
    %243 = vmatpush2.msra.mxu0 0.0
    %244 = vmatprep.mubr.f32.mxu0 0.0
    %245 = vmatmul.mubr.f32.gmra.mxu0 %v175
    %v246 = vpop.f32.mrf.mxu0
    %v247 = vadd.f32 %v171, %v246
    %v248 = vpop.f32.mrf.mxu0
    %249 = vmatprep.mubr.f32.mxu0 0.0
    %250 = vmatmul.mubr.f32.gmra.mxu0 %v178
    %v251 = vpop.f32.mrf.mxu0
    %v252 = vadd.f32 %v171, %v251
    %v253 = vpop.f32.mrf.mxu0
    %254 = vdwg.mxu0
    %257 = vrot.lane.b32.xlu0 %v247, 96
    %v258 = vpop.permute.xlu0 %257
    %259 = vrot.lane.b32.xlu0 %v252, 96
    %v260 = vpop.permute.xlu0 %259
    %vm261 = vcmask 64512
    %v262 = vsel %vm261, %v247, 0
    %v264 = vsel %vm261, %v252, 0
    %v266 = vsel %vm261, %v258, 0
    %v268 = vsel %vm261, %v260, 0
    %270 = vmatprep.subr.mxu0 0.0
    %271 = vmatpush1.xpose.msra.mxu0 0.0
    %272 = vmatprep.subr.mxu0 0.0
    %273 = vmatpush1.xpose.msra.mxu0 0.0
    %274 = vmatprep.subr.mxu0 0.0
    %275 = vmatpush1.xpose.msra.mxu0 0.0
    %276 = vmatprep.subr.mxu0 0.0
    %277 = vmatpush1.xpose.msra.mxu0 0.0
    %278 = vmatprep.subr.mxu0 0.0
    %279 = vmatpush1.xpose.msra.mxu0 0.0
    %280 = vmatprep.subr.mxu0 0.0
    %281 = vmatpush1.xpose.msra.mxu0 0.0
    %282 = vmatprep.subr.mxu0 0.0
    %283 = vmatpush1.xpose.msra.mxu0 0.0
    %284 = vmatprep.subr.mxu0 0.0
    %285 = vmatpush1.xpose.msra.mxu0 0.0
    %286 = vmatprep.subr.mxu0 0.0
    %287 = vmatpush1.xpose.msra.mxu0 0.0
    %288 = vmatprep.subr.mxu0 0.0
    %289 = vmatpush1.xpose.msra.mxu0 0.0
    %290 = vmatprep.subr.mxu0 0.0
    %291 = vmatpush1.xpose.msra.mxu0 0.0
    %292 = vmatprep.subr.mxu0 0.0
    %293 = vmatpush1.xpose.msra.mxu0 0.0
    %294 = vmatprep.subr.mxu0 0.0
    %295 = vmatpush1.xpose.msra.mxu0 0.0
    %296 = vmatprep.subr.mxu0 0.0
    %297 = vmatpush1.xpose.msra.mxu0 0.0
    %298 = vmatprep.subr.mxu0 0.0
    %299 = vmatpush1.xpose.msra.mxu0 %v268
    %300 = vmatprep.subr.mxu0 0.0
    %301 = vmatpush1.xpose.msra.mxu0 %v266
    %302 = vmatprep.subr.mxu0 0.0
    %303 = vmatpush2.xpose.msra.mxu0 0.0
    %304 = vmatprep.subr.mxu0 0.0
    %305 = vmatpush2.xpose.msra.mxu0 0.0
    %306 = vmatprep.subr.mxu0 0.0
    %307 = vmatpush2.xpose.msra.mxu0 0.0
    %308 = vmatprep.subr.mxu0 0.0
    %309 = vmatpush2.xpose.msra.mxu0 0.0
    %310 = vmatprep.subr.mxu0 0.0
    %311 = vmatpush2.xpose.msra.mxu0 0.0
    %312 = vmatprep.subr.mxu0 0.0
    %313 = vmatpush2.xpose.msra.mxu0 0.0
    %314 = vmatprep.subr.mxu0 0.0
    %315 = vmatpush2.xpose.msra.mxu0 0.0
    %316 = vmatprep.subr.mxu0 0.0
    %317 = vmatpush2.xpose.msra.mxu0 0.0
    %318 = vmatprep.subr.mxu0 0.0
    %319 = vmatpush2.xpose.msra.mxu0 0.0
    %320 = vmatprep.subr.mxu0 0.0
    %321 = vmatpush2.xpose.msra.mxu0 0.0
    %322 = vmatprep.subr.mxu0 0.0
    %323 = vmatpush2.xpose.msra.mxu0 0.0
    %324 = vmatprep.subr.mxu0 0.0
    %325 = vmatpush2.xpose.msra.mxu0 0.0
    %326 = vmatprep.subr.mxu0 0.0
    %327 = vmatpush2.xpose.msra.mxu0 0.0
    %328 = vmatprep.subr.mxu0 0.0
    %329 = vmatpush2.xpose.msra.mxu0 0.0
    %330 = vmatprep.subr.mxu0 0.0
    %331 = vmatpush2.xpose.msra.mxu0 0.0
    %332 = vmatprep.subr.mxu0 0.0
    %333 = vmatpush2.xpose.msra.mxu0 0.0
    %334 = vmatprep.mubr.f32.mxu0 0.0
    %335 = vmatmul.mubr.f32.gmra.mxu0 %v262
    %v336 = vpop.f32.mrf.mxu0
    %v337 = vadd.f32 0.0, %v336
    %v338 = vpop.f32.mrf.mxu0
    %339 = vmatprep.mubr.f32.mxu0 0.0
    %340 = vmatmul.mubr.f32.gmra.mxu0 %v264
    %v341 = vpop.f32.mrf.mxu0
    %v342 = vadd.f32 0.0, %v341
    %v343 = vpop.f32.mrf.mxu0
    %344 = vdwg.mxu0
    %v345 = vmul.f32 %v337, 0.35355338
    %v346 = vmul.f32 %v342, 0.35355338
    %v347 = vadd.f32 %v345, %v160
    %v348 = vadd.f32 %v346, %v161
    %vm349 = vcmask 130048
    %v350 = vsel %vm349, %v347, -inf
    %351 = vmax.xlane.f32.xlu0 %v350
    %v352 = vpop.xlane.xlu0 %351
    %v353 = vsel %vm349, %v348, -inf
    %354 = vmax.xlane.f32.xlu0 %v353
    %v355 = vpop.xlane.xlu0 %354
    %v356 = vsub.f32 %v347, %v352
    %v357 = vsub.f32 %v348, %v355
    %v358 = vmul.f32 %v356, 1.442695
    %v359 = vpow.pop %v358
    %v360 = vmul.f32 %v357, 1.442695
    %v361 = vpow.pop %v360
    %v362 = vsel %vm349, %v359, 0.0
    %363 = vadd.xlane.f32.xlu0 %v362
    %v364 = vpop.xlane.xlu0 %363
    %v365 = vsel %vm349, %v361, 0.0
    %366 = vadd.xlane.f32.xlu0 %v365
    %v367 = vpop.xlane.xlu0 %366
    %v368 = vrcp.pop %v364
    %v369 = vrcp.pop %v367
    %v370 = vmul.f32 %v359, %v368
    %v371 = vmul.f32 %v361, %v369
    %372 = vrot.lane.b32.xlu0 %v247, 64
    %v373 = vpop.permute.xlu0 %372
    %374 = vrot.lane.b32.xlu0 %v252, 64
    %v375 = vpop.permute.xlu0 %374
    %v379 = vsel %vm349, %v370, 0
    %v382 = vsel %vm349, %v371, 0
    %384 = vmatprep.subr.mxu0 0.0
    %385 = vmatpush1.msra.mxu0 0.0
    %386 = vmatprep.subr.mxu0 0.0
    %387 = vmatpush1.msra.mxu0 0.0
    %388 = vmatprep.subr.mxu0 0.0
    %389 = vmatpush1.msra.mxu0 0.0
    %390 = vmatprep.subr.mxu0 0.0
    %391 = vmatpush1.msra.mxu0 0.0
    %392 = vmatprep.subr.mxu0 0.0
    %393 = vmatpush1.msra.mxu0 0.0
    %394 = vmatprep.subr.mxu0 0.0
    %395 = vmatpush1.msra.mxu0 0.0
    %396 = vmatprep.subr.mxu0 0.0
    %397 = vmatpush1.msra.mxu0 0.0
    %398 = vmatprep.subr.mxu0 0.0
    %399 = vmatpush1.msra.mxu0 0.0
    %400 = vmatprep.subr.mxu0 0.0
    %401 = vmatpush1.msra.mxu0 0.0
    %402 = vmatprep.subr.mxu0 0.0
    %403 = vmatpush1.msra.mxu0 0.0
    %404 = vmatprep.subr.mxu0 0.0
    %405 = vmatpush1.msra.mxu0 0.0
    %406 = vmatprep.subr.mxu0 0.0
    %407 = vmatpush1.msra.mxu0 0.0
    %408 = vmatprep.subr.mxu0 0.0
    %409 = vmatpush1.msra.mxu0 0.0
    %410 = vmatprep.subr.mxu0 0.0
    %411 = vmatpush1.msra.mxu0 0.0
    %412 = vmatprep.subr.mxu0 0.0
    %413 = vmatpush1.msra.mxu0 %v375
    %414 = vmatprep.subr.mxu0 0.0
    %415 = vmatpush1.msra.mxu0 %v373
    %416 = vmatprep.subr.mxu0 0.0
    %417 = vmatpush2.msra.mxu0 0.0
    %418 = vmatprep.subr.mxu0 0.0
    %419 = vmatpush2.msra.mxu0 0.0
    %420 = vmatprep.subr.mxu0 0.0
    %421 = vmatpush2.msra.mxu0 0.0
    %422 = vmatprep.subr.mxu0 0.0
    %423 = vmatpush2.msra.mxu0 0.0
    %424 = vmatprep.subr.mxu0 0.0
    %425 = vmatpush2.msra.mxu0 0.0
    %426 = vmatprep.subr.mxu0 0.0
    %427 = vmatpush2.msra.mxu0 0.0
    %428 = vmatprep.subr.mxu0 0.0
    %429 = vmatpush2.msra.mxu0 0.0
    %430 = vmatprep.subr.mxu0 0.0
    %431 = vmatpush2.msra.mxu0 0.0
    %432 = vmatprep.subr.mxu0 0.0
    %433 = vmatpush2.msra.mxu0 0.0
    %434 = vmatprep.subr.mxu0 0.0
    %435 = vmatpush2.msra.mxu0 0.0
    %436 = vmatprep.subr.mxu0 0.0
    %437 = vmatpush2.msra.mxu0 0.0
    %438 = vmatprep.subr.mxu0 0.0
    %439 = vmatpush2.msra.mxu0 0.0
    %440 = vmatprep.subr.mxu0 0.0
    %441 = vmatpush2.msra.mxu0 0.0
    %442 = vmatprep.subr.mxu0 0.0
    %443 = vmatpush2.msra.mxu0 0.0
    %444 = vmatprep.subr.mxu0 0.0
    %445 = vmatpush2.msra.mxu0 0.0
    %446 = vmatprep.subr.mxu0 0.0
    %447 = vmatpush2.msra.mxu0 0.0
    %448 = vmatprep.mubr.f32.mxu0 0.0
    %449 = vmatmul.mubr.f32.gmra.mxu0 %v379
    %v450 = vpop.f32.mrf.mxu0
    %v451 = vadd.f32 0.0, %v450
    %v452 = vpop.f32.mrf.mxu0
    %453 = vmatprep.mubr.f32.mxu0 0.0
    %454 = vmatmul.mubr.f32.gmra.mxu0 %v382
    %v455 = vpop.f32.mrf.mxu0
    %v456 = vadd.f32 0.0, %v455
    %v457 = vpop.f32.mrf.mxu0
    %458 = vdwg.mxu0
    %459 = vrot.lane.b32.xlu0 %v247, 120
    %v460 = vpop.permute.xlu0 %459
    %461 = vrot.lane.b32.xlu0 %v252, 120
    %v462 = vpop.permute.xlu0 %461
    %463 = vrot.lane.b32.xlu0 %v247, 88
    %v464 = vpop.permute.xlu0 %463
    %465 = vrot.lane.b32.xlu0 %v252, 88
    %v466 = vpop.permute.xlu0 %465
    %v467 = vsel %vm261, %v460, 0
    %v469 = vsel %vm261, %v462, 0
    %v471 = vsel %vm261, %v464, 0
    %v473 = vsel %vm261, %v466, 0
    %475 = vmatprep.subr.mxu0 0.0
    %476 = vmatpush1.xpose.msra.mxu0 0.0
    %477 = vmatprep.subr.mxu0 0.0
    %478 = vmatpush1.xpose.msra.mxu0 0.0
    %479 = vmatprep.subr.mxu0 0.0
    %480 = vmatpush1.xpose.msra.mxu0 0.0
    %481 = vmatprep.subr.mxu0 0.0
    %482 = vmatpush1.xpose.msra.mxu0 0.0
    %483 = vmatprep.subr.mxu0 0.0
    %484 = vmatpush1.xpose.msra.mxu0 0.0
    %485 = vmatprep.subr.mxu0 0.0
    %486 = vmatpush1.xpose.msra.mxu0 0.0
    %487 = vmatprep.subr.mxu0 0.0
    %488 = vmatpush1.xpose.msra.mxu0 0.0
    %489 = vmatprep.subr.mxu0 0.0
    %490 = vmatpush1.xpose.msra.mxu0 0.0
    %491 = vmatprep.subr.mxu0 0.0
    %492 = vmatpush1.xpose.msra.mxu0 0.0
    %493 = vmatprep.subr.mxu0 0.0
    %494 = vmatpush1.xpose.msra.mxu0 0.0
    %495 = vmatprep.subr.mxu0 0.0
    %496 = vmatpush1.xpose.msra.mxu0 0.0
    %497 = vmatprep.subr.mxu0 0.0
    %498 = vmatpush1.xpose.msra.mxu0 0.0
    %499 = vmatprep.subr.mxu0 0.0
    %500 = vmatpush1.xpose.msra.mxu0 0.0
    %501 = vmatprep.subr.mxu0 0.0
    %502 = vmatpush1.xpose.msra.mxu0 0.0
    %503 = vmatprep.subr.mxu0 0.0
    %504 = vmatpush1.xpose.msra.mxu0 %v473
    %505 = vmatprep.subr.mxu0 0.0
    %506 = vmatpush1.xpose.msra.mxu0 %v471
    %507 = vmatprep.subr.mxu0 0.0
    %508 = vmatpush2.xpose.msra.mxu0 0.0
    %509 = vmatprep.subr.mxu0 0.0
    %510 = vmatpush2.xpose.msra.mxu0 0.0
    %511 = vmatprep.subr.mxu0 0.0
    %512 = vmatpush2.xpose.msra.mxu0 0.0
    %513 = vmatprep.subr.mxu0 0.0
    %514 = vmatpush2.xpose.msra.mxu0 0.0
    %515 = vmatprep.subr.mxu0 0.0
    %516 = vmatpush2.xpose.msra.mxu0 0.0
    %517 = vmatprep.subr.mxu0 0.0
    %518 = vmatpush2.xpose.msra.mxu0 0.0
    %519 = vmatprep.subr.mxu0 0.0
    %520 = vmatpush2.xpose.msra.mxu0 0.0
    %521 = vmatprep.subr.mxu0 0.0
    %522 = vmatpush2.xpose.msra.mxu0 0.0
    %523 = vmatprep.subr.mxu0 0.0
    %524 = vmatpush2.xpose.msra.mxu0 0.0
    %525 = vmatprep.subr.mxu0 0.0
    %526 = vmatpush2.xpose.msra.mxu0 0.0
    %527 = vmatprep.subr.mxu0 0.0
    %528 = vmatpush2.xpose.msra.mxu0 0.0
    %529 = vmatprep.subr.mxu0 0.0
    %530 = vmatpush2.xpose.msra.mxu0 0.0
    %531 = vmatprep.subr.mxu0 0.0
    %532 = vmatpush2.xpose.msra.mxu0 0.0
    %533 = vmatprep.subr.mxu0 0.0
    %534 = vmatpush2.xpose.msra.mxu0 0.0
    %535 = vmatprep.subr.mxu0 0.0
    %536 = vmatpush2.xpose.msra.mxu0 0.0
    %537 = vmatprep.subr.mxu0 0.0
    %538 = vmatpush2.xpose.msra.mxu0 0.0
    %539 = vmatprep.mubr.f32.mxu0 0.0
    %540 = vmatmul.mubr.f32.gmra.mxu0 %v467
    %v541 = vpop.f32.mrf.mxu0
    %v542 = vadd.f32 0.0, %v541
    %v543 = vpop.f32.mrf.mxu0
    %544 = vmatprep.mubr.f32.mxu0 0.0
    %545 = vmatmul.mubr.f32.gmra.mxu0 %v469
    %v546 = vpop.f32.mrf.mxu0
    %v547 = vadd.f32 0.0, %v546
    %v548 = vpop.f32.mrf.mxu0
    %549 = vdwg.mxu0
    %v550 = vmul.f32 %v542, 0.35355338
    %v551 = vmul.f32 %v547, 0.35355338
    %v552 = vadd.f32 %v550, %v160
    %v553 = vadd.f32 %v551, %v161
    %v554 = vsel %vm349, %v552, -inf
    %555 = vmax.xlane.f32.xlu0 %v554
    %v556 = vpop.xlane.xlu0 %555
    %v557 = vsel %vm349, %v553, -inf
    %558 = vmax.xlane.f32.xlu0 %v557
    %v559 = vpop.xlane.xlu0 %558
    %v560 = vsub.f32 %v552, %v556
    %v561 = vsub.f32 %v553, %v559
    %v562 = vmul.f32 %v560, 1.442695
    %v563 = vpow.pop %v562
    %v564 = vmul.f32 %v561, 1.442695
    %v565 = vpow.pop %v564
    %v566 = vsel %vm349, %v563, 0.0
    %567 = vadd.xlane.f32.xlu0 %v566
    %v568 = vpop.xlane.xlu0 %567
    %v569 = vsel %vm349, %v565, 0.0
    %570 = vadd.xlane.f32.xlu0 %v569
    %v571 = vpop.xlane.xlu0 %570
    %v572 = vrcp.pop %v568
    %v573 = vrcp.pop %v571
    %v574 = vmul.f32 %v563, %v572
    %v575 = vmul.f32 %v565, %v573
    %576 = vrot.lane.b32.xlu0 %v247, 56
    %v577 = vpop.permute.xlu0 %576
    %578 = vrot.lane.b32.xlu0 %v252, 56
    %v579 = vpop.permute.xlu0 %578
    %v583 = vsel %vm349, %v574, 0
    %v586 = vsel %vm349, %v575, 0
    %588 = vmatprep.subr.mxu0 0.0
    %589 = vmatpush1.msra.mxu0 0.0
    %590 = vmatprep.subr.mxu0 0.0
    %591 = vmatpush1.msra.mxu0 0.0
    %592 = vmatprep.subr.mxu0 0.0
    %593 = vmatpush1.msra.mxu0 0.0
    %594 = vmatprep.subr.mxu0 0.0
    %595 = vmatpush1.msra.mxu0 0.0
    %596 = vmatprep.subr.mxu0 0.0
    %597 = vmatpush1.msra.mxu0 0.0
    %598 = vmatprep.subr.mxu0 0.0
    %599 = vmatpush1.msra.mxu0 0.0
    %600 = vmatprep.subr.mxu0 0.0
    %601 = vmatpush1.msra.mxu0 0.0
    %602 = vmatprep.subr.mxu0 0.0
    %603 = vmatpush1.msra.mxu0 0.0
    %604 = vmatprep.subr.mxu0 0.0
    %605 = vmatpush1.msra.mxu0 0.0
    %606 = vmatprep.subr.mxu0 0.0
    %607 = vmatpush1.msra.mxu0 0.0
    %608 = vmatprep.subr.mxu0 0.0
    %609 = vmatpush1.msra.mxu0 0.0
    %610 = vmatprep.subr.mxu0 0.0
    %611 = vmatpush1.msra.mxu0 0.0
    %612 = vmatprep.subr.mxu0 0.0
    %613 = vmatpush1.msra.mxu0 0.0
    %614 = vmatprep.subr.mxu0 0.0
    %615 = vmatpush1.msra.mxu0 0.0
    %616 = vmatprep.subr.mxu0 0.0
    %617 = vmatpush1.msra.mxu0 %v579
    %618 = vmatprep.subr.mxu0 0.0
    %619 = vmatpush1.msra.mxu0 %v577
    %620 = vmatprep.subr.mxu0 0.0
    %621 = vmatpush2.msra.mxu0 0.0
    %622 = vmatprep.subr.mxu0 0.0
    %623 = vmatpush2.msra.mxu0 0.0
    %624 = vmatprep.subr.mxu0 0.0
    %625 = vmatpush2.msra.mxu0 0.0
    %626 = vmatprep.subr.mxu0 0.0
    %627 = vmatpush2.msra.mxu0 0.0
    %628 = vmatprep.subr.mxu0 0.0
    %629 = vmatpush2.msra.mxu0 0.0
    %630 = vmatprep.subr.mxu0 0.0
    %631 = vmatpush2.msra.mxu0 0.0
    %632 = vmatprep.subr.mxu0 0.0
    %633 = vmatpush2.msra.mxu0 0.0
    %634 = vmatprep.subr.mxu0 0.0
    %635 = vmatpush2.msra.mxu0 0.0
    %636 = vmatprep.subr.mxu0 0.0
    %637 = vmatpush2.msra.mxu0 0.0
    %638 = vmatprep.subr.mxu0 0.0
    %639 = vmatpush2.msra.mxu0 0.0
    %640 = vmatprep.subr.mxu0 0.0
    %641 = vmatpush2.msra.mxu0 0.0
    %642 = vmatprep.subr.mxu0 0.0
    %643 = vmatpush2.msra.mxu0 0.0
    %644 = vmatprep.subr.mxu0 0.0
    %645 = vmatpush2.msra.mxu0 0.0
    %646 = vmatprep.subr.mxu0 0.0
    %647 = vmatpush2.msra.mxu0 0.0
    %648 = vmatprep.subr.mxu0 0.0
    %649 = vmatpush2.msra.mxu0 0.0
    %650 = vmatprep.subr.mxu0 0.0
    %651 = vmatpush2.msra.mxu0 0.0
    %652 = vmatprep.mubr.f32.mxu0 0.0
    %653 = vmatmul.mubr.f32.gmra.mxu0 %v583
    %v654 = vpop.f32.mrf.mxu0
    %v655 = vadd.f32 0.0, %v654
    %v656 = vpop.f32.mrf.mxu0
    %657 = vmatprep.mubr.f32.mxu0 0.0
    %658 = vmatmul.mubr.f32.gmra.mxu0 %v586
    %v659 = vpop.f32.mrf.mxu0
    %v660 = vadd.f32 0.0, %v659
    %v661 = vpop.f32.mrf.mxu0
    %662 = vdwg.mxu0
    %663 = vrot.lane.b32.xlu0 %v247, 112
    %v664 = vpop.permute.xlu0 %663
    %665 = vrot.lane.b32.xlu0 %v252, 112
    %v666 = vpop.permute.xlu0 %665
    %667 = vrot.lane.b32.xlu0 %v247, 80
    %v668 = vpop.permute.xlu0 %667
    %669 = vrot.lane.b32.xlu0 %v252, 80
    %v670 = vpop.permute.xlu0 %669
    %v671 = vsel %vm261, %v664, 0
    %v673 = vsel %vm261, %v666, 0
    %v675 = vsel %vm261, %v668, 0
    %v677 = vsel %vm261, %v670, 0
    %679 = vmatprep.subr.mxu0 0.0
    %680 = vmatpush1.xpose.msra.mxu0 0.0
    %681 = vmatprep.subr.mxu0 0.0
    %682 = vmatpush1.xpose.msra.mxu0 0.0
    %683 = vmatprep.subr.mxu0 0.0
    %684 = vmatpush1.xpose.msra.mxu0 0.0
    %685 = vmatprep.subr.mxu0 0.0
    %686 = vmatpush1.xpose.msra.mxu0 0.0
    %687 = vmatprep.subr.mxu0 0.0
    %688 = vmatpush1.xpose.msra.mxu0 0.0
    %689 = vmatprep.subr.mxu0 0.0
    %690 = vmatpush1.xpose.msra.mxu0 0.0
    %691 = vmatprep.subr.mxu0 0.0
    %692 = vmatpush1.xpose.msra.mxu0 0.0
    %693 = vmatprep.subr.mxu0 0.0
    %694 = vmatpush1.xpose.msra.mxu0 0.0
    %695 = vmatprep.subr.mxu0 0.0
    %696 = vmatpush1.xpose.msra.mxu0 0.0
    %697 = vmatprep.subr.mxu0 0.0
    %698 = vmatpush1.xpose.msra.mxu0 0.0
    %699 = vmatprep.subr.mxu0 0.0
    %700 = vmatpush1.xpose.msra.mxu0 0.0
    %701 = vmatprep.subr.mxu0 0.0
    %702 = vmatpush1.xpose.msra.mxu0 0.0
    %703 = vmatprep.subr.mxu0 0.0
    %704 = vmatpush1.xpose.msra.mxu0 0.0
    %705 = vmatprep.subr.mxu0 0.0
    %706 = vmatpush1.xpose.msra.mxu0 0.0
    %707 = vmatprep.subr.mxu0 0.0
    %708 = vmatpush1.xpose.msra.mxu0 %v677
    %709 = vmatprep.subr.mxu0 0.0
    %710 = vmatpush1.xpose.msra.mxu0 %v675
    %711 = vmatprep.subr.mxu0 0.0
    %712 = vmatpush2.xpose.msra.mxu0 0.0
    %713 = vmatprep.subr.mxu0 0.0
    %714 = vmatpush2.xpose.msra.mxu0 0.0
    %715 = vmatprep.subr.mxu0 0.0
    %716 = vmatpush2.xpose.msra.mxu0 0.0
    %717 = vmatprep.subr.mxu0 0.0
    %718 = vmatpush2.xpose.msra.mxu0 0.0
    %719 = vmatprep.subr.mxu0 0.0
    %720 = vmatpush2.xpose.msra.mxu0 0.0
    %721 = vmatprep.subr.mxu0 0.0
    %722 = vmatpush2.xpose.msra.mxu0 0.0
    %723 = vmatprep.subr.mxu0 0.0
    %724 = vmatpush2.xpose.msra.mxu0 0.0
    %725 = vmatprep.subr.mxu0 0.0
    %726 = vmatpush2.xpose.msra.mxu0 0.0
    %727 = vmatprep.subr.mxu0 0.0
    %728 = vmatpush2.xpose.msra.mxu0 0.0
    %729 = vmatprep.subr.mxu0 0.0
    %730 = vmatpush2.xpose.msra.mxu0 0.0
    %731 = vmatprep.subr.mxu0 0.0
    %732 = vmatpush2.xpose.msra.mxu0 0.0
    %733 = vmatprep.subr.mxu0 0.0
    %734 = vmatpush2.xpose.msra.mxu0 0.0
    %735 = vmatprep.subr.mxu0 0.0
    %736 = vmatpush2.xpose.msra.mxu0 0.0
    %737 = vmatprep.subr.mxu0 0.0
    %738 = vmatpush2.xpose.msra.mxu0 0.0
    %739 = vmatprep.subr.mxu0 0.0
    %740 = vmatpush2.xpose.msra.mxu0 0.0
    %741 = vmatprep.subr.mxu0 0.0
    %742 = vmatpush2.xpose.msra.mxu0 0.0
    %743 = vmatprep.mubr.f32.mxu0 0.0
    %744 = vmatmul.mubr.f32.gmra.mxu0 %v671
    %v745 = vpop.f32.mrf.mxu0
    %v746 = vadd.f32 0.0, %v745
    %v747 = vpop.f32.mrf.mxu0
    %748 = vmatprep.mubr.f32.mxu0 0.0
    %749 = vmatmul.mubr.f32.gmra.mxu0 %v673
    %v750 = vpop.f32.mrf.mxu0
    %v751 = vadd.f32 0.0, %v750
    %v752 = vpop.f32.mrf.mxu0
    %753 = vdwg.mxu0
    %v754 = vmul.f32 %v746, 0.35355338
    %v755 = vmul.f32 %v751, 0.35355338
    %v756 = vadd.f32 %v754, %v160
    %v757 = vadd.f32 %v755, %v161
    %v758 = vsel %vm349, %v756, -inf
    %759 = vmax.xlane.f32.xlu0 %v758
    %v760 = vpop.xlane.xlu0 %759
    %v761 = vsel %vm349, %v757, -inf
    %762 = vmax.xlane.f32.xlu0 %v761
    %v763 = vpop.xlane.xlu0 %762
    %v764 = vsub.f32 %v756, %v760
    %v765 = vsub.f32 %v757, %v763
    %v766 = vmul.f32 %v764, 1.442695
    %v767 = vpow.pop %v766
    %v768 = vmul.f32 %v765, 1.442695
    %v769 = vpow.pop %v768
    %v770 = vsel %vm349, %v767, 0.0
    %771 = vadd.xlane.f32.xlu0 %v770
    %v772 = vpop.xlane.xlu0 %771
    %v773 = vsel %vm349, %v769, 0.0
    %774 = vadd.xlane.f32.xlu0 %v773
    %v775 = vpop.xlane.xlu0 %774
    %v776 = vrcp.pop %v772
    %v777 = vrcp.pop %v775
    %v778 = vmul.f32 %v767, %v776
    %v779 = vmul.f32 %v769, %v777
    %780 = vrot.lane.b32.xlu0 %v247, 48
    %v781 = vpop.permute.xlu0 %780
    %782 = vrot.lane.b32.xlu0 %v252, 48
    %v783 = vpop.permute.xlu0 %782
    %v787 = vsel %vm349, %v778, 0
    %v790 = vsel %vm349, %v779, 0
    %792 = vmatprep.subr.mxu0 0.0
    %793 = vmatpush1.msra.mxu0 0.0
    %794 = vmatprep.subr.mxu0 0.0
    %795 = vmatpush1.msra.mxu0 0.0
    %796 = vmatprep.subr.mxu0 0.0
    %797 = vmatpush1.msra.mxu0 0.0
    %798 = vmatprep.subr.mxu0 0.0
    %799 = vmatpush1.msra.mxu0 0.0
    %800 = vmatprep.subr.mxu0 0.0
    %801 = vmatpush1.msra.mxu0 0.0
    %802 = vmatprep.subr.mxu0 0.0
    %803 = vmatpush1.msra.mxu0 0.0
    %804 = vmatprep.subr.mxu0 0.0
    %805 = vmatpush1.msra.mxu0 0.0
    %806 = vmatprep.subr.mxu0 0.0
    %807 = vmatpush1.msra.mxu0 0.0
    %808 = vmatprep.subr.mxu0 0.0
    %809 = vmatpush1.msra.mxu0 0.0
    %810 = vmatprep.subr.mxu0 0.0
    %811 = vmatpush1.msra.mxu0 0.0
    %812 = vmatprep.subr.mxu0 0.0
    %813 = vmatpush1.msra.mxu0 0.0
    %814 = vmatprep.subr.mxu0 0.0
    %815 = vmatpush1.msra.mxu0 0.0
    %816 = vmatprep.subr.mxu0 0.0
    %817 = vmatpush1.msra.mxu0 0.0
    %818 = vmatprep.subr.mxu0 0.0
    %819 = vmatpush1.msra.mxu0 0.0
    %820 = vmatprep.subr.mxu0 0.0
    %821 = vmatpush1.msra.mxu0 %v783
    %822 = vmatprep.subr.mxu0 0.0
    %823 = vmatpush1.msra.mxu0 %v781
    %824 = vmatprep.subr.mxu0 0.0
    %825 = vmatpush2.msra.mxu0 0.0
    %826 = vmatprep.subr.mxu0 0.0
    %827 = vmatpush2.msra.mxu0 0.0
    %828 = vmatprep.subr.mxu0 0.0
    %829 = vmatpush2.msra.mxu0 0.0
    %830 = vmatprep.subr.mxu0 0.0
    %831 = vmatpush2.msra.mxu0 0.0
    %832 = vmatprep.subr.mxu0 0.0
    %833 = vmatpush2.msra.mxu0 0.0
    %834 = vmatprep.subr.mxu0 0.0
    %835 = vmatpush2.msra.mxu0 0.0
    %836 = vmatprep.subr.mxu0 0.0
    %837 = vmatpush2.msra.mxu0 0.0
    %838 = vmatprep.subr.mxu0 0.0
    %839 = vmatpush2.msra.mxu0 0.0
    %840 = vmatprep.subr.mxu0 0.0
    %841 = vmatpush2.msra.mxu0 0.0
    %842 = vmatprep.subr.mxu0 0.0
    %843 = vmatpush2.msra.mxu0 0.0
    %844 = vmatprep.subr.mxu0 0.0
    %845 = vmatpush2.msra.mxu0 0.0
    %846 = vmatprep.subr.mxu0 0.0
    %847 = vmatpush2.msra.mxu0 0.0
    %848 = vmatprep.subr.mxu0 0.0
    %849 = vmatpush2.msra.mxu0 0.0
    %850 = vmatprep.subr.mxu0 0.0
    %851 = vmatpush2.msra.mxu0 0.0
    %852 = vmatprep.subr.mxu0 0.0
    %853 = vmatpush2.msra.mxu0 0.0
    %854 = vmatprep.subr.mxu0 0.0
    %855 = vmatpush2.msra.mxu0 0.0
    %856 = vmatprep.mubr.f32.mxu0 0.0
    %857 = vmatmul.mubr.f32.gmra.mxu0 %v787
    %v858 = vpop.f32.mrf.mxu0
    %v859 = vadd.f32 0.0, %v858
    %v860 = vpop.f32.mrf.mxu0
    %861 = vmatprep.mubr.f32.mxu0 0.0
    %862 = vmatmul.mubr.f32.gmra.mxu0 %v790
    %v863 = vpop.f32.mrf.mxu0
    %v864 = vadd.f32 0.0, %v863
    %v865 = vpop.f32.mrf.mxu0
    %866 = vdwg.mxu0
    %867 = vrot.lane.b32.xlu0 %v247, 104
    %v868 = vpop.permute.xlu0 %867
    %869 = vrot.lane.b32.xlu0 %v252, 104
    %v870 = vpop.permute.xlu0 %869
    %871 = vrot.lane.b32.xlu0 %v247, 72
    %v872 = vpop.permute.xlu0 %871
    %873 = vrot.lane.b32.xlu0 %v252, 72
    %v874 = vpop.permute.xlu0 %873
    %v875 = vsel %vm261, %v868, 0
    %v877 = vsel %vm261, %v870, 0
    %v879 = vsel %vm261, %v872, 0
    %v881 = vsel %vm261, %v874, 0
    %883 = vmatprep.subr.mxu0 0.0
    %884 = vmatpush1.xpose.msra.mxu0 0.0
    %885 = vmatprep.subr.mxu0 0.0
    %886 = vmatpush1.xpose.msra.mxu0 0.0
    %887 = vmatprep.subr.mxu0 0.0
    %888 = vmatpush1.xpose.msra.mxu0 0.0
    %889 = vmatprep.subr.mxu0 0.0
    %890 = vmatpush1.xpose.msra.mxu0 0.0
    %891 = vmatprep.subr.mxu0 0.0
    %892 = vmatpush1.xpose.msra.mxu0 0.0
    %893 = vmatprep.subr.mxu0 0.0
    %894 = vmatpush1.xpose.msra.mxu0 0.0
    %895 = vmatprep.subr.mxu0 0.0
    %896 = vmatpush1.xpose.msra.mxu0 0.0
    %897 = vmatprep.subr.mxu0 0.0
    %898 = vmatpush1.xpose.msra.mxu0 0.0
    %899 = vmatprep.subr.mxu0 0.0
    %900 = vmatpush1.xpose.msra.mxu0 0.0
    %901 = vmatprep.subr.mxu0 0.0
    %902 = vmatpush1.xpose.msra.mxu0 0.0
    %903 = vmatprep.subr.mxu0 0.0
    %904 = vmatpush1.xpose.msra.mxu0 0.0
    %905 = vmatprep.subr.mxu0 0.0
    %906 = vmatpush1.xpose.msra.mxu0 0.0
    %907 = vmatprep.subr.mxu0 0.0
    %908 = vmatpush1.xpose.msra.mxu0 0.0
    %909 = vmatprep.subr.mxu0 0.0
    %910 = vmatpush1.xpose.msra.mxu0 0.0
    %911 = vmatprep.subr.mxu0 0.0
    %912 = vmatpush1.xpose.msra.mxu0 %v881
    %913 = vmatprep.subr.mxu0 0.0
    %914 = vmatpush1.xpose.msra.mxu0 %v879
    %915 = vmatprep.subr.mxu0 0.0
    %916 = vmatpush2.xpose.msra.mxu0 0.0
    %917 = vmatprep.subr.mxu0 0.0
    %918 = vmatpush2.xpose.msra.mxu0 0.0
    %919 = vmatprep.subr.mxu0 0.0
    %920 = vmatpush2.xpose.msra.mxu0 0.0
    %921 = vmatprep.subr.mxu0 0.0
    %922 = vmatpush2.xpose.msra.mxu0 0.0
    %923 = vmatprep.subr.mxu0 0.0
    %924 = vmatpush2.xpose.msra.mxu0 0.0
    %925 = vmatprep.subr.mxu0 0.0
    %926 = vmatpush2.xpose.msra.mxu0 0.0
    %927 = vmatprep.subr.mxu0 0.0
    %928 = vmatpush2.xpose.msra.mxu0 0.0
    %929 = vmatprep.subr.mxu0 0.0
    %930 = vmatpush2.xpose.msra.mxu0 0.0
    %931 = vmatprep.subr.mxu0 0.0
    %932 = vmatpush2.xpose.msra.mxu0 0.0
    %933 = vmatprep.subr.mxu0 0.0
    %934 = vmatpush2.xpose.msra.mxu0 0.0
    %935 = vmatprep.subr.mxu0 0.0
    %936 = vmatpush2.xpose.msra.mxu0 0.0
    %937 = vmatprep.subr.mxu0 0.0
    %938 = vmatpush2.xpose.msra.mxu0 0.0
    %939 = vmatprep.subr.mxu0 0.0
    %940 = vmatpush2.xpose.msra.mxu0 0.0
    %941 = vmatprep.subr.mxu0 0.0
    %942 = vmatpush2.xpose.msra.mxu0 0.0
    %943 = vmatprep.subr.mxu0 0.0
    %944 = vmatpush2.xpose.msra.mxu0 0.0
    %945 = vmatprep.subr.mxu0 0.0
    %946 = vmatpush2.xpose.msra.mxu0 0.0
    %947 = vmatprep.mubr.f32.mxu0 0.0
    %948 = vmatmul.mubr.f32.gmra.mxu0 %v875
    %v949 = vpop.f32.mrf.mxu0
    %v950 = vadd.f32 0.0, %v949
    %v951 = vpop.f32.mrf.mxu0
    %952 = vmatprep.mubr.f32.mxu0 0.0
    %953 = vmatmul.mubr.f32.gmra.mxu0 %v877
    %v954 = vpop.f32.mrf.mxu0
    %v955 = vadd.f32 0.0, %v954
    %v956 = vpop.f32.mrf.mxu0
    %957 = vdwg.mxu0
    %v958 = vmul.f32 %v950, 0.35355338
    %v959 = vmul.f32 %v955, 0.35355338
    %v960 = vadd.f32 %v958, %v160
    %v961 = vadd.f32 %v959, %v161
    %v962 = vsel %vm349, %v960, -inf
    %963 = vmax.xlane.f32.xlu0 %v962
    %v964 = vpop.xlane.xlu0 %963
    %v965 = vsel %vm349, %v961, -inf
    %966 = vmax.xlane.f32.xlu0 %v965
    %v967 = vpop.xlane.xlu0 %966
    %v968 = vsub.f32 %v960, %v964
    %v969 = vsub.f32 %v961, %v967
    %v970 = vmul.f32 %v968, 1.442695
    %v971 = vpow.pop %v970
    %v972 = vmul.f32 %v969, 1.442695
    %v973 = vpow.pop %v972
    %v974 = vsel %vm349, %v971, 0.0
    %975 = vadd.xlane.f32.xlu0 %v974
    %v976 = vpop.xlane.xlu0 %975
    %v977 = vsel %vm349, %v973, 0.0
    %978 = vadd.xlane.f32.xlu0 %v977
    %v979 = vpop.xlane.xlu0 %978
    %v980 = vrcp.pop %v976
    %v981 = vrcp.pop %v979
    %v982 = vmul.f32 %v971, %v980
    %v983 = vmul.f32 %v973, %v981
    %984 = vrot.lane.b32.xlu0 %v247, 40
    %v985 = vpop.permute.xlu0 %984
    %986 = vrot.lane.b32.xlu0 %v252, 40
    %v987 = vpop.permute.xlu0 %986
    %v991 = vsel %vm349, %v982, 0
    %v994 = vsel %vm349, %v983, 0
    %996 = vmatprep.subr.mxu0 0.0
    %997 = vmatpush1.msra.mxu0 0.0
    %998 = vmatprep.subr.mxu0 0.0
    %999 = vmatpush1.msra.mxu0 0.0
    %1000 = vmatprep.subr.mxu0 0.0
    %1001 = vmatpush1.msra.mxu0 0.0
    %1002 = vmatprep.subr.mxu0 0.0
    %1003 = vmatpush1.msra.mxu0 0.0
    %1004 = vmatprep.subr.mxu0 0.0
    %1005 = vmatpush1.msra.mxu0 0.0
    %1006 = vmatprep.subr.mxu0 0.0
    %1007 = vmatpush1.msra.mxu0 0.0
    %1008 = vmatprep.subr.mxu0 0.0
    %1009 = vmatpush1.msra.mxu0 0.0
    %1010 = vmatprep.subr.mxu0 0.0
    %1011 = vmatpush1.msra.mxu0 0.0
    %1012 = vmatprep.subr.mxu0 0.0
    %1013 = vmatpush1.msra.mxu0 0.0
    %1014 = vmatprep.subr.mxu0 0.0
    %1015 = vmatpush1.msra.mxu0 0.0
    %1016 = vmatprep.subr.mxu0 0.0
    %1017 = vmatpush1.msra.mxu0 0.0
    %1018 = vmatprep.subr.mxu0 0.0
    %1019 = vmatpush1.msra.mxu0 0.0
    %1020 = vmatprep.subr.mxu0 0.0
    %1021 = vmatpush1.msra.mxu0 0.0
    %1022 = vmatprep.subr.mxu0 0.0
    %1023 = vmatpush1.msra.mxu0 0.0
    %1024 = vmatprep.subr.mxu0 0.0
    %1025 = vmatpush1.msra.mxu0 %v987
    %1026 = vmatprep.subr.mxu0 0.0
    %1027 = vmatpush1.msra.mxu0 %v985
    %1028 = vmatprep.subr.mxu0 0.0
    %1029 = vmatpush2.msra.mxu0 0.0
    %1030 = vmatprep.subr.mxu0 0.0
    %1031 = vmatpush2.msra.mxu0 0.0
    %1032 = vmatprep.subr.mxu0 0.0
    %1033 = vmatpush2.msra.mxu0 0.0
    %1034 = vmatprep.subr.mxu0 0.0
    %1035 = vmatpush2.msra.mxu0 0.0
    %1036 = vmatprep.subr.mxu0 0.0
    %1037 = vmatpush2.msra.mxu0 0.0
    %1038 = vmatprep.subr.mxu0 0.0
    %1039 = vmatpush2.msra.mxu0 0.0
    %1040 = vmatprep.subr.mxu0 0.0
    %1041 = vmatpush2.msra.mxu0 0.0
    %1042 = vmatprep.subr.mxu0 0.0
    %1043 = vmatpush2.msra.mxu0 0.0
    %1044 = vmatprep.subr.mxu0 0.0
    %1045 = vmatpush2.msra.mxu0 0.0
    %1046 = vmatprep.subr.mxu0 0.0
    %1047 = vmatpush2.msra.mxu0 0.0
    %1048 = vmatprep.subr.mxu0 0.0
    %1049 = vmatpush2.msra.mxu0 0.0
    %1050 = vmatprep.subr.mxu0 0.0
    %1051 = vmatpush2.msra.mxu0 0.0
    %1052 = vmatprep.subr.mxu0 0.0
    %1053 = vmatpush2.msra.mxu0 0.0
    %1054 = vmatprep.subr.mxu0 0.0
    %1055 = vmatpush2.msra.mxu0 0.0
    %1056 = vmatprep.subr.mxu0 0.0
    %1057 = vmatpush2.msra.mxu0 0.0
    %1058 = vmatprep.subr.mxu0 0.0
    %1059 = vmatpush2.msra.mxu0 0.0
    %1060 = vmatprep.mubr.f32.mxu0 0.0
    %1061 = vmatmul.mubr.f32.gmra.mxu0 %v991
    %v1062 = vpop.f32.mrf.mxu0
    %v1063 = vadd.f32 0.0, %v1062
    %v1064 = vpop.f32.mrf.mxu0
    %1065 = vmatprep.mubr.f32.mxu0 0.0
    %1066 = vmatmul.mubr.f32.gmra.mxu0 %v994
    %v1067 = vpop.f32.mrf.mxu0
    %v1068 = vadd.f32 0.0, %v1067
    %v1069 = vpop.f32.mrf.mxu0
    %1070 = vdwg.mxu0
    %1073 = vrot.lane.b32.xlu0 %v655, 8
    %v1074 = vpop.permute.xlu0 %1073
    %1075 = vrot.lane.b32.xlu0 %v660, 8
    %v1076 = vpop.permute.xlu0 %1075
    %1081 = vrot.lane.b32.xlu0 %v859, 16
    %v1082 = vpop.permute.xlu0 %1081
    %1083 = vrot.lane.b32.xlu0 %v864, 16
    %v1084 = vpop.permute.xlu0 %1083
    %1089 = vrot.lane.b32.xlu0 %v1063, 24
    %v1090 = vpop.permute.xlu0 %1089
    %1091 = vrot.lane.b32.xlu0 %v1068, 24
    %v1092 = vpop.permute.xlu0 %1091
    %v1095 = vsel %vm261, %v451, %v1074
    %v1096 = vsel %vm261, %v456, %v1076
    %v1097 = vsel %vm349, %v1095, %v1082
    %v1098 = vsel %vm349, %v1096, %v1084
    %vm1099 = vcmask 195584
    %v1100 = vsel %vm1099, %v1097, %v1090
    %v1101 = vsel %vm1099, %v1098, %v1092
    %v1102 = vld [vmem:[%s6] sm:$0xff]
    %v1103 = vld [vmem:[%s6 + $0x8] sm:$0xff]
    %v1104 = vld [vmem:[%s6 + $0x10] sm:$0xff]
    %v1105 = vld [vmem:[%s6 + $0x18] sm:$0xff]
    %v1106 = vld [vmem:[%s7] sm:$0x1]
    %v1108 = vlaneseq
    %v1109 = vshrl.u32 %v1108, 7
    %v1110 = vsub.s32 0, %v1109
    %v1111 = vrot.slane %v1106, %v1110
    %v1114 = vsel %vm173, %v1100, 0
    %v1117 = vsel %vm173, %v1101, 0
    %1119 = vmatprep.subr.mxu0 0.0
    %1120 = vmatpush1.msra.mxu0 0.0
    %1121 = vmatprep.subr.mxu0 0.0
    %1122 = vmatpush1.msra.mxu0 0.0
    %1123 = vmatprep.subr.mxu0 0.0
    %1124 = vmatpush1.msra.mxu0 0.0
    %1125 = vmatprep.subr.mxu0 0.0
    %1126 = vmatpush1.msra.mxu0 0.0
    %1127 = vmatprep.subr.mxu0 0.0
    %1128 = vmatpush1.msra.mxu0 0.0
    %1129 = vmatprep.subr.mxu0 0.0
    %1130 = vmatpush1.msra.mxu0 0.0
    %1131 = vmatprep.subr.mxu0 0.0
    %1132 = vmatpush1.msra.mxu0 0.0
    %1133 = vmatprep.subr.mxu0 0.0
    %1134 = vmatpush1.msra.mxu0 0.0
    %1135 = vmatprep.subr.mxu0 0.0
    %1136 = vmatpush1.msra.mxu0 0.0
    %1137 = vmatprep.subr.mxu0 0.0
    %1138 = vmatpush1.msra.mxu0 0.0
    %1139 = vmatprep.subr.mxu0 0.0
    %1140 = vmatpush1.msra.mxu0 0.0
    %1141 = vmatprep.subr.mxu0 0.0
    %1142 = vmatpush1.msra.mxu0 0.0
    %1143 = vmatprep.subr.mxu0 0.0
    %1144 = vmatpush1.msra.mxu0 %v1105
    %1145 = vmatprep.subr.mxu0 0.0
    %1146 = vmatpush1.msra.mxu0 %v1104
    %1147 = vmatprep.subr.mxu0 0.0
    %1148 = vmatpush1.msra.mxu0 %v1103
    %1149 = vmatprep.subr.mxu0 0.0
    %1150 = vmatpush1.msra.mxu0 %v1102
    %1151 = vmatprep.subr.mxu0 0.0
    %1152 = vmatpush2.msra.mxu0 0.0
    %1153 = vmatprep.subr.mxu0 0.0
    %1154 = vmatpush2.msra.mxu0 0.0
    %1155 = vmatprep.subr.mxu0 0.0
    %1156 = vmatpush2.msra.mxu0 0.0
    %1157 = vmatprep.subr.mxu0 0.0
    %1158 = vmatpush2.msra.mxu0 0.0
    %1159 = vmatprep.subr.mxu0 0.0
    %1160 = vmatpush2.msra.mxu0 0.0
    %1161 = vmatprep.subr.mxu0 0.0
    %1162 = vmatpush2.msra.mxu0 0.0
    %1163 = vmatprep.subr.mxu0 0.0
    %1164 = vmatpush2.msra.mxu0 0.0
    %1165 = vmatprep.subr.mxu0 0.0
    %1166 = vmatpush2.msra.mxu0 0.0
    %1167 = vmatprep.subr.mxu0 0.0
    %1168 = vmatpush2.msra.mxu0 0.0
    %1169 = vmatprep.subr.mxu0 0.0
    %1170 = vmatpush2.msra.mxu0 0.0
    %1171 = vmatprep.subr.mxu0 0.0
    %1172 = vmatpush2.msra.mxu0 0.0
    %1173 = vmatprep.subr.mxu0 0.0
    %1174 = vmatpush2.msra.mxu0 0.0
    %1175 = vmatprep.subr.mxu0 0.0
    %1176 = vmatpush2.msra.mxu0 0.0
    %1177 = vmatprep.subr.mxu0 0.0
    %1178 = vmatpush2.msra.mxu0 0.0
    %1179 = vmatprep.subr.mxu0 0.0
    %1180 = vmatpush2.msra.mxu0 0.0
    %1181 = vmatprep.subr.mxu0 0.0
    %1182 = vmatpush2.msra.mxu0 0.0
    %1183 = vmatprep.mubr.f32.mxu0 0.0
    %1184 = vmatmul.mubr.f32.gmra.mxu0 %v1114
    %v1185 = vpop.f32.mrf.mxu0
    %v1186 = vadd.f32 %v1111, %v1185
    %v1187 = vpop.f32.mrf.mxu0
    %1188 = vmatprep.mubr.f32.mxu0 0.0
    %1189 = vmatmul.mubr.f32.gmra.mxu0 %v1117
    %v1190 = vpop.f32.mrf.mxu0
    %v1191 = vadd.f32 %v1111, %v1190
    %v1192 = vpop.f32.mrf.mxu0
    %1193 = vdwg.mxu0
    %v1194 = vld [vmem:[%s12] sm:$0x3]
    %v1195 = vld [vmem:[%s13] sm:$0x3]
    %v1196 = vadd.f32 %v158, %v1186
    %v1197 = vadd.f32 %v159, %v1191
    %v1198 = vsel %vm173, %v1196, 0.0
    %1199 = vadd.xlane.f32.xlu0 %v1198
    %v1200 = vpop.xlane.xlu0 %1199
    %v1201 = vsel %vm173, %v1197, 0.0
    %1202 = vadd.xlane.f32.xlu0 %v1201
    %v1203 = vpop.xlane.xlu0 %1202
    %v1204 = vrcp.pop 32.0
    %v1205 = vmul.f32 %v1200, %v1204
    %v1206 = vmul.f32 %v1203, %v1204
    %v1207 = vsub.f32 %v1196, %v1205
    %v1208 = vsub.f32 %v1197, %v1206
    %v1209 = vmul.f32 %v1207, %v1207
    %v1210 = vmul.f32 %v1208, %v1208
    %v1211 = vsel %vm173, %v1209, 0.0
    %1212 = vadd.xlane.f32.xlu0 %v1211
    %v1213 = vpop.xlane.xlu0 %1212
    %v1214 = vsel %vm173, %v1210, 0.0
    %1215 = vadd.xlane.f32.xlu0 %v1214
    %v1216 = vpop.xlane.xlu0 %1215
    %v1217 = vmul.f32 %v1213, %v1204
    %v1218 = vmul.f32 %v1216, %v1204
    %v1219 = vadd.f32 %v1217, 1e-05
    %v1220 = vadd.f32 %v1218, 1e-05
    %v1221 = vrsqrt.pop %v1219
    %v1222 = vrsqrt.pop %v1220
    %v1223 = vmul.f32 %v1207, %v1221
    %v1224 = vmul.f32 %v1208, %v1222
    %v1225 = vlaneseq
    %v1226 = vshrl.u32 %v1225, 7
    %v1227 = vsub.s32 0, %v1226
    %v1228 = vrot.slane %v1194, %v1227
    %v1229 = vmul.f32 %v1223, %v1228
    %v1230 = vmul.f32 %v1224, %v1228
    %v1231 = vlaneseq
    %v1232 = vshrl.u32 %v1231, 7
    %v1233 = vsub.s32 0, %v1232
    %v1234 = vrot.slane %v1195, %v1233
    %v1235 = vadd.f32 %v1229, %v1234
    %v1236 = vadd.f32 %v1230, %v1234
    %v1237 = vld [vmem:[%s8] sm:$0xff]
    %v1238 = vld [vmem:[%s8 + $0x8] sm:$0xff]
    %v1239 = vld [vmem:[%s8 + $0x10] sm:$0xff]
    %v1240 = vld [vmem:[%s8 + $0x18] sm:$0xff]
    %v1241 = vld [vmem:[%s9] sm:$0x1]
    %v1243 = vlaneseq
    %v1244 = vshrl.u32 %v1243, 7
    %v1245 = vsub.s32 0, %v1244
    %v1246 = vrot.slane %v1241, %v1245
    %v1249 = vsel %vm173, %v1235, 0
    %v1252 = vsel %vm173, %v1236, 0
    %1254 = vmatprep.subr.mxu0 0.0
    %1255 = vmatpush1.msra.mxu0 0.0
    %1256 = vmatprep.subr.mxu0 0.0
    %1257 = vmatpush1.msra.mxu0 0.0
    %1258 = vmatprep.subr.mxu0 0.0
    %1259 = vmatpush1.msra.mxu0 0.0
    %1260 = vmatprep.subr.mxu0 0.0
    %1261 = vmatpush1.msra.mxu0 0.0
    %1262 = vmatprep.subr.mxu0 0.0
    %1263 = vmatpush1.msra.mxu0 0.0
    %1264 = vmatprep.subr.mxu0 0.0
    %1265 = vmatpush1.msra.mxu0 0.0
    %1266 = vmatprep.subr.mxu0 0.0
    %1267 = vmatpush1.msra.mxu0 0.0
    %1268 = vmatprep.subr.mxu0 0.0
    %1269 = vmatpush1.msra.mxu0 0.0
    %1270 = vmatprep.subr.mxu0 0.0
    %1271 = vmatpush1.msra.mxu0 0.0
    %1272 = vmatprep.subr.mxu0 0.0
    %1273 = vmatpush1.msra.mxu0 0.0
    %1274 = vmatprep.subr.mxu0 0.0
    %1275 = vmatpush1.msra.mxu0 0.0
    %1276 = vmatprep.subr.mxu0 0.0
    %1277 = vmatpush1.msra.mxu0 0.0
    %1278 = vmatprep.subr.mxu0 0.0
    %1279 = vmatpush1.msra.mxu0 %v1240
    %1280 = vmatprep.subr.mxu0 0.0
    %1281 = vmatpush1.msra.mxu0 %v1239
    %1282 = vmatprep.subr.mxu0 0.0
    %1283 = vmatpush1.msra.mxu0 %v1238
    %1284 = vmatprep.subr.mxu0 0.0
    %1285 = vmatpush1.msra.mxu0 %v1237
    %1286 = vmatprep.subr.mxu0 0.0
    %1287 = vmatpush2.msra.mxu0 0.0
    %1288 = vmatprep.subr.mxu0 0.0
    %1289 = vmatpush2.msra.mxu0 0.0
    %1290 = vmatprep.subr.mxu0 0.0
    %1291 = vmatpush2.msra.mxu0 0.0
    %1292 = vmatprep.subr.mxu0 0.0
    %1293 = vmatpush2.msra.mxu0 0.0
    %1294 = vmatprep.subr.mxu0 0.0
    %1295 = vmatpush2.msra.mxu0 0.0
    %1296 = vmatprep.subr.mxu0 0.0
    %1297 = vmatpush2.msra.mxu0 0.0
    %1298 = vmatprep.subr.mxu0 0.0
    %1299 = vmatpush2.msra.mxu0 0.0
    %1300 = vmatprep.subr.mxu0 0.0
    %1301 = vmatpush2.msra.mxu0 0.0
    %1302 = vmatprep.subr.mxu0 0.0
    %1303 = vmatpush2.msra.mxu0 0.0
    %1304 = vmatprep.subr.mxu0 0.0
    %1305 = vmatpush2.msra.mxu0 0.0
    %1306 = vmatprep.subr.mxu0 0.0
    %1307 = vmatpush2.msra.mxu0 0.0
    %1308 = vmatprep.subr.mxu0 0.0
    %1309 = vmatpush2.msra.mxu0 0.0
    %1310 = vmatprep.subr.mxu0 0.0
    %1311 = vmatpush2.msra.mxu0 0.0
    %1312 = vmatprep.subr.mxu0 0.0
    %1313 = vmatpush2.msra.mxu0 0.0
    %1314 = vmatprep.subr.mxu0 0.0
    %1315 = vmatpush2.msra.mxu0 0.0
    %1316 = vmatprep.subr.mxu0 0.0
    %1317 = vmatpush2.msra.mxu0 0.0
    %1318 = vmatprep.mubr.f32.mxu0 0.0
    %1319 = vmatmul.mubr.f32.gmra.mxu0 %v1249
    %v1320 = vpop.f32.mrf.mxu0
    %v1321 = vadd.f32 %v1246, %v1320
    %v1322 = vpop.f32.mrf.mxu0
    %1323 = vmatprep.mubr.f32.mxu0 0.0
    %1324 = vmatmul.mubr.f32.gmra.mxu0 %v1252
    %v1325 = vpop.f32.mrf.mxu0
    %v1326 = vadd.f32 %v1246, %v1325
    %v1327 = vpop.f32.mrf.mxu0
    %1328 = vdwg.mxu0
    %v1329 = vmax.f32 %v1321, 0.0
    %v1330 = vmax.f32 %v1326, 0.0
    %v1331 = vld [vmem:[%s10] sm:$0xff]
    %v1332 = vld [vmem:[%s10 + $0x8] sm:$0xff]
    %v1333 = vld [vmem:[%s10 + $0x10] sm:$0xff]
    %v1334 = vld [vmem:[%s10 + $0x18] sm:$0xff]
    %v1335 = vld [vmem:[%s10 + $0x20] sm:$0xff]
    %v1336 = vld [vmem:[%s10 + $0x28] sm:$0xff]
    %v1337 = vld [vmem:[%s10 + $0x30] sm:$0xff]
    %v1338 = vld [vmem:[%s10 + $0x38] sm:$0xff]
    %v1339 = vld [vmem:[%s11] sm:$0x1]
    %v1341 = vlaneseq
    %v1342 = vshrl.u32 %v1341, 7
    %v1343 = vsub.s32 0, %v1342
    %v1344 = vrot.slane %v1339, %v1343
    %v1347 = vsel %vm72, %v1329, 0
    %v1350 = vsel %vm72, %v1330, 0
    %1352 = vmatprep.subr.mxu0 0.0
    %1353 = vmatpush1.msra.mxu0 0.0
    %1354 = vmatprep.subr.mxu0 0.0
    %1355 = vmatpush1.msra.mxu0 0.0
    %1356 = vmatprep.subr.mxu0 0.0
    %1357 = vmatpush1.msra.mxu0 0.0
    %1358 = vmatprep.subr.mxu0 0.0
    %1359 = vmatpush1.msra.mxu0 0.0
    %1360 = vmatprep.subr.mxu0 0.0
    %1361 = vmatpush1.msra.mxu0 0.0
    %1362 = vmatprep.subr.mxu0 0.0
    %1363 = vmatpush1.msra.mxu0 0.0
    %1364 = vmatprep.subr.mxu0 0.0
    %1365 = vmatpush1.msra.mxu0 0.0
    %1366 = vmatprep.subr.mxu0 0.0
    %1367 = vmatpush1.msra.mxu0 0.0
    %1368 = vmatprep.subr.mxu0 0.0
    %1369 = vmatpush1.msra.mxu0 %v1338
    %1370 = vmatprep.subr.mxu0 0.0
    %1371 = vmatpush1.msra.mxu0 %v1337
    %1372 = vmatprep.subr.mxu0 0.0
    %1373 = vmatpush1.msra.mxu0 %v1336
    %1374 = vmatprep.subr.mxu0 0.0
    %1375 = vmatpush1.msra.mxu0 %v1335
    %1376 = vmatprep.subr.mxu0 0.0
    %1377 = vmatpush1.msra.mxu0 %v1334
    %1378 = vmatprep.subr.mxu0 0.0
    %1379 = vmatpush1.msra.mxu0 %v1333
    %1380 = vmatprep.subr.mxu0 0.0
    %1381 = vmatpush1.msra.mxu0 %v1332
    %1382 = vmatprep.subr.mxu0 0.0
    %1383 = vmatpush1.msra.mxu0 %v1331
    %1384 = vmatprep.subr.mxu0 0.0
    %1385 = vmatpush2.msra.mxu0 0.0
    %1386 = vmatprep.subr.mxu0 0.0
    %1387 = vmatpush2.msra.mxu0 0.0
    %1388 = vmatprep.subr.mxu0 0.0
    %1389 = vmatpush2.msra.mxu0 0.0
    %1390 = vmatprep.subr.mxu0 0.0
    %1391 = vmatpush2.msra.mxu0 0.0
    %1392 = vmatprep.subr.mxu0 0.0
    %1393 = vmatpush2.msra.mxu0 0.0
    %1394 = vmatprep.subr.mxu0 0.0
    %1395 = vmatpush2.msra.mxu0 0.0
    %1396 = vmatprep.subr.mxu0 0.0
    %1397 = vmatpush2.msra.mxu0 0.0
    %1398 = vmatprep.subr.mxu0 0.0
    %1399 = vmatpush2.msra.mxu0 0.0
    %1400 = vmatprep.subr.mxu0 0.0
    %1401 = vmatpush2.msra.mxu0 0.0
    %1402 = vmatprep.subr.mxu0 0.0
    %1403 = vmatpush2.msra.mxu0 0.0
    %1404 = vmatprep.subr.mxu0 0.0
    %1405 = vmatpush2.msra.mxu0 0.0
    %1406 = vmatprep.subr.mxu0 0.0
    %1407 = vmatpush2.msra.mxu0 0.0
    %1408 = vmatprep.subr.mxu0 0.0
    %1409 = vmatpush2.msra.mxu0 0.0
    %1410 = vmatprep.subr.mxu0 0.0
    %1411 = vmatpush2.msra.mxu0 0.0
    %1412 = vmatprep.subr.mxu0 0.0
    %1413 = vmatpush2.msra.mxu0 0.0
    %1414 = vmatprep.subr.mxu0 0.0
    %1415 = vmatpush2.msra.mxu0 0.0
    %1416 = vmatprep.mubr.f32.mxu0 0.0
    %1417 = vmatmul.mubr.f32.gmra.mxu0 %v1347
    %v1418 = vpop.f32.mrf.mxu0
    %v1419 = vadd.f32 %v1344, %v1418
    %v1420 = vpop.f32.mrf.mxu0
    %1421 = vmatprep.mubr.f32.mxu0 0.0
    %1422 = vmatmul.mubr.f32.gmra.mxu0 %v1350
    %v1423 = vpop.f32.mrf.mxu0
    %v1424 = vadd.f32 %v1344, %v1423
    %v1425 = vpop.f32.mrf.mxu0
    %1426 = vdwg.mxu0
    %v1427 = vadd.f32 %v1235, %v1419
    %v1428 = vadd.f32 %v1236, %v1424
    %v1429 = vsel %vm173, %v1427, 0.0
    %1430 = vadd.xlane.f32.xlu0 %v1429
    %v1431 = vpop.xlane.xlu0 %1430
    %v1432 = vsel %vm173, %v1428, 0.0
    %1433 = vadd.xlane.f32.xlu0 %v1432
    %v1434 = vpop.xlane.xlu0 %1433
    %v1435 = vmul.f32 %v1431, %v1204
    %v1436 = vmul.f32 %v1434, %v1204
    %v1437 = vsub.f32 %v1427, %v1435
    %v1438 = vsub.f32 %v1428, %v1436
    %v1439 = vmul.f32 %v1437, %v1437
    %v1440 = vmul.f32 %v1438, %v1438
    %v1441 = vsel %vm173, %v1439, 0.0
    %1442 = vadd.xlane.f32.xlu0 %v1441
    %v1443 = vpop.xlane.xlu0 %1442
    %v1444 = vsel %vm173, %v1440, 0.0
    %1445 = vadd.xlane.f32.xlu0 %v1444
    %v1446 = vpop.xlane.xlu0 %1445
    %v1447 = vmul.f32 %v1443, %v1204
    %v1448 = vmul.f32 %v1446, %v1204
    %v1449 = vadd.f32 %v1447, 1e-05
    %v1450 = vadd.f32 %v1448, 1e-05
    %v1451 = vrsqrt.pop %v1449
    %v1452 = vrsqrt.pop %v1450
    %v1453 = vmul.f32 %v1437, %v1451
    %v1454 = vmul.f32 %v1438, %v1452
    %v1455 = vlaneseq
    %v1456 = vshrl.u32 %v1455, 7
    %v1457 = vsub.s32 1, %v1456
    %v1458 = vrot.slane %v1194, %v1457
    %v1459 = vmul.f32 %v1453, %v1458
    %v1460 = vmul.f32 %v1454, %v1458
    %v1461 = vlaneseq
    %v1462 = vshrl.u32 %v1461, 7
    %v1463 = vsub.s32 1, %v1462
    %v1464 = vrot.slane %v1195, %v1463
    %v1465 = vadd.f32 %v1459, %v1464
    %v1466 = vadd.f32 %v1460, %v1464
    %s1467 = scalar_lea.vmem %s4, 32
    %v1468 = vld [vmem:[%s1467] sm:$0xff]
    %v1469 = vld [vmem:[%s1467 + $0x8] sm:$0xff]
    %v1470 = vld [vmem:[%s1467 + $0x10] sm:$0xff]
    %v1471 = vld [vmem:[%s1467 + $0x18] sm:$0xff]
    %s1472 = scalar_lea.vmem %s5, 1
    %v1473 = vld [vmem:[%s1472] sm:$0x1]
    %v1475 = vlaneseq
    %v1476 = vshrl.u32 %v1475, 7
    %v1477 = vsub.s32 0, %v1476
    %v1478 = vrot.slane %v1473, %v1477
    %v1481 = vsel %vm173, %v1465, 0
    %v1484 = vsel %vm173, %v1466, 0
    %1486 = vmatprep.subr.mxu0 0.0
    %1487 = vmatpush1.msra.mxu0 0.0
    %1488 = vmatprep.subr.mxu0 0.0
    %1489 = vmatpush1.msra.mxu0 0.0
    %1490 = vmatprep.subr.mxu0 0.0
    %1491 = vmatpush1.msra.mxu0 0.0
    %1492 = vmatprep.subr.mxu0 0.0
    %1493 = vmatpush1.msra.mxu0 0.0
    %1494 = vmatprep.subr.mxu0 0.0
    %1495 = vmatpush1.msra.mxu0 0.0
    %1496 = vmatprep.subr.mxu0 0.0
    %1497 = vmatpush1.msra.mxu0 0.0
    %1498 = vmatprep.subr.mxu0 0.0
    %1499 = vmatpush1.msra.mxu0 0.0
    %1500 = vmatprep.subr.mxu0 0.0
    %1501 = vmatpush1.msra.mxu0 0.0
    %1502 = vmatprep.subr.mxu0 0.0
    %1503 = vmatpush1.msra.mxu0 0.0
    %1504 = vmatprep.subr.mxu0 0.0
    %1505 = vmatpush1.msra.mxu0 0.0
    %1506 = vmatprep.subr.mxu0 0.0
    %1507 = vmatpush1.msra.mxu0 0.0
    %1508 = vmatprep.subr.mxu0 0.0
    %1509 = vmatpush1.msra.mxu0 0.0
    %1510 = vmatprep.subr.mxu0 0.0
    %1511 = vmatpush1.msra.mxu0 %v1471
    %1512 = vmatprep.subr.mxu0 0.0
    %1513 = vmatpush1.msra.mxu0 %v1470
    %1514 = vmatprep.subr.mxu0 0.0
    %1515 = vmatpush1.msra.mxu0 %v1469
    %1516 = vmatprep.subr.mxu0 0.0
    %1517 = vmatpush1.msra.mxu0 %v1468
    %1518 = vmatprep.subr.mxu0 0.0
    %1519 = vmatpush2.msra.mxu0 0.0
    %1520 = vmatprep.subr.mxu0 0.0
    %1521 = vmatpush2.msra.mxu0 0.0
    %1522 = vmatprep.subr.mxu0 0.0
    %1523 = vmatpush2.msra.mxu0 0.0
    %1524 = vmatprep.subr.mxu0 0.0
    %1525 = vmatpush2.msra.mxu0 0.0
    %1526 = vmatprep.subr.mxu0 0.0
    %1527 = vmatpush2.msra.mxu0 0.0
    %1528 = vmatprep.subr.mxu0 0.0
    %1529 = vmatpush2.msra.mxu0 0.0
    %1530 = vmatprep.subr.mxu0 0.0
    %1531 = vmatpush2.msra.mxu0 0.0
    %1532 = vmatprep.subr.mxu0 0.0
    %1533 = vmatpush2.msra.mxu0 0.0
    %1534 = vmatprep.subr.mxu0 0.0
    %1535 = vmatpush2.msra.mxu0 0.0
    %1536 = vmatprep.subr.mxu0 0.0
    %1537 = vmatpush2.msra.mxu0 0.0
    %1538 = vmatprep.subr.mxu0 0.0
    %1539 = vmatpush2.msra.mxu0 0.0
    %1540 = vmatprep.subr.mxu0 0.0
    %1541 = vmatpush2.msra.mxu0 0.0
    %1542 = vmatprep.subr.mxu0 0.0
    %1543 = vmatpush2.msra.mxu0 0.0
    %1544 = vmatprep.subr.mxu0 0.0
    %1545 = vmatpush2.msra.mxu0 0.0
    %1546 = vmatprep.subr.mxu0 0.0
    %1547 = vmatpush2.msra.mxu0 0.0
    %1548 = vmatprep.subr.mxu0 0.0
    %1549 = vmatpush2.msra.mxu0 0.0
    %1550 = vmatprep.mubr.f32.mxu0 0.0
    %1551 = vmatmul.mubr.f32.gmra.mxu0 %v1481
    %v1552 = vpop.f32.mrf.mxu0
    %v1553 = vadd.f32 %v1478, %v1552
    %v1554 = vpop.f32.mrf.mxu0
    %1555 = vmatprep.mubr.f32.mxu0 0.0
    %1556 = vmatmul.mubr.f32.gmra.mxu0 %v1484
    %v1557 = vpop.f32.mrf.mxu0
    %v1558 = vadd.f32 %v1478, %v1557
    %v1559 = vpop.f32.mrf.mxu0
    %1560 = vdwg.mxu0
    %1563 = vrot.lane.b32.xlu0 %v1553, 96
    %v1564 = vpop.permute.xlu0 %1563
    %1565 = vrot.lane.b32.xlu0 %v1558, 96
    %v1566 = vpop.permute.xlu0 %1565
    %v1567 = vsel %vm261, %v1553, 0
    %v1569 = vsel %vm261, %v1558, 0
    %v1571 = vsel %vm261, %v1564, 0
    %v1573 = vsel %vm261, %v1566, 0
    %1575 = vmatprep.subr.mxu0 0.0
    %1576 = vmatpush1.xpose.msra.mxu0 0.0
    %1577 = vmatprep.subr.mxu0 0.0
    %1578 = vmatpush1.xpose.msra.mxu0 0.0
    %1579 = vmatprep.subr.mxu0 0.0
    %1580 = vmatpush1.xpose.msra.mxu0 0.0
    %1581 = vmatprep.subr.mxu0 0.0
    %1582 = vmatpush1.xpose.msra.mxu0 0.0
    %1583 = vmatprep.subr.mxu0 0.0
    %1584 = vmatpush1.xpose.msra.mxu0 0.0
    %1585 = vmatprep.subr.mxu0 0.0
    %1586 = vmatpush1.xpose.msra.mxu0 0.0
    %1587 = vmatprep.subr.mxu0 0.0
    %1588 = vmatpush1.xpose.msra.mxu0 0.0
    %1589 = vmatprep.subr.mxu0 0.0
    %1590 = vmatpush1.xpose.msra.mxu0 0.0
    %1591 = vmatprep.subr.mxu0 0.0
    %1592 = vmatpush1.xpose.msra.mxu0 0.0
    %1593 = vmatprep.subr.mxu0 0.0
    %1594 = vmatpush1.xpose.msra.mxu0 0.0
    %1595 = vmatprep.subr.mxu0 0.0
    %1596 = vmatpush1.xpose.msra.mxu0 0.0
    %1597 = vmatprep.subr.mxu0 0.0
    %1598 = vmatpush1.xpose.msra.mxu0 0.0
    %1599 = vmatprep.subr.mxu0 0.0
    %1600 = vmatpush1.xpose.msra.mxu0 0.0
    %1601 = vmatprep.subr.mxu0 0.0
    %1602 = vmatpush1.xpose.msra.mxu0 0.0
    %1603 = vmatprep.subr.mxu0 0.0
    %1604 = vmatpush1.xpose.msra.mxu0 %v1573
    %1605 = vmatprep.subr.mxu0 0.0
    %1606 = vmatpush1.xpose.msra.mxu0 %v1571
    %1607 = vmatprep.subr.mxu0 0.0
    %1608 = vmatpush2.xpose.msra.mxu0 0.0
    %1609 = vmatprep.subr.mxu0 0.0
    %1610 = vmatpush2.xpose.msra.mxu0 0.0
    %1611 = vmatprep.subr.mxu0 0.0
    %1612 = vmatpush2.xpose.msra.mxu0 0.0
    %1613 = vmatprep.subr.mxu0 0.0
    %1614 = vmatpush2.xpose.msra.mxu0 0.0
    %1615 = vmatprep.subr.mxu0 0.0
    %1616 = vmatpush2.xpose.msra.mxu0 0.0
    %1617 = vmatprep.subr.mxu0 0.0
    %1618 = vmatpush2.xpose.msra.mxu0 0.0
    %1619 = vmatprep.subr.mxu0 0.0
    %1620 = vmatpush2.xpose.msra.mxu0 0.0
    %1621 = vmatprep.subr.mxu0 0.0
    %1622 = vmatpush2.xpose.msra.mxu0 0.0
    %1623 = vmatprep.subr.mxu0 0.0
    %1624 = vmatpush2.xpose.msra.mxu0 0.0
    %1625 = vmatprep.subr.mxu0 0.0
    %1626 = vmatpush2.xpose.msra.mxu0 0.0
    %1627 = vmatprep.subr.mxu0 0.0
    %1628 = vmatpush2.xpose.msra.mxu0 0.0
    %1629 = vmatprep.subr.mxu0 0.0
    %1630 = vmatpush2.xpose.msra.mxu0 0.0
    %1631 = vmatprep.subr.mxu0 0.0
    %1632 = vmatpush2.xpose.msra.mxu0 0.0
    %1633 = vmatprep.subr.mxu0 0.0
    %1634 = vmatpush2.xpose.msra.mxu0 0.0
    %1635 = vmatprep.subr.mxu0 0.0
    %1636 = vmatpush2.xpose.msra.mxu0 0.0
    %1637 = vmatprep.subr.mxu0 0.0
    %1638 = vmatpush2.xpose.msra.mxu0 0.0
    %1639 = vmatprep.mubr.f32.mxu0 0.0
    %1640 = vmatmul.mubr.f32.gmra.mxu0 %v1567
    %v1641 = vpop.f32.mrf.mxu0
    %v1642 = vadd.f32 0.0, %v1641
    %v1643 = vpop.f32.mrf.mxu0
    %1644 = vmatprep.mubr.f32.mxu0 0.0
    %1645 = vmatmul.mubr.f32.gmra.mxu0 %v1569
    %v1646 = vpop.f32.mrf.mxu0
    %v1647 = vadd.f32 0.0, %v1646
    %v1648 = vpop.f32.mrf.mxu0
    %1649 = vdwg.mxu0
    %v1650 = vmul.f32 %v1642, 0.35355338
    %v1651 = vmul.f32 %v1647, 0.35355338
    %v1652 = vadd.f32 %v1650, %v160
    %v1653 = vadd.f32 %v1651, %v161
    %v1654 = vsel %vm349, %v1652, -inf
    %1655 = vmax.xlane.f32.xlu0 %v1654
    %v1656 = vpop.xlane.xlu0 %1655
    %v1657 = vsel %vm349, %v1653, -inf
    %1658 = vmax.xlane.f32.xlu0 %v1657
    %v1659 = vpop.xlane.xlu0 %1658
    %v1660 = vsub.f32 %v1652, %v1656
    %v1661 = vsub.f32 %v1653, %v1659
    %v1662 = vmul.f32 %v1660, 1.442695
    %v1663 = vpow.pop %v1662
    %v1664 = vmul.f32 %v1661, 1.442695
    %v1665 = vpow.pop %v1664
    %v1666 = vsel %vm349, %v1663, 0.0
    %1667 = vadd.xlane.f32.xlu0 %v1666
    %v1668 = vpop.xlane.xlu0 %1667
    %v1669 = vsel %vm349, %v1665, 0.0
    %1670 = vadd.xlane.f32.xlu0 %v1669
    %v1671 = vpop.xlane.xlu0 %1670
    %v1672 = vrcp.pop %v1668
    %v1673 = vrcp.pop %v1671
    %v1674 = vmul.f32 %v1663, %v1672
    %v1675 = vmul.f32 %v1665, %v1673
    %1676 = vrot.lane.b32.xlu0 %v1553, 64
    %v1677 = vpop.permute.xlu0 %1676
    %1678 = vrot.lane.b32.xlu0 %v1558, 64
    %v1679 = vpop.permute.xlu0 %1678
    %v1683 = vsel %vm349, %v1674, 0
    %v1686 = vsel %vm349, %v1675, 0
    %1688 = vmatprep.subr.mxu0 0.0
    %1689 = vmatpush1.msra.mxu0 0.0
    %1690 = vmatprep.subr.mxu0 0.0
    %1691 = vmatpush1.msra.mxu0 0.0
    %1692 = vmatprep.subr.mxu0 0.0
    %1693 = vmatpush1.msra.mxu0 0.0
    %1694 = vmatprep.subr.mxu0 0.0
    %1695 = vmatpush1.msra.mxu0 0.0
    %1696 = vmatprep.subr.mxu0 0.0
    %1697 = vmatpush1.msra.mxu0 0.0
    %1698 = vmatprep.subr.mxu0 0.0
    %1699 = vmatpush1.msra.mxu0 0.0
    %1700 = vmatprep.subr.mxu0 0.0
    %1701 = vmatpush1.msra.mxu0 0.0
    %1702 = vmatprep.subr.mxu0 0.0
    %1703 = vmatpush1.msra.mxu0 0.0
    %1704 = vmatprep.subr.mxu0 0.0
    %1705 = vmatpush1.msra.mxu0 0.0
    %1706 = vmatprep.subr.mxu0 0.0
    %1707 = vmatpush1.msra.mxu0 0.0
    %1708 = vmatprep.subr.mxu0 0.0
    %1709 = vmatpush1.msra.mxu0 0.0
    %1710 = vmatprep.subr.mxu0 0.0
    %1711 = vmatpush1.msra.mxu0 0.0
    %1712 = vmatprep.subr.mxu0 0.0
    %1713 = vmatpush1.msra.mxu0 0.0
    %1714 = vmatprep.subr.mxu0 0.0
    %1715 = vmatpush1.msra.mxu0 0.0
    %1716 = vmatprep.subr.mxu0 0.0
    %1717 = vmatpush1.msra.mxu0 %v1679
    %1718 = vmatprep.subr.mxu0 0.0
    %1719 = vmatpush1.msra.mxu0 %v1677
    %1720 = vmatprep.subr.mxu0 0.0
    %1721 = vmatpush2.msra.mxu0 0.0
    %1722 = vmatprep.subr.mxu0 0.0
    %1723 = vmatpush2.msra.mxu0 0.0
    %1724 = vmatprep.subr.mxu0 0.0
    %1725 = vmatpush2.msra.mxu0 0.0
    %1726 = vmatprep.subr.mxu0 0.0
    %1727 = vmatpush2.msra.mxu0 0.0
    %1728 = vmatprep.subr.mxu0 0.0
    %1729 = vmatpush2.msra.mxu0 0.0
    %1730 = vmatprep.subr.mxu0 0.0
    %1731 = vmatpush2.msra.mxu0 0.0
    %1732 = vmatprep.subr.mxu0 0.0
    %1733 = vmatpush2.msra.mxu0 0.0
    %1734 = vmatprep.subr.mxu0 0.0
    %1735 = vmatpush2.msra.mxu0 0.0
    %1736 = vmatprep.subr.mxu0 0.0
    %1737 = vmatpush2.msra.mxu0 0.0
    %1738 = vmatprep.subr.mxu0 0.0
    %1739 = vmatpush2.msra.mxu0 0.0
    %1740 = vmatprep.subr.mxu0 0.0
    %1741 = vmatpush2.msra.mxu0 0.0
    %1742 = vmatprep.subr.mxu0 0.0
    %1743 = vmatpush2.msra.mxu0 0.0
    %1744 = vmatprep.subr.mxu0 0.0
    %1745 = vmatpush2.msra.mxu0 0.0
    %1746 = vmatprep.subr.mxu0 0.0
    %1747 = vmatpush2.msra.mxu0 0.0
    %1748 = vmatprep.subr.mxu0 0.0
    %1749 = vmatpush2.msra.mxu0 0.0
    %1750 = vmatprep.subr.mxu0 0.0
    %1751 = vmatpush2.msra.mxu0 0.0
    %1752 = vmatprep.mubr.f32.mxu0 0.0
    %1753 = vmatmul.mubr.f32.gmra.mxu0 %v1683
    %v1754 = vpop.f32.mrf.mxu0
    %v1755 = vadd.f32 0.0, %v1754
    %v1756 = vpop.f32.mrf.mxu0
    %1757 = vmatprep.mubr.f32.mxu0 0.0
    %1758 = vmatmul.mubr.f32.gmra.mxu0 %v1686
    %v1759 = vpop.f32.mrf.mxu0
    %v1760 = vadd.f32 0.0, %v1759
    %v1761 = vpop.f32.mrf.mxu0
    %1762 = vdwg.mxu0
    %1763 = vrot.lane.b32.xlu0 %v1553, 120
    %v1764 = vpop.permute.xlu0 %1763
    %1765 = vrot.lane.b32.xlu0 %v1558, 120
    %v1766 = vpop.permute.xlu0 %1765
    %1767 = vrot.lane.b32.xlu0 %v1553, 88
    %v1768 = vpop.permute.xlu0 %1767
    %1769 = vrot.lane.b32.xlu0 %v1558, 88
    %v1770 = vpop.permute.xlu0 %1769
    %v1771 = vsel %vm261, %v1764, 0
    %v1773 = vsel %vm261, %v1766, 0
    %v1775 = vsel %vm261, %v1768, 0
    %v1777 = vsel %vm261, %v1770, 0
    %1779 = vmatprep.subr.mxu0 0.0
    %1780 = vmatpush1.xpose.msra.mxu0 0.0
    %1781 = vmatprep.subr.mxu0 0.0
    %1782 = vmatpush1.xpose.msra.mxu0 0.0
    %1783 = vmatprep.subr.mxu0 0.0
    %1784 = vmatpush1.xpose.msra.mxu0 0.0
    %1785 = vmatprep.subr.mxu0 0.0
    %1786 = vmatpush1.xpose.msra.mxu0 0.0
    %1787 = vmatprep.subr.mxu0 0.0
    %1788 = vmatpush1.xpose.msra.mxu0 0.0
    %1789 = vmatprep.subr.mxu0 0.0
    %1790 = vmatpush1.xpose.msra.mxu0 0.0
    %1791 = vmatprep.subr.mxu0 0.0
    %1792 = vmatpush1.xpose.msra.mxu0 0.0
    %1793 = vmatprep.subr.mxu0 0.0
    %1794 = vmatpush1.xpose.msra.mxu0 0.0
    %1795 = vmatprep.subr.mxu0 0.0
    %1796 = vmatpush1.xpose.msra.mxu0 0.0
    %1797 = vmatprep.subr.mxu0 0.0
    %1798 = vmatpush1.xpose.msra.mxu0 0.0
    %1799 = vmatprep.subr.mxu0 0.0
    %1800 = vmatpush1.xpose.msra.mxu0 0.0
    %1801 = vmatprep.subr.mxu0 0.0
    %1802 = vmatpush1.xpose.msra.mxu0 0.0
    %1803 = vmatprep.subr.mxu0 0.0
    %1804 = vmatpush1.xpose.msra.mxu0 0.0
    %1805 = vmatprep.subr.mxu0 0.0
    %1806 = vmatpush1.xpose.msra.mxu0 0.0
    %1807 = vmatprep.subr.mxu0 0.0
    %1808 = vmatpush1.xpose.msra.mxu0 %v1777
    %1809 = vmatprep.subr.mxu0 0.0
    %1810 = vmatpush1.xpose.msra.mxu0 %v1775
    %1811 = vmatprep.subr.mxu0 0.0
    %1812 = vmatpush2.xpose.msra.mxu0 0.0
    %1813 = vmatprep.subr.mxu0 0.0
    %1814 = vmatpush2.xpose.msra.mxu0 0.0
    %1815 = vmatprep.subr.mxu0 0.0
    %1816 = vmatpush2.xpose.msra.mxu0 0.0
    %1817 = vmatprep.subr.mxu0 0.0
    %1818 = vmatpush2.xpose.msra.mxu0 0.0
    %1819 = vmatprep.subr.mxu0 0.0
    %1820 = vmatpush2.xpose.msra.mxu0 0.0
    %1821 = vmatprep.subr.mxu0 0.0
    %1822 = vmatpush2.xpose.msra.mxu0 0.0
    %1823 = vmatprep.subr.mxu0 0.0
    %1824 = vmatpush2.xpose.msra.mxu0 0.0
    %1825 = vmatprep.subr.mxu0 0.0
    %1826 = vmatpush2.xpose.msra.mxu0 0.0
    %1827 = vmatprep.subr.mxu0 0.0
    %1828 = vmatpush2.xpose.msra.mxu0 0.0
    %1829 = vmatprep.subr.mxu0 0.0
    %1830 = vmatpush2.xpose.msra.mxu0 0.0
    %1831 = vmatprep.subr.mxu0 0.0
    %1832 = vmatpush2.xpose.msra.mxu0 0.0
    %1833 = vmatprep.subr.mxu0 0.0
    %1834 = vmatpush2.xpose.msra.mxu0 0.0
    %1835 = vmatprep.subr.mxu0 0.0
    %1836 = vmatpush2.xpose.msra.mxu0 0.0
    %1837 = vmatprep.subr.mxu0 0.0
    %1838 = vmatpush2.xpose.msra.mxu0 0.0
    %1839 = vmatprep.subr.mxu0 0.0
    %1840 = vmatpush2.xpose.msra.mxu0 0.0
    %1841 = vmatprep.subr.mxu0 0.0
    %1842 = vmatpush2.xpose.msra.mxu0 0.0
    %1843 = vmatprep.mubr.f32.mxu0 0.0
    %1844 = vmatmul.mubr.f32.gmra.mxu0 %v1771
    %v1845 = vpop.f32.mrf.mxu0
    %v1846 = vadd.f32 0.0, %v1845
    %v1847 = vpop.f32.mrf.mxu0
    %1848 = vmatprep.mubr.f32.mxu0 0.0
    %1849 = vmatmul.mubr.f32.gmra.mxu0 %v1773
    %v1850 = vpop.f32.mrf.mxu0
    %v1851 = vadd.f32 0.0, %v1850
    %v1852 = vpop.f32.mrf.mxu0
    %1853 = vdwg.mxu0
    %v1854 = vmul.f32 %v1846, 0.35355338
    %v1855 = vmul.f32 %v1851, 0.35355338
    %v1856 = vadd.f32 %v1854, %v160
    %v1857 = vadd.f32 %v1855, %v161
    %v1858 = vsel %vm349, %v1856, -inf
    %1859 = vmax.xlane.f32.xlu0 %v1858
    %v1860 = vpop.xlane.xlu0 %1859
    %v1861 = vsel %vm349, %v1857, -inf
    %1862 = vmax.xlane.f32.xlu0 %v1861
    %v1863 = vpop.xlane.xlu0 %1862
    %v1864 = vsub.f32 %v1856, %v1860
    %v1865 = vsub.f32 %v1857, %v1863
    %v1866 = vmul.f32 %v1864, 1.442695
    %v1867 = vpow.pop %v1866
    %v1868 = vmul.f32 %v1865, 1.442695
    %v1869 = vpow.pop %v1868
    %v1870 = vsel %vm349, %v1867, 0.0
    %1871 = vadd.xlane.f32.xlu0 %v1870
    %v1872 = vpop.xlane.xlu0 %1871
    %v1873 = vsel %vm349, %v1869, 0.0
    %1874 = vadd.xlane.f32.xlu0 %v1873
    %v1875 = vpop.xlane.xlu0 %1874
    %v1876 = vrcp.pop %v1872
    %v1877 = vrcp.pop %v1875
    %v1878 = vmul.f32 %v1867, %v1876
    %v1879 = vmul.f32 %v1869, %v1877
    %1880 = vrot.lane.b32.xlu0 %v1553, 56
    %v1881 = vpop.permute.xlu0 %1880
    %1882 = vrot.lane.b32.xlu0 %v1558, 56
    %v1883 = vpop.permute.xlu0 %1882
    %v1887 = vsel %vm349, %v1878, 0
    %v1890 = vsel %vm349, %v1879, 0
    %1892 = vmatprep.subr.mxu0 0.0
    %1893 = vmatpush1.msra.mxu0 0.0
    %1894 = vmatprep.subr.mxu0 0.0
    %1895 = vmatpush1.msra.mxu0 0.0
    %1896 = vmatprep.subr.mxu0 0.0
    %1897 = vmatpush1.msra.mxu0 0.0
    %1898 = vmatprep.subr.mxu0 0.0
    %1899 = vmatpush1.msra.mxu0 0.0
    %1900 = vmatprep.subr.mxu0 0.0
    %1901 = vmatpush1.msra.mxu0 0.0
    %1902 = vmatprep.subr.mxu0 0.0
    %1903 = vmatpush1.msra.mxu0 0.0
    %1904 = vmatprep.subr.mxu0 0.0
    %1905 = vmatpush1.msra.mxu0 0.0
    %1906 = vmatprep.subr.mxu0 0.0
    %1907 = vmatpush1.msra.mxu0 0.0
    %1908 = vmatprep.subr.mxu0 0.0
    %1909 = vmatpush1.msra.mxu0 0.0
    %1910 = vmatprep.subr.mxu0 0.0
    %1911 = vmatpush1.msra.mxu0 0.0
    %1912 = vmatprep.subr.mxu0 0.0
    %1913 = vmatpush1.msra.mxu0 0.0
    %1914 = vmatprep.subr.mxu0 0.0
    %1915 = vmatpush1.msra.mxu0 0.0
    %1916 = vmatprep.subr.mxu0 0.0
    %1917 = vmatpush1.msra.mxu0 0.0
    %1918 = vmatprep.subr.mxu0 0.0
    %1919 = vmatpush1.msra.mxu0 0.0
    %1920 = vmatprep.subr.mxu0 0.0
    %1921 = vmatpush1.msra.mxu0 %v1883
    %1922 = vmatprep.subr.mxu0 0.0
    %1923 = vmatpush1.msra.mxu0 %v1881
    %1924 = vmatprep.subr.mxu0 0.0
    %1925 = vmatpush2.msra.mxu0 0.0
    %1926 = vmatprep.subr.mxu0 0.0
    %1927 = vmatpush2.msra.mxu0 0.0
    %1928 = vmatprep.subr.mxu0 0.0
    %1929 = vmatpush2.msra.mxu0 0.0
    %1930 = vmatprep.subr.mxu0 0.0
    %1931 = vmatpush2.msra.mxu0 0.0
    %1932 = vmatprep.subr.mxu0 0.0
    %1933 = vmatpush2.msra.mxu0 0.0
    %1934 = vmatprep.subr.mxu0 0.0
    %1935 = vmatpush2.msra.mxu0 0.0
    %1936 = vmatprep.subr.mxu0 0.0
    %1937 = vmatpush2.msra.mxu0 0.0
    %1938 = vmatprep.subr.mxu0 0.0
    %1939 = vmatpush2.msra.mxu0 0.0
    %1940 = vmatprep.subr.mxu0 0.0
    %1941 = vmatpush2.msra.mxu0 0.0
    %1942 = vmatprep.subr.mxu0 0.0
    %1943 = vmatpush2.msra.mxu0 0.0
    %1944 = vmatprep.subr.mxu0 0.0
    %1945 = vmatpush2.msra.mxu0 0.0
    %1946 = vmatprep.subr.mxu0 0.0
    %1947 = vmatpush2.msra.mxu0 0.0
    %1948 = vmatprep.subr.mxu0 0.0
    %1949 = vmatpush2.msra.mxu0 0.0
    %1950 = vmatprep.subr.mxu0 0.0
    %1951 = vmatpush2.msra.mxu0 0.0
    %1952 = vmatprep.subr.mxu0 0.0
    %1953 = vmatpush2.msra.mxu0 0.0
    %1954 = vmatprep.subr.mxu0 0.0
    %1955 = vmatpush2.msra.mxu0 0.0
    %1956 = vmatprep.mubr.f32.mxu0 0.0
    %1957 = vmatmul.mubr.f32.gmra.mxu0 %v1887
    %v1958 = vpop.f32.mrf.mxu0
    %v1959 = vadd.f32 0.0, %v1958
    %v1960 = vpop.f32.mrf.mxu0
    %1961 = vmatprep.mubr.f32.mxu0 0.0
    %1962 = vmatmul.mubr.f32.gmra.mxu0 %v1890
    %v1963 = vpop.f32.mrf.mxu0
    %v1964 = vadd.f32 0.0, %v1963
    %v1965 = vpop.f32.mrf.mxu0
    %1966 = vdwg.mxu0
    %1967 = vrot.lane.b32.xlu0 %v1553, 112
    %v1968 = vpop.permute.xlu0 %1967
    %1969 = vrot.lane.b32.xlu0 %v1558, 112
    %v1970 = vpop.permute.xlu0 %1969
    %1971 = vrot.lane.b32.xlu0 %v1553, 80
    %v1972 = vpop.permute.xlu0 %1971
    %1973 = vrot.lane.b32.xlu0 %v1558, 80
    %v1974 = vpop.permute.xlu0 %1973
    %v1975 = vsel %vm261, %v1968, 0
    %v1977 = vsel %vm261, %v1970, 0
    %v1979 = vsel %vm261, %v1972, 0
    %v1981 = vsel %vm261, %v1974, 0
    %1983 = vmatprep.subr.mxu0 0.0
    %1984 = vmatpush1.xpose.msra.mxu0 0.0
    %1985 = vmatprep.subr.mxu0 0.0
    %1986 = vmatpush1.xpose.msra.mxu0 0.0
    %1987 = vmatprep.subr.mxu0 0.0
    %1988 = vmatpush1.xpose.msra.mxu0 0.0
    %1989 = vmatprep.subr.mxu0 0.0
    %1990 = vmatpush1.xpose.msra.mxu0 0.0
    %1991 = vmatprep.subr.mxu0 0.0
    %1992 = vmatpush1.xpose.msra.mxu0 0.0
    %1993 = vmatprep.subr.mxu0 0.0
    %1994 = vmatpush1.xpose.msra.mxu0 0.0
    %1995 = vmatprep.subr.mxu0 0.0
    %1996 = vmatpush1.xpose.msra.mxu0 0.0
    %1997 = vmatprep.subr.mxu0 0.0
    %1998 = vmatpush1.xpose.msra.mxu0 0.0
    %1999 = vmatprep.subr.mxu0 0.0
    %2000 = vmatpush1.xpose.msra.mxu0 0.0
    %2001 = vmatprep.subr.mxu0 0.0
    %2002 = vmatpush1.xpose.msra.mxu0 0.0
    %2003 = vmatprep.subr.mxu0 0.0
    %2004 = vmatpush1.xpose.msra.mxu0 0.0
    %2005 = vmatprep.subr.mxu0 0.0
    %2006 = vmatpush1.xpose.msra.mxu0 0.0
    %2007 = vmatprep.subr.mxu0 0.0
    %2008 = vmatpush1.xpose.msra.mxu0 0.0
    %2009 = vmatprep.subr.mxu0 0.0
    %2010 = vmatpush1.xpose.msra.mxu0 0.0
    %2011 = vmatprep.subr.mxu0 0.0
    %2012 = vmatpush1.xpose.msra.mxu0 %v1981
    %2013 = vmatprep.subr.mxu0 0.0
    %2014 = vmatpush1.xpose.msra.mxu0 %v1979
    %2015 = vmatprep.subr.mxu0 0.0
    %2016 = vmatpush2.xpose.msra.mxu0 0.0
    %2017 = vmatprep.subr.mxu0 0.0
    %2018 = vmatpush2.xpose.msra.mxu0 0.0
    %2019 = vmatprep.subr.mxu0 0.0
    %2020 = vmatpush2.xpose.msra.mxu0 0.0
    %2021 = vmatprep.subr.mxu0 0.0
    %2022 = vmatpush2.xpose.msra.mxu0 0.0
    %2023 = vmatprep.subr.mxu0 0.0
    %2024 = vmatpush2.xpose.msra.mxu0 0.0
    %2025 = vmatprep.subr.mxu0 0.0
    %2026 = vmatpush2.xpose.msra.mxu0 0.0
    %2027 = vmatprep.subr.mxu0 0.0
    %2028 = vmatpush2.xpose.msra.mxu0 0.0
    %2029 = vmatprep.subr.mxu0 0.0
    %2030 = vmatpush2.xpose.msra.mxu0 0.0
    %2031 = vmatprep.subr.mxu0 0.0
    %2032 = vmatpush2.xpose.msra.mxu0 0.0
    %2033 = vmatprep.subr.mxu0 0.0
    %2034 = vmatpush2.xpose.msra.mxu0 0.0
    %2035 = vmatprep.subr.mxu0 0.0
    %2036 = vmatpush2.xpose.msra.mxu0 0.0
    %2037 = vmatprep.subr.mxu0 0.0
    %2038 = vmatpush2.xpose.msra.mxu0 0.0
    %2039 = vmatprep.subr.mxu0 0.0
    %2040 = vmatpush2.xpose.msra.mxu0 0.0
    %2041 = vmatprep.subr.mxu0 0.0
    %2042 = vmatpush2.xpose.msra.mxu0 0.0
    %2043 = vmatprep.subr.mxu0 0.0
    %2044 = vmatpush2.xpose.msra.mxu0 0.0
    %2045 = vmatprep.subr.mxu0 0.0
    %2046 = vmatpush2.xpose.msra.mxu0 0.0
    %2047 = vmatprep.mubr.f32.mxu0 0.0
    %2048 = vmatmul.mubr.f32.gmra.mxu0 %v1975
    %v2049 = vpop.f32.mrf.mxu0
    %v2050 = vadd.f32 0.0, %v2049
    %v2051 = vpop.f32.mrf.mxu0
    %2052 = vmatprep.mubr.f32.mxu0 0.0
    %2053 = vmatmul.mubr.f32.gmra.mxu0 %v1977
    %v2054 = vpop.f32.mrf.mxu0
    %v2055 = vadd.f32 0.0, %v2054
    %v2056 = vpop.f32.mrf.mxu0
    %2057 = vdwg.mxu0
    %v2058 = vmul.f32 %v2050, 0.35355338
    %v2059 = vmul.f32 %v2055, 0.35355338
    %v2060 = vadd.f32 %v2058, %v160
    %v2061 = vadd.f32 %v2059, %v161
    %v2062 = vsel %vm349, %v2060, -inf
    %2063 = vmax.xlane.f32.xlu0 %v2062
    %v2064 = vpop.xlane.xlu0 %2063
    %v2065 = vsel %vm349, %v2061, -inf
    %2066 = vmax.xlane.f32.xlu0 %v2065
    %v2067 = vpop.xlane.xlu0 %2066
    %v2068 = vsub.f32 %v2060, %v2064
    %v2069 = vsub.f32 %v2061, %v2067
    %v2070 = vmul.f32 %v2068, 1.442695
    %v2071 = vpow.pop %v2070
    %v2072 = vmul.f32 %v2069, 1.442695
    %v2073 = vpow.pop %v2072
    %v2074 = vsel %vm349, %v2071, 0.0
    %2075 = vadd.xlane.f32.xlu0 %v2074
    %v2076 = vpop.xlane.xlu0 %2075
    %v2077 = vsel %vm349, %v2073, 0.0
    %2078 = vadd.xlane.f32.xlu0 %v2077
    %v2079 = vpop.xlane.xlu0 %2078
    %v2080 = vrcp.pop %v2076
    %v2081 = vrcp.pop %v2079
    %v2082 = vmul.f32 %v2071, %v2080
    %v2083 = vmul.f32 %v2073, %v2081
    %2084 = vrot.lane.b32.xlu0 %v1553, 48
    %v2085 = vpop.permute.xlu0 %2084
    %2086 = vrot.lane.b32.xlu0 %v1558, 48
    %v2087 = vpop.permute.xlu0 %2086
    %v2091 = vsel %vm349, %v2082, 0
    %v2094 = vsel %vm349, %v2083, 0
    %2096 = vmatprep.subr.mxu0 0.0
    %2097 = vmatpush1.msra.mxu0 0.0
    %2098 = vmatprep.subr.mxu0 0.0
    %2099 = vmatpush1.msra.mxu0 0.0
    %2100 = vmatprep.subr.mxu0 0.0
    %2101 = vmatpush1.msra.mxu0 0.0
    %2102 = vmatprep.subr.mxu0 0.0
    %2103 = vmatpush1.msra.mxu0 0.0
    %2104 = vmatprep.subr.mxu0 0.0
    %2105 = vmatpush1.msra.mxu0 0.0
    %2106 = vmatprep.subr.mxu0 0.0
    %2107 = vmatpush1.msra.mxu0 0.0
    %2108 = vmatprep.subr.mxu0 0.0
    %2109 = vmatpush1.msra.mxu0 0.0
    %2110 = vmatprep.subr.mxu0 0.0
    %2111 = vmatpush1.msra.mxu0 0.0
    %2112 = vmatprep.subr.mxu0 0.0
    %2113 = vmatpush1.msra.mxu0 0.0
    %2114 = vmatprep.subr.mxu0 0.0
    %2115 = vmatpush1.msra.mxu0 0.0
    %2116 = vmatprep.subr.mxu0 0.0
    %2117 = vmatpush1.msra.mxu0 0.0
    %2118 = vmatprep.subr.mxu0 0.0
    %2119 = vmatpush1.msra.mxu0 0.0
    %2120 = vmatprep.subr.mxu0 0.0
    %2121 = vmatpush1.msra.mxu0 0.0
    %2122 = vmatprep.subr.mxu0 0.0
    %2123 = vmatpush1.msra.mxu0 0.0
    %2124 = vmatprep.subr.mxu0 0.0
    %2125 = vmatpush1.msra.mxu0 %v2087
    %2126 = vmatprep.subr.mxu0 0.0
    %2127 = vmatpush1.msra.mxu0 %v2085
    %2128 = vmatprep.subr.mxu0 0.0
    %2129 = vmatpush2.msra.mxu0 0.0
    %2130 = vmatprep.subr.mxu0 0.0
    %2131 = vmatpush2.msra.mxu0 0.0
    %2132 = vmatprep.subr.mxu0 0.0
    %2133 = vmatpush2.msra.mxu0 0.0
    %2134 = vmatprep.subr.mxu0 0.0
    %2135 = vmatpush2.msra.mxu0 0.0
    %2136 = vmatprep.subr.mxu0 0.0
    %2137 = vmatpush2.msra.mxu0 0.0
    %2138 = vmatprep.subr.mxu0 0.0
    %2139 = vmatpush2.msra.mxu0 0.0
    %2140 = vmatprep.subr.mxu0 0.0
    %2141 = vmatpush2.msra.mxu0 0.0
    %2142 = vmatprep.subr.mxu0 0.0
    %2143 = vmatpush2.msra.mxu0 0.0
    %2144 = vmatprep.subr.mxu0 0.0
    %2145 = vmatpush2.msra.mxu0 0.0
    %2146 = vmatprep.subr.mxu0 0.0
    %2147 = vmatpush2.msra.mxu0 0.0
    %2148 = vmatprep.subr.mxu0 0.0
    %2149 = vmatpush2.msra.mxu0 0.0
    %2150 = vmatprep.subr.mxu0 0.0
    %2151 = vmatpush2.msra.mxu0 0.0
    %2152 = vmatprep.subr.mxu0 0.0
    %2153 = vmatpush2.msra.mxu0 0.0
    %2154 = vmatprep.subr.mxu0 0.0
    %2155 = vmatpush2.msra.mxu0 0.0
    %2156 = vmatprep.subr.mxu0 0.0
    %2157 = vmatpush2.msra.mxu0 0.0
    %2158 = vmatprep.subr.mxu0 0.0
    %2159 = vmatpush2.msra.mxu0 0.0
    %2160 = vmatprep.mubr.f32.mxu0 0.0
    %2161 = vmatmul.mubr.f32.gmra.mxu0 %v2091
    %v2162 = vpop.f32.mrf.mxu0
    %v2163 = vadd.f32 0.0, %v2162
    %v2164 = vpop.f32.mrf.mxu0
    %2165 = vmatprep.mubr.f32.mxu0 0.0
    %2166 = vmatmul.mubr.f32.gmra.mxu0 %v2094
    %v2167 = vpop.f32.mrf.mxu0
    %v2168 = vadd.f32 0.0, %v2167
    %v2169 = vpop.f32.mrf.mxu0
    %2170 = vdwg.mxu0
    %2171 = vrot.lane.b32.xlu0 %v1553, 104
    %v2172 = vpop.permute.xlu0 %2171
    %2173 = vrot.lane.b32.xlu0 %v1558, 104
    %v2174 = vpop.permute.xlu0 %2173
    %2175 = vrot.lane.b32.xlu0 %v1553, 72
    %v2176 = vpop.permute.xlu0 %2175
    %2177 = vrot.lane.b32.xlu0 %v1558, 72
    %v2178 = vpop.permute.xlu0 %2177
    %v2179 = vsel %vm261, %v2172, 0
    %v2181 = vsel %vm261, %v2174, 0
    %v2183 = vsel %vm261, %v2176, 0
    %v2185 = vsel %vm261, %v2178, 0
    %2187 = vmatprep.subr.mxu0 0.0
    %2188 = vmatpush1.xpose.msra.mxu0 0.0
    %2189 = vmatprep.subr.mxu0 0.0
    %2190 = vmatpush1.xpose.msra.mxu0 0.0
    %2191 = vmatprep.subr.mxu0 0.0
    %2192 = vmatpush1.xpose.msra.mxu0 0.0
    %2193 = vmatprep.subr.mxu0 0.0
    %2194 = vmatpush1.xpose.msra.mxu0 0.0
    %2195 = vmatprep.subr.mxu0 0.0
    %2196 = vmatpush1.xpose.msra.mxu0 0.0
    %2197 = vmatprep.subr.mxu0 0.0
    %2198 = vmatpush1.xpose.msra.mxu0 0.0
    %2199 = vmatprep.subr.mxu0 0.0
    %2200 = vmatpush1.xpose.msra.mxu0 0.0
    %2201 = vmatprep.subr.mxu0 0.0
    %2202 = vmatpush1.xpose.msra.mxu0 0.0
    %2203 = vmatprep.subr.mxu0 0.0
    %2204 = vmatpush1.xpose.msra.mxu0 0.0
    %2205 = vmatprep.subr.mxu0 0.0
    %2206 = vmatpush1.xpose.msra.mxu0 0.0
    %2207 = vmatprep.subr.mxu0 0.0
    %2208 = vmatpush1.xpose.msra.mxu0 0.0
    %2209 = vmatprep.subr.mxu0 0.0
    %2210 = vmatpush1.xpose.msra.mxu0 0.0
    %2211 = vmatprep.subr.mxu0 0.0
    %2212 = vmatpush1.xpose.msra.mxu0 0.0
    %2213 = vmatprep.subr.mxu0 0.0
    %2214 = vmatpush1.xpose.msra.mxu0 0.0
    %2215 = vmatprep.subr.mxu0 0.0
    %2216 = vmatpush1.xpose.msra.mxu0 %v2185
    %2217 = vmatprep.subr.mxu0 0.0
    %2218 = vmatpush1.xpose.msra.mxu0 %v2183
    %2219 = vmatprep.subr.mxu0 0.0
    %2220 = vmatpush2.xpose.msra.mxu0 0.0
    %2221 = vmatprep.subr.mxu0 0.0
    %2222 = vmatpush2.xpose.msra.mxu0 0.0
    %2223 = vmatprep.subr.mxu0 0.0
    %2224 = vmatpush2.xpose.msra.mxu0 0.0
    %2225 = vmatprep.subr.mxu0 0.0
    %2226 = vmatpush2.xpose.msra.mxu0 0.0
    %2227 = vmatprep.subr.mxu0 0.0
    %2228 = vmatpush2.xpose.msra.mxu0 0.0
    %2229 = vmatprep.subr.mxu0 0.0
    %2230 = vmatpush2.xpose.msra.mxu0 0.0
    %2231 = vmatprep.subr.mxu0 0.0
    %2232 = vmatpush2.xpose.msra.mxu0 0.0
    %2233 = vmatprep.subr.mxu0 0.0
    %2234 = vmatpush2.xpose.msra.mxu0 0.0
    %2235 = vmatprep.subr.mxu0 0.0
    %2236 = vmatpush2.xpose.msra.mxu0 0.0
    %2237 = vmatprep.subr.mxu0 0.0
    %2238 = vmatpush2.xpose.msra.mxu0 0.0
    %2239 = vmatprep.subr.mxu0 0.0
    %2240 = vmatpush2.xpose.msra.mxu0 0.0
    %2241 = vmatprep.subr.mxu0 0.0
    %2242 = vmatpush2.xpose.msra.mxu0 0.0
    %2243 = vmatprep.subr.mxu0 0.0
    %2244 = vmatpush2.xpose.msra.mxu0 0.0
    %2245 = vmatprep.subr.mxu0 0.0
    %2246 = vmatpush2.xpose.msra.mxu0 0.0
    %2247 = vmatprep.subr.mxu0 0.0
    %2248 = vmatpush2.xpose.msra.mxu0 0.0
    %2249 = vmatprep.subr.mxu0 0.0
    %2250 = vmatpush2.xpose.msra.mxu0 0.0
    %2251 = vmatprep.mubr.f32.mxu0 0.0
    %2252 = vmatmul.mubr.f32.gmra.mxu0 %v2179
    %v2253 = vpop.f32.mrf.mxu0
    %v2254 = vadd.f32 0.0, %v2253
    %v2255 = vpop.f32.mrf.mxu0
    %2256 = vmatprep.mubr.f32.mxu0 0.0
    %2257 = vmatmul.mubr.f32.gmra.mxu0 %v2181
    %v2258 = vpop.f32.mrf.mxu0
    %v2259 = vadd.f32 0.0, %v2258
    %v2260 = vpop.f32.mrf.mxu0
    %2261 = vdwg.mxu0
    %v2262 = vmul.f32 %v2254, 0.35355338
    %v2263 = vmul.f32 %v2259, 0.35355338
    %v2264 = vadd.f32 %v2262, %v160
    %v2265 = vadd.f32 %v2263, %v161
    %v2266 = vsel %vm349, %v2264, -inf
    %2267 = vmax.xlane.f32.xlu0 %v2266
    %v2268 = vpop.xlane.xlu0 %2267
    %v2269 = vsel %vm349, %v2265, -inf
    %2270 = vmax.xlane.f32.xlu0 %v2269
    %v2271 = vpop.xlane.xlu0 %2270
    %v2272 = vsub.f32 %v2264, %v2268
    %v2273 = vsub.f32 %v2265, %v2271
    %v2274 = vmul.f32 %v2272, 1.442695
    %v2275 = vpow.pop %v2274
    %v2276 = vmul.f32 %v2273, 1.442695
    %v2277 = vpow.pop %v2276
    %v2278 = vsel %vm349, %v2275, 0.0
    %2279 = vadd.xlane.f32.xlu0 %v2278
    %v2280 = vpop.xlane.xlu0 %2279
    %v2281 = vsel %vm349, %v2277, 0.0
    %2282 = vadd.xlane.f32.xlu0 %v2281
    %v2283 = vpop.xlane.xlu0 %2282
    %v2284 = vrcp.pop %v2280
    %v2285 = vrcp.pop %v2283
    %v2286 = vmul.f32 %v2275, %v2284
    %v2287 = vmul.f32 %v2277, %v2285
    %2288 = vrot.lane.b32.xlu0 %v1553, 40
    %v2289 = vpop.permute.xlu0 %2288
    %2290 = vrot.lane.b32.xlu0 %v1558, 40
    %v2291 = vpop.permute.xlu0 %2290
    %v2295 = vsel %vm349, %v2286, 0
    %v2298 = vsel %vm349, %v2287, 0
    %2300 = vmatprep.subr.mxu0 0.0
    %2301 = vmatpush1.msra.mxu0 0.0
    %2302 = vmatprep.subr.mxu0 0.0
    %2303 = vmatpush1.msra.mxu0 0.0
    %2304 = vmatprep.subr.mxu0 0.0
    %2305 = vmatpush1.msra.mxu0 0.0
    %2306 = vmatprep.subr.mxu0 0.0
    %2307 = vmatpush1.msra.mxu0 0.0
    %2308 = vmatprep.subr.mxu0 0.0
    %2309 = vmatpush1.msra.mxu0 0.0
    %2310 = vmatprep.subr.mxu0 0.0
    %2311 = vmatpush1.msra.mxu0 0.0
    %2312 = vmatprep.subr.mxu0 0.0
    %2313 = vmatpush1.msra.mxu0 0.0
    %2314 = vmatprep.subr.mxu0 0.0
    %2315 = vmatpush1.msra.mxu0 0.0
    %2316 = vmatprep.subr.mxu0 0.0
    %2317 = vmatpush1.msra.mxu0 0.0
    %2318 = vmatprep.subr.mxu0 0.0
    %2319 = vmatpush1.msra.mxu0 0.0
    %2320 = vmatprep.subr.mxu0 0.0
    %2321 = vmatpush1.msra.mxu0 0.0
    %2322 = vmatprep.subr.mxu0 0.0
    %2323 = vmatpush1.msra.mxu0 0.0
    %2324 = vmatprep.subr.mxu0 0.0
    %2325 = vmatpush1.msra.mxu0 0.0
    %2326 = vmatprep.subr.mxu0 0.0
    %2327 = vmatpush1.msra.mxu0 0.0
    %2328 = vmatprep.subr.mxu0 0.0
    %2329 = vmatpush1.msra.mxu0 %v2291
    %2330 = vmatprep.subr.mxu0 0.0
    %2331 = vmatpush1.msra.mxu0 %v2289
    %2332 = vmatprep.subr.mxu0 0.0
    %2333 = vmatpush2.msra.mxu0 0.0
    %2334 = vmatprep.subr.mxu0 0.0
    %2335 = vmatpush2.msra.mxu0 0.0
    %2336 = vmatprep.subr.mxu0 0.0
    %2337 = vmatpush2.msra.mxu0 0.0
    %2338 = vmatprep.subr.mxu0 0.0
    %2339 = vmatpush2.msra.mxu0 0.0
    %2340 = vmatprep.subr.mxu0 0.0
    %2341 = vmatpush2.msra.mxu0 0.0
    %2342 = vmatprep.subr.mxu0 0.0
    %2343 = vmatpush2.msra.mxu0 0.0
    %2344 = vmatprep.subr.mxu0 0.0
    %2345 = vmatpush2.msra.mxu0 0.0
    %2346 = vmatprep.subr.mxu0 0.0
    %2347 = vmatpush2.msra.mxu0 0.0
    %2348 = vmatprep.subr.mxu0 0.0
    %2349 = vmatpush2.msra.mxu0 0.0
    %2350 = vmatprep.subr.mxu0 0.0
    %2351 = vmatpush2.msra.mxu0 0.0
    %2352 = vmatprep.subr.mxu0 0.0
    %2353 = vmatpush2.msra.mxu0 0.0
    %2354 = vmatprep.subr.mxu0 0.0
    %2355 = vmatpush2.msra.mxu0 0.0
    %2356 = vmatprep.subr.mxu0 0.0
    %2357 = vmatpush2.msra.mxu0 0.0
    %2358 = vmatprep.subr.mxu0 0.0
    %2359 = vmatpush2.msra.mxu0 0.0
    %2360 = vmatprep.subr.mxu0 0.0
    %2361 = vmatpush2.msra.mxu0 0.0
    %2362 = vmatprep.subr.mxu0 0.0
    %2363 = vmatpush2.msra.mxu0 0.0
    %2364 = vmatprep.mubr.f32.mxu0 0.0
    %2365 = vmatmul.mubr.f32.gmra.mxu0 %v2295
    %v2366 = vpop.f32.mrf.mxu0
    %v2367 = vadd.f32 0.0, %v2366
    %v2368 = vpop.f32.mrf.mxu0
    %2369 = vmatprep.mubr.f32.mxu0 0.0
    %2370 = vmatmul.mubr.f32.gmra.mxu0 %v2298
    %v2371 = vpop.f32.mrf.mxu0
    %v2372 = vadd.f32 0.0, %v2371
    %v2373 = vpop.f32.mrf.mxu0
    %2374 = vdwg.mxu0
    %2377 = vrot.lane.b32.xlu0 %v1959, 8
    %v2378 = vpop.permute.xlu0 %2377
    %2379 = vrot.lane.b32.xlu0 %v1964, 8
    %v2380 = vpop.permute.xlu0 %2379
    %2385 = vrot.lane.b32.xlu0 %v2163, 16
    %v2386 = vpop.permute.xlu0 %2385
    %2387 = vrot.lane.b32.xlu0 %v2168, 16
    %v2388 = vpop.permute.xlu0 %2387
    %2393 = vrot.lane.b32.xlu0 %v2367, 24
    %v2394 = vpop.permute.xlu0 %2393
    %2395 = vrot.lane.b32.xlu0 %v2372, 24
    %v2396 = vpop.permute.xlu0 %2395
    %v2399 = vsel %vm261, %v1755, %v2378
    %v2400 = vsel %vm261, %v1760, %v2380
    %v2401 = vsel %vm349, %v2399, %v2386
    %v2402 = vsel %vm349, %v2400, %v2388
    %v2403 = vsel %vm1099, %v2401, %v2394
    %v2404 = vsel %vm1099, %v2402, %v2396
    %s2405 = scalar_lea.vmem %s6, 32
    %v2406 = vld [vmem:[%s2405] sm:$0xff]
    %v2407 = vld [vmem:[%s2405 + $0x8] sm:$0xff]
    %v2408 = vld [vmem:[%s2405 + $0x10] sm:$0xff]
    %v2409 = vld [vmem:[%s2405 + $0x18] sm:$0xff]
    %s2410 = scalar_lea.vmem %s7, 1
    %v2411 = vld [vmem:[%s2410] sm:$0x1]
    %v2413 = vlaneseq
    %v2414 = vshrl.u32 %v2413, 7
    %v2415 = vsub.s32 0, %v2414
    %v2416 = vrot.slane %v2411, %v2415
    %v2419 = vsel %vm173, %v2403, 0
    %v2422 = vsel %vm173, %v2404, 0
    %2424 = vmatprep.subr.mxu0 0.0
    %2425 = vmatpush1.msra.mxu0 0.0
    %2426 = vmatprep.subr.mxu0 0.0
    %2427 = vmatpush1.msra.mxu0 0.0
    %2428 = vmatprep.subr.mxu0 0.0
    %2429 = vmatpush1.msra.mxu0 0.0
    %2430 = vmatprep.subr.mxu0 0.0
    %2431 = vmatpush1.msra.mxu0 0.0
    %2432 = vmatprep.subr.mxu0 0.0
    %2433 = vmatpush1.msra.mxu0 0.0
    %2434 = vmatprep.subr.mxu0 0.0
    %2435 = vmatpush1.msra.mxu0 0.0
    %2436 = vmatprep.subr.mxu0 0.0
    %2437 = vmatpush1.msra.mxu0 0.0
    %2438 = vmatprep.subr.mxu0 0.0
    %2439 = vmatpush1.msra.mxu0 0.0
    %2440 = vmatprep.subr.mxu0 0.0
    %2441 = vmatpush1.msra.mxu0 0.0
    %2442 = vmatprep.subr.mxu0 0.0
    %2443 = vmatpush1.msra.mxu0 0.0
    %2444 = vmatprep.subr.mxu0 0.0
    %2445 = vmatpush1.msra.mxu0 0.0
    %2446 = vmatprep.subr.mxu0 0.0
    %2447 = vmatpush1.msra.mxu0 0.0
    %2448 = vmatprep.subr.mxu0 0.0
    %2449 = vmatpush1.msra.mxu0 %v2409
    %2450 = vmatprep.subr.mxu0 0.0
    %2451 = vmatpush1.msra.mxu0 %v2408
    %2452 = vmatprep.subr.mxu0 0.0
    %2453 = vmatpush1.msra.mxu0 %v2407
    %2454 = vmatprep.subr.mxu0 0.0
    %2455 = vmatpush1.msra.mxu0 %v2406
    %2456 = vmatprep.subr.mxu0 0.0
    %2457 = vmatpush2.msra.mxu0 0.0
    %2458 = vmatprep.subr.mxu0 0.0
    %2459 = vmatpush2.msra.mxu0 0.0
    %2460 = vmatprep.subr.mxu0 0.0
    %2461 = vmatpush2.msra.mxu0 0.0
    %2462 = vmatprep.subr.mxu0 0.0
    %2463 = vmatpush2.msra.mxu0 0.0
    %2464 = vmatprep.subr.mxu0 0.0
    %2465 = vmatpush2.msra.mxu0 0.0
    %2466 = vmatprep.subr.mxu0 0.0
    %2467 = vmatpush2.msra.mxu0 0.0
    %2468 = vmatprep.subr.mxu0 0.0
    %2469 = vmatpush2.msra.mxu0 0.0
    %2470 = vmatprep.subr.mxu0 0.0
    %2471 = vmatpush2.msra.mxu0 0.0
    %2472 = vmatprep.subr.mxu0 0.0
    %2473 = vmatpush2.msra.mxu0 0.0
    %2474 = vmatprep.subr.mxu0 0.0
    %2475 = vmatpush2.msra.mxu0 0.0
    %2476 = vmatprep.subr.mxu0 0.0
    %2477 = vmatpush2.msra.mxu0 0.0
    %2478 = vmatprep.subr.mxu0 0.0
    %2479 = vmatpush2.msra.mxu0 0.0
    %2480 = vmatprep.subr.mxu0 0.0
    %2481 = vmatpush2.msra.mxu0 0.0
    %2482 = vmatprep.subr.mxu0 0.0
    %2483 = vmatpush2.msra.mxu0 0.0
    %2484 = vmatprep.subr.mxu0 0.0
    %2485 = vmatpush2.msra.mxu0 0.0
    %2486 = vmatprep.subr.mxu0 0.0
    %2487 = vmatpush2.msra.mxu0 0.0
    %2488 = vmatprep.mubr.f32.mxu0 0.0
    %2489 = vmatmul.mubr.f32.gmra.mxu0 %v2419
    %v2490 = vpop.f32.mrf.mxu0
    %v2491 = vadd.f32 %v2416, %v2490
    %v2492 = vpop.f32.mrf.mxu0
    %2493 = vmatprep.mubr.f32.mxu0 0.0
    %2494 = vmatmul.mubr.f32.gmra.mxu0 %v2422
    %v2495 = vpop.f32.mrf.mxu0
    %v2496 = vadd.f32 %v2416, %v2495
    %v2497 = vpop.f32.mrf.mxu0
    %2498 = vdwg.mxu0
    %s2499 = scalar_lea.vmem %s12, 2
    %v2500 = vld [vmem:[%s2499] sm:$0x3]
    %s2501 = scalar_lea.vmem %s13, 2
    %v2502 = vld [vmem:[%s2501] sm:$0x3]
    %v2503 = vadd.f32 %v1465, %v2491
    %v2504 = vadd.f32 %v1466, %v2496
    %v2505 = vsel %vm173, %v2503, 0.0
    %2506 = vadd.xlane.f32.xlu0 %v2505
    %v2507 = vpop.xlane.xlu0 %2506
    %v2508 = vsel %vm173, %v2504, 0.0
    %2509 = vadd.xlane.f32.xlu0 %v2508
    %v2510 = vpop.xlane.xlu0 %2509
    %v2511 = vmul.f32 %v2507, %v1204
    %v2512 = vmul.f32 %v2510, %v1204
    %v2513 = vsub.f32 %v2503, %v2511
    %v2514 = vsub.f32 %v2504, %v2512
    %v2515 = vmul.f32 %v2513, %v2513
    %v2516 = vmul.f32 %v2514, %v2514
    %v2517 = vsel %vm173, %v2515, 0.0
    %2518 = vadd.xlane.f32.xlu0 %v2517
    %v2519 = vpop.xlane.xlu0 %2518
    %v2520 = vsel %vm173, %v2516, 0.0
    %2521 = vadd.xlane.f32.xlu0 %v2520
    %v2522 = vpop.xlane.xlu0 %2521
    %v2523 = vmul.f32 %v2519, %v1204
    %v2524 = vmul.f32 %v2522, %v1204
    %v2525 = vadd.f32 %v2523, 1e-05
    %v2526 = vadd.f32 %v2524, 1e-05
    %v2527 = vrsqrt.pop %v2525
    %v2528 = vrsqrt.pop %v2526
    %v2529 = vmul.f32 %v2513, %v2527
    %v2530 = vmul.f32 %v2514, %v2528
    %v2531 = vlaneseq
    %v2532 = vshrl.u32 %v2531, 7
    %v2533 = vsub.s32 0, %v2532
    %v2534 = vrot.slane %v2500, %v2533
    %v2535 = vmul.f32 %v2529, %v2534
    %v2536 = vmul.f32 %v2530, %v2534
    %v2537 = vlaneseq
    %v2538 = vshrl.u32 %v2537, 7
    %v2539 = vsub.s32 0, %v2538
    %v2540 = vrot.slane %v2502, %v2539
    %v2541 = vadd.f32 %v2535, %v2540
    %v2542 = vadd.f32 %v2536, %v2540
    %s2543 = scalar_lea.vmem %s8, 32
    %v2544 = vld [vmem:[%s2543] sm:$0xff]
    %v2545 = vld [vmem:[%s2543 + $0x8] sm:$0xff]
    %v2546 = vld [vmem:[%s2543 + $0x10] sm:$0xff]
    %v2547 = vld [vmem:[%s2543 + $0x18] sm:$0xff]
    %s2548 = scalar_lea.vmem %s9, 1
    %v2549 = vld [vmem:[%s2548] sm:$0x1]
    %v2551 = vlaneseq
    %v2552 = vshrl.u32 %v2551, 7
    %v2553 = vsub.s32 0, %v2552
    %v2554 = vrot.slane %v2549, %v2553
    %v2557 = vsel %vm173, %v2541, 0
    %v2560 = vsel %vm173, %v2542, 0
    %2562 = vmatprep.subr.mxu0 0.0
    %2563 = vmatpush1.msra.mxu0 0.0
    %2564 = vmatprep.subr.mxu0 0.0
    %2565 = vmatpush1.msra.mxu0 0.0
    %2566 = vmatprep.subr.mxu0 0.0
    %2567 = vmatpush1.msra.mxu0 0.0
    %2568 = vmatprep.subr.mxu0 0.0
    %2569 = vmatpush1.msra.mxu0 0.0
    %2570 = vmatprep.subr.mxu0 0.0
    %2571 = vmatpush1.msra.mxu0 0.0
    %2572 = vmatprep.subr.mxu0 0.0
    %2573 = vmatpush1.msra.mxu0 0.0
    %2574 = vmatprep.subr.mxu0 0.0
    %2575 = vmatpush1.msra.mxu0 0.0
    %2576 = vmatprep.subr.mxu0 0.0
    %2577 = vmatpush1.msra.mxu0 0.0
    %2578 = vmatprep.subr.mxu0 0.0
    %2579 = vmatpush1.msra.mxu0 0.0
    %2580 = vmatprep.subr.mxu0 0.0
    %2581 = vmatpush1.msra.mxu0 0.0
    %2582 = vmatprep.subr.mxu0 0.0
    %2583 = vmatpush1.msra.mxu0 0.0
    %2584 = vmatprep.subr.mxu0 0.0
    %2585 = vmatpush1.msra.mxu0 0.0
    %2586 = vmatprep.subr.mxu0 0.0
    %2587 = vmatpush1.msra.mxu0 %v2547
    %2588 = vmatprep.subr.mxu0 0.0
    %2589 = vmatpush1.msra.mxu0 %v2546
    %2590 = vmatprep.subr.mxu0 0.0
    %2591 = vmatpush1.msra.mxu0 %v2545
    %2592 = vmatprep.subr.mxu0 0.0
    %2593 = vmatpush1.msra.mxu0 %v2544
    %2594 = vmatprep.subr.mxu0 0.0
    %2595 = vmatpush2.msra.mxu0 0.0
    %2596 = vmatprep.subr.mxu0 0.0
    %2597 = vmatpush2.msra.mxu0 0.0
    %2598 = vmatprep.subr.mxu0 0.0
    %2599 = vmatpush2.msra.mxu0 0.0
    %2600 = vmatprep.subr.mxu0 0.0
    %2601 = vmatpush2.msra.mxu0 0.0
    %2602 = vmatprep.subr.mxu0 0.0
    %2603 = vmatpush2.msra.mxu0 0.0
    %2604 = vmatprep.subr.mxu0 0.0
    %2605 = vmatpush2.msra.mxu0 0.0
    %2606 = vmatprep.subr.mxu0 0.0
    %2607 = vmatpush2.msra.mxu0 0.0
    %2608 = vmatprep.subr.mxu0 0.0
    %2609 = vmatpush2.msra.mxu0 0.0
    %2610 = vmatprep.subr.mxu0 0.0
    %2611 = vmatpush2.msra.mxu0 0.0
    %2612 = vmatprep.subr.mxu0 0.0
    %2613 = vmatpush2.msra.mxu0 0.0
    %2614 = vmatprep.subr.mxu0 0.0
    %2615 = vmatpush2.msra.mxu0 0.0
    %2616 = vmatprep.subr.mxu0 0.0
    %2617 = vmatpush2.msra.mxu0 0.0
    %2618 = vmatprep.subr.mxu0 0.0
    %2619 = vmatpush2.msra.mxu0 0.0
    %2620 = vmatprep.subr.mxu0 0.0
    %2621 = vmatpush2.msra.mxu0 0.0
    %2622 = vmatprep.subr.mxu0 0.0
    %2623 = vmatpush2.msra.mxu0 0.0
    %2624 = vmatprep.subr.mxu0 0.0
    %2625 = vmatpush2.msra.mxu0 0.0
    %2626 = vmatprep.mubr.f32.mxu0 0.0
    %2627 = vmatmul.mubr.f32.gmra.mxu0 %v2557
    %v2628 = vpop.f32.mrf.mxu0
    %v2629 = vadd.f32 %v2554, %v2628
    %v2630 = vpop.f32.mrf.mxu0
    %2631 = vmatprep.mubr.f32.mxu0 0.0
    %2632 = vmatmul.mubr.f32.gmra.mxu0 %v2560
    %v2633 = vpop.f32.mrf.mxu0
    %v2634 = vadd.f32 %v2554, %v2633
    %v2635 = vpop.f32.mrf.mxu0
    %2636 = vdwg.mxu0
    %v2637 = vmax.f32 %v2629, 0.0
    %v2638 = vmax.f32 %v2634, 0.0
    %s2639 = scalar_lea.vmem %s10, 64
    %v2640 = vld [vmem:[%s2639] sm:$0xff]
    %v2641 = vld [vmem:[%s2639 + $0x8] sm:$0xff]
    %v2642 = vld [vmem:[%s2639 + $0x10] sm:$0xff]
    %v2643 = vld [vmem:[%s2639 + $0x18] sm:$0xff]
    %v2644 = vld [vmem:[%s2639 + $0x20] sm:$0xff]
    %v2645 = vld [vmem:[%s2639 + $0x28] sm:$0xff]
    %v2646 = vld [vmem:[%s2639 + $0x30] sm:$0xff]
    %v2647 = vld [vmem:[%s2639 + $0x38] sm:$0xff]
    %s2648 = scalar_lea.vmem %s11, 1
    %v2649 = vld [vmem:[%s2648] sm:$0x1]
    %v2651 = vlaneseq
    %v2652 = vshrl.u32 %v2651, 7
    %v2653 = vsub.s32 0, %v2652
    %v2654 = vrot.slane %v2649, %v2653
    %v2657 = vsel %vm72, %v2637, 0
    %v2660 = vsel %vm72, %v2638, 0
    %2662 = vmatprep.subr.mxu0 0.0
    %2663 = vmatpush1.msra.mxu0 0.0
    %2664 = vmatprep.subr.mxu0 0.0
    %2665 = vmatpush1.msra.mxu0 0.0
    %2666 = vmatprep.subr.mxu0 0.0
    %2667 = vmatpush1.msra.mxu0 0.0
    %2668 = vmatprep.subr.mxu0 0.0
    %2669 = vmatpush1.msra.mxu0 0.0
    %2670 = vmatprep.subr.mxu0 0.0
    %2671 = vmatpush1.msra.mxu0 0.0
    %2672 = vmatprep.subr.mxu0 0.0
    %2673 = vmatpush1.msra.mxu0 0.0
    %2674 = vmatprep.subr.mxu0 0.0
    %2675 = vmatpush1.msra.mxu0 0.0
    %2676 = vmatprep.subr.mxu0 0.0
    %2677 = vmatpush1.msra.mxu0 0.0
    %2678 = vmatprep.subr.mxu0 0.0
    %2679 = vmatpush1.msra.mxu0 %v2647
    %2680 = vmatprep.subr.mxu0 0.0
    %2681 = vmatpush1.msra.mxu0 %v2646
    %2682 = vmatprep.subr.mxu0 0.0
    %2683 = vmatpush1.msra.mxu0 %v2645
    %2684 = vmatprep.subr.mxu0 0.0
    %2685 = vmatpush1.msra.mxu0 %v2644
    %2686 = vmatprep.subr.mxu0 0.0
    %2687 = vmatpush1.msra.mxu0 %v2643
    %2688 = vmatprep.subr.mxu0 0.0
    %2689 = vmatpush1.msra.mxu0 %v2642
    %2690 = vmatprep.subr.mxu0 0.0
    %2691 = vmatpush1.msra.mxu0 %v2641
    %2692 = vmatprep.subr.mxu0 0.0
    %2693 = vmatpush1.msra.mxu0 %v2640
    %2694 = vmatprep.subr.mxu0 0.0
    %2695 = vmatpush2.msra.mxu0 0.0
    %2696 = vmatprep.subr.mxu0 0.0
    %2697 = vmatpush2.msra.mxu0 0.0
    %2698 = vmatprep.subr.mxu0 0.0
    %2699 = vmatpush2.msra.mxu0 0.0
    %2700 = vmatprep.subr.mxu0 0.0
    %2701 = vmatpush2.msra.mxu0 0.0
    %2702 = vmatprep.subr.mxu0 0.0
    %2703 = vmatpush2.msra.mxu0 0.0
    %2704 = vmatprep.subr.mxu0 0.0
    %2705 = vmatpush2.msra.mxu0 0.0
    %2706 = vmatprep.subr.mxu0 0.0
    %2707 = vmatpush2.msra.mxu0 0.0
    %2708 = vmatprep.subr.mxu0 0.0
    %2709 = vmatpush2.msra.mxu0 0.0
    %2710 = vmatprep.subr.mxu0 0.0
    %2711 = vmatpush2.msra.mxu0 0.0
    %2712 = vmatprep.subr.mxu0 0.0
    %2713 = vmatpush2.msra.mxu0 0.0
    %2714 = vmatprep.subr.mxu0 0.0
    %2715 = vmatpush2.msra.mxu0 0.0
    %2716 = vmatprep.subr.mxu0 0.0
    %2717 = vmatpush2.msra.mxu0 0.0
    %2718 = vmatprep.subr.mxu0 0.0
    %2719 = vmatpush2.msra.mxu0 0.0
    %2720 = vmatprep.subr.mxu0 0.0
    %2721 = vmatpush2.msra.mxu0 0.0
    %2722 = vmatprep.subr.mxu0 0.0
    %2723 = vmatpush2.msra.mxu0 0.0
    %2724 = vmatprep.subr.mxu0 0.0
    %2725 = vmatpush2.msra.mxu0 0.0
    %2726 = vmatprep.mubr.f32.mxu0 0.0
    %2727 = vmatmul.mubr.f32.gmra.mxu0 %v2657
    %v2728 = vpop.f32.mrf.mxu0
    %v2729 = vadd.f32 %v2654, %v2728
    %v2730 = vpop.f32.mrf.mxu0
    %2731 = vmatprep.mubr.f32.mxu0 0.0
    %2732 = vmatmul.mubr.f32.gmra.mxu0 %v2660
    %v2733 = vpop.f32.mrf.mxu0
    %v2734 = vadd.f32 %v2654, %v2733
    %v2735 = vpop.f32.mrf.mxu0
    %2736 = vdwg.mxu0
    %v2737 = vadd.f32 %v2541, %v2729
    %v2738 = vadd.f32 %v2542, %v2734
    %v2739 = vsel %vm173, %v2737, 0.0
    %2740 = vadd.xlane.f32.xlu0 %v2739
    %v2741 = vpop.xlane.xlu0 %2740
    %v2742 = vsel %vm173, %v2738, 0.0
    %2743 = vadd.xlane.f32.xlu0 %v2742
    %v2744 = vpop.xlane.xlu0 %2743
    %v2745 = vmul.f32 %v2741, %v1204
    %v2746 = vmul.f32 %v2744, %v1204
    %v2747 = vsub.f32 %v2737, %v2745
    %v2748 = vsub.f32 %v2738, %v2746
    %v2749 = vmul.f32 %v2747, %v2747
    %v2750 = vmul.f32 %v2748, %v2748
    %v2751 = vsel %vm173, %v2749, 0.0
    %2752 = vadd.xlane.f32.xlu0 %v2751
    %v2753 = vpop.xlane.xlu0 %2752
    %v2754 = vsel %vm173, %v2750, 0.0
    %2755 = vadd.xlane.f32.xlu0 %v2754
    %v2756 = vpop.xlane.xlu0 %2755
    %v2757 = vmul.f32 %v2753, %v1204
    %v2758 = vmul.f32 %v2756, %v1204
    %v2759 = vadd.f32 %v2757, 1e-05
    %v2760 = vadd.f32 %v2758, 1e-05
    %v2761 = vrsqrt.pop %v2759
    %v2762 = vrsqrt.pop %v2760
    %v2763 = vmul.f32 %v2747, %v2761
    %v2764 = vmul.f32 %v2748, %v2762
    %v2765 = vlaneseq
    %v2766 = vshrl.u32 %v2765, 7
    %v2767 = vsub.s32 1, %v2766
    %v2768 = vrot.slane %v2500, %v2767
    %v2769 = vmul.f32 %v2763, %v2768
    %v2770 = vmul.f32 %v2764, %v2768
    %v2771 = vlaneseq
    %v2772 = vshrl.u32 %v2771, 7
    %v2773 = vsub.s32 1, %v2772
    %v2774 = vrot.slane %v2502, %v2773
    %v2775 = vadd.f32 %v2769, %v2774
    %v2776 = vadd.f32 %v2770, %v2774
    %2777 = vst.msk [vmem:[#allocation2] sm:$0xff] %vm173, %v2775
    %2778 = vst.msk [vmem:[#allocation2 + $0x8] sm:$0xff] %vm173, %v2776
    // Predicated region
    $region58: #{encoder_forward.1} parent=1 // pred_check
      _
    $region59: #{encoder_forward.1} parent=1 // pred_check_branch
      %2780 = sbr.rel (0) target = $region61
    $region60: #{encoder_forward.1} parent=1 // pred_region
      %s2782 = ssub.s32 256, 256
      %2783 = vsyncadd [#allocation3], %s2782
      %s2784 = sshll.u32 [#allocation2], 4
      %s2785 = int_to_ptr.vmem [resolvable:$true] %s2784
      %2790 = dma.vmem_to_hbm [thread:$0]  %s2785, 256, %s14, [#allocation3], 128, 128, 8
    $region61: #{encoder_forward.1} parent=1 // pred_fallthru
      _
    // Predicated region
    $region62: #{encoder_forward.1} parent=1 // pred_check
      _
    $region63: #{encoder_forward.1} parent=1 // pred_check_branch
      %2792 = sbr.rel (0) target = $region65
    $region64: #{encoder_forward.1} parent=1 // pred_region
      %2793 = dma.done [#allocation3], 256
    $region65: #{encoder_forward.1} parent=1 // pred_fallthru
      _
    %2794 = vsyncpa [#allocation3], 1

</llo_original>
